<compile_context>
chip_gen: v7x
topology: tpu7x:2x2x1
jax: 0.10.0
libtpu: 0.0.40
codegen_flags: <defaults>
</compile_context>

<pallas_src>
import functools

import jax
import jax.numpy as jnp
from jax.experimental import pallas as pl
from jax.experimental.pallas import tpu as pltpu


def _round_up(x, m):
    return ((x + m - 1) // m) * m


def _vmem_limit_bytes():
    # Generation-aware VMEM limit: leave headroom below physical capacity.
    try:
        kind = jax.devices()[0].device_kind.lower()
    except Exception:
        kind = ""
    if "v7" in kind:
        return 48 * 1024 * 1024            # v7x: 64 MiB per TC physical
    if "v5" in kind or "v6" in kind:
        return 100 * 1024 * 1024           # v5e/v6e: 128 MiB physical
    return 64 * 1024 * 1024


# ----------------------------- Pallas kernel ---------------------------------
def lm_lstm_kernel(maxlen_ref,                      # scalar-prefetch (SMEM): [n_btiles]
                   lens_ref, emb_ref, w_ih_ref, w_hh_ref, b_ref,
                   w_out_ref, b_out_ref,            # inputs
                   o_ref,                           # output
                   h_ref, c_ref, fin_ref, g0_ref,   # scratch
                   *, n_layers, d_model, tt, bt, unroll):
    D = d_model
    b_idx = pl.program_id(0)
    t_chunk = pl.program_id(1)
    n_chunks = pl.num_programs(1)
    t_base = t_chunk * tt

    # ---- init persistent state at the first time chunk of this batch tile ----
    @pl.when(t_chunk == 0)
    def _init():
        h_ref[...] = jnp.zeros_like(h_ref)
        c_ref[...] = jnp.zeros_like(c_ref)
        fin_ref[...] = jnp.zeros_like(fin_ref)
        o_ref[...] = jnp.zeros_like(o_ref)          # defensive init of the resident block

    # Skip chunks that lie entirely in the padded tail of this batch tile.
    tile_max = maxlen_ref[b_idx]

    @pl.when(t_base < tile_max)
    def _chunk():
        # ---- layer-0 input projection for the whole chunk: one big MXU matmul ----
        emb2d = emb_ref[...].reshape(tt * bt, D)                       # bf16 [tt*bt, D]
        g0 = jnp.dot(emb2d, w_ih_ref[0],
                     preferred_element_type=jnp.float32) + b_ref[0:1, :]
        g0_ref[...] = g0.reshape(tt, bt, 4 * D)                        # f32 [tt, bt, 4D]

        lens = lens_ref[...]                                           # [bt, 1] int32
        # loop-invariant bias broadcasts for layers >= 1 (hoisted out of the loop)
        bias_hi = [jnp.broadcast_to(b_ref[l:l + 1, :], (bt, 4 * D))
                   for l in range(1, n_layers)]

        def sigmoid(z):
            # exp on EUP, approximate reciprocal on EUP (frees VPU divide)
            return pl.reciprocal(1.0 + jnp.exp(-z), approx=True)

        def gates_to_hc(gates, c_prev):
            i = sigmoid(gates[:, 0 * D:1 * D])
            f = sigmoid(gates[:, 1 * D:2 * D])
            g = jnp.tanh(gates[:, 2 * D:3 * D])
            o = sigmoid(gates[:, 3 * D:4 * D])
            c_new = f * c_prev + i * g
            return o * jnp.tanh(c_new), c_new
        # TODO(synk): for D % 128 != 0 the per-gate slices are sub-lane; a
        # gate-major / lane-padded gate layout would avoid XLU relayouts.

        def step(tl, carry):
            # layer 0: recurrent matmul only (input part precomputed above)
            gates0 = g0_ref[tl] + jnp.dot(h_ref[0], w_hh_ref[0],
                                          preferred_element_type=jnp.float32)
            h_new, c_new = gates_to_hc(gates0, c_ref[0])
            c_ref[0] = c_new
            x = h_new.astype(jnp.bfloat16)
            h_ref[0] = x
            # layers >= 1: two accumulating dots (no concat, no fused dead slot)
            for l in range(1, n_layers):
                gates = (jnp.dot(x, w_ih_ref[l], preferred_element_type=jnp.float32)
                         + jnp.dot(h_ref[l], w_hh_ref[l],
                                   preferred_element_type=jnp.float32)
                         + bias_hi[l - 1])
                h_new, c_new = gates_to_hc(gates, c_ref[l])
                c_ref[l] = c_new
                x = h_new.astype(jnp.bfloat16)
                h_ref[l] = x
            # gather the top-layer hidden at the last valid timestep (t == len-1)
            sel = (lens - 1 == t_base + tl).astype(jnp.float32)        # [bt, 1]
            fin_ref[...] += sel * h_new                                # h_new: f32 top layer
            return carry

        jax.lax.fori_loop(0, tt, step, 0, unroll=unroll)

    # ---- output projection on the last chunk of this batch tile ----
    @pl.when(t_chunk == n_chunks - 1)
    def _finalize():
        o_ref[...] = (jnp.dot(fin_ref[...].astype(jnp.bfloat16), w_out_ref[...],
                              preferred_element_type=jnp.float32)
                      + b_out_ref[...])


# ------------------------------ wrapper ---------------------------------------
def language_model_forward(x, params, *, padding_idx, n_layers, d_model, n_labels):
    B, T = x.shape
    D = d_model
    # NOTE: assumes trailing padding only (same assumption as pack_padded_sequence).
    src_lens = jnp.sum((x != padding_idx).astype(jnp.int32), axis=-1)     # [B]

    # ---- tile derivation: fill MXU M-dim, amortize grid overhead, bound VMEM ----
    B_pad = _round_up(max(B, 8), 8)
    if B_pad > 256:
        bt = 256
        B_pad = _round_up(B, 256)
    else:
        bt = B_pad
    g0_budget = 8 * 1024 * 1024                      # f32 layer-0 gate slab budget
    tt = int(max(1, min(T, 64, g0_budget // (bt * 4 * D * 4))))
    T_pad = _round_up(T, tt)
    unroll = int(min(tt, 8))

    x_p = jnp.full((B_pad, T_pad), padding_idx, dtype=x.dtype)
    x_p = x_p.at[:B, :T].set(x)
    lens_p = jnp.zeros((B_pad, 1), jnp.int32).at[:B, 0].set(src_lens)

    # embedding lookup directly in time-major order (no [B,T,D]->[T,B,D] pass);
    # dropout is identity in eval mode
    emb_tm = params['embed'][x_p.T]                                       # bf16 [T_pad, B_pad, D]

    n_btiles = B_pad // bt
    n_chunks = T_pad // tt
    # per-batch-tile max length (scalar prefetch) -> skip all-padding chunks
    tile_max = jnp.max(lens_p.reshape(n_btiles, bt), axis=1).astype(jnp.int32)

    NL = params['w_out_t'].shape[1]                                       # label dim padded to 128
    kernel = functools.partial(lm_lstm_kernel, n_layers=n_layers, d_model=D,
                               tt=tt, bt=bt, unroll=unroll)

    out = pl.pallas_call(
        kernel,
        out_shape=jax.ShapeDtypeStruct((B_pad, NL), jnp.float32),
        grid_spec=pltpu.PrefetchScalarGridSpec(
            num_scalar_prefetch=1,
            grid=(n_btiles, n_chunks),
            in_specs=[
                pl.BlockSpec((bt, 1), lambda b, t, mx: (b, 0)),                     # lens
                pl.BlockSpec((tt, bt, D), lambda b, t, mx: (t, b, 0)),              # emb (time-major)
                pl.BlockSpec((n_layers, D, 4 * D), lambda b, t, mx: (0, 0, 0)),     # W_ih, all layers
                pl.BlockSpec((n_layers, D, 4 * D), lambda b, t, mx: (0, 0, 0)),     # W_hh, all layers
                pl.BlockSpec((n_layers, 4 * D), lambda b, t, mx: (0, 0)),           # biases
                pl.BlockSpec((D, NL), lambda b, t, mx: (0, 0)),                     # w_out
                pl.BlockSpec((1, NL), lambda b, t, mx: (0, 0)),                     # b_out
            ],
            out_specs=pl.BlockSpec((bt, NL), lambda b, t, mx: (b, 0)),
            scratch_shapes=[
                pltpu.VMEM((n_layers, bt, D), jnp.bfloat16),   # h state (bf16)
                pltpu.VMEM((n_layers, bt, D), jnp.float32),    # c state (f32)
                pltpu.VMEM((bt, D), jnp.float32),              # gathered final hidden
                pltpu.VMEM((tt, bt, 4 * D), jnp.float32),      # layer-0 gate slab for the chunk
            ]),
        compiler_params=pltpu.CompilerParams(
            dimension_semantics=("parallel", "arbitrary"),
            vmem_limit_bytes=_vmem_limit_bytes()),
    )(tile_max, lens_p, emb_tm, params['w_ih'], params['w_hh'],
      params['b'], params['w_out_t'], params['b_out'])
    # TODO(synk): for B == 1 PyTorch's .squeeze() returns shape [n_labels]; we keep [B, n_labels].
    return out[:B, :n_labels]


# --------------------------- parameter init -----------------------------------
def init_params(key, n_labels, n_layers, d_model, padding_idx):
    V = n_labels + 1
    D = d_model
    keys = jax.random.split(key, 7)
    embed = jax.random.normal(keys[0], (V, D), jnp.float32)
    embed = embed.at[padding_idx].set(0.0)            # nn.Embedding padding_idx row is zero
    bound = 1.0 / (D ** 0.5)

    def u(k, shape):
        return jax.random.uniform(k, shape, jnp.float32, -bound, bound)

    w_ih = u(keys[1], (n_layers, 4 * D, D))           # input_size == hidden_size
    w_hh = u(keys[2], (n_layers, 4 * D, D))
    b_ih = u(keys[3], (n_layers, 4 * D))
    b_hh = u(keys[4], (n_layers, 4 * D))
    w_out = u(keys[5], (n_labels, D))
    b_out = u(keys[6], (1, n_labels))

    # pre-transpose + bf16 weights (f32 accumulation happens in the kernel)
    w_ih_t = jnp.transpose(w_ih, (0, 2, 1)).astype(jnp.bfloat16)     # [L, D, 4D]
    w_hh_t = jnp.transpose(w_hh, (0, 2, 1)).astype(jnp.bfloat16)     # [L, D, 4D]

    NL = ((n_labels + 127) // 128) * 128                             # lane-dense out dim
    w_out_t = jnp.zeros((D, NL), jnp.bfloat16).at[:, :n_labels].set(
        w_out.T.astype(jnp.bfloat16))
    b_out_p = jnp.zeros((1, NL), jnp.float32).at[:, :n_labels].set(b_out)

    return dict(
        embed=embed.astype(jnp.bfloat16),
        w_ih=w_ih_t,                                  # [L, D, 4D]
        w_hh=w_hh_t,                                  # [L, D, 4D]
        b=(b_ih + b_hh).astype(jnp.float32),          # [L, 4D]
        w_out_t=w_out_t,                              # [D, NL]
        b_out=b_out_p,                                # [1, NL]
    )


# --------------------------- pure-JAX reference --------------------------------
def reference_forward(x, params, *, padding_idx, n_layers, d_model, n_labels):
    B, T = x.shape
    D = d_model
    lens = jnp.sum((x != padding_idx).astype(jnp.int32), axis=-1)
    seq = params['embed'][x].astype(jnp.float32)                      # [B, T, D]
    w_ih = params['w_ih'].astype(jnp.float32)
    w_hh = params['w_hh'].astype(jnp.float32)
    bias = params['b'].astype(jnp.float32)

    def cell(x_t, h, c, w_x, w_h, b):
        gates = x_t @ w_x + h @ w_h + b
        i = jax.nn.sigmoid(gates[:, :D])
        f = jax.nn.sigmoid(gates[:, D:2 * D])
        g = jnp.tanh(gates[:, 2 * D:3 * D])
        o = jax.nn.sigmoid(gates[:, 3 * D:])
        c = f * c + i * g
        return o * jnp.tanh(c), c

    for l in range(n_layers):
        h = jnp.zeros((B, D), jnp.float32)
        c = jnp.zeros((B, D), jnp.float32)
        outs = []
        for t in range(T):
            h, c = cell(seq[:, t, :], h, c, w_ih[l], w_hh[l], bias[l])
            outs.append(h)
        seq = jnp.stack(outs, axis=1)
    final = seq[jnp.arange(B), lens - 1]                              # [B, D]
    w_out = params['w_out_t'].astype(jnp.float32)[:, :n_labels]
    return final @ w_out + params['b_out'][:, :n_labels]


# --------------------------------- main ----------------------------------------
if __name__ == "__main__":
    n_labels, n_layers, d_model, p_drop, padding_idx = 16, 2, 32, 0.1, 0
    B, T = 2, 8

    key = jax.random.PRNGKey(0)
    kp, kx = jax.random.split(key)
    params = init_params(kp, n_labels, n_layers, d_model, padding_idx)

    # tokens in [1, n_labels], padded tails with padding_idx
    x = jax.random.randint(kx, (B, T), 1, n_labels + 1, dtype=jnp.int32)
    valid = jnp.array([T, T - 3], dtype=jnp.int32)
    x = jnp.where(jnp.arange(T)[None, :] < valid[:, None], x, padding_idx)

    out = language_model_forward(x, params, padding_idx=padding_idx,
                                 n_layers=n_layers, d_model=d_model,
                                 n_labels=n_labels)
    out = jax.block_until_ready(out)

    ref = reference_forward(x, params, padding_idx=padding_idx,
                            n_layers=n_layers, d_model=d_model, n_labels=n_labels)
    assert out.shape == (B, n_labels)
    assert jnp.allclose(out, ref, atol=3e-2, rtol=3e-2)
    print("KERNEL_OK")
</pallas_src>

<mosaic_0001>
module attributes {stable_mosaic.version = 11 : i64} {
  func.func @lm_lstm_kernel(%arg0: i32, %arg1: i32, %arg2: memref<1xi32, #tpu.memory_space<smem>>, %arg3: memref<8x1xi32, #tpu.memory_space<vmem>>, %arg4: memref<8x8x32xbf16, #tpu.memory_space<vmem>>, %arg5: memref<2x32x128xbf16, #tpu.memory_space<vmem>>, %arg6: memref<2x32x128xbf16, #tpu.memory_space<vmem>>, %arg7: memref<2x128xf32, #tpu.memory_space<vmem>>, %arg8: memref<32x128xbf16, #tpu.memory_space<vmem>>, %arg9: memref<1x128xf32, #tpu.memory_space<vmem>>, %arg10: memref<8x128xf32, #tpu.memory_space<vmem>>, %arg11: memref<2x8x32xbf16, #tpu.memory_space<vmem>>, %arg12: memref<2x8x32xf32, #tpu.memory_space<vmem>>, %arg13: memref<8x32xf32, #tpu.memory_space<vmem>>, %arg14: memref<8x8x128xf32, #tpu.memory_space<vmem>>) attributes {dimension_semantics = [#tpu.dimension_semantics<parallel>, #tpu.dimension_semantics<arbitrary>], iteration_bounds = array<i64: 1, 1>, scalar_prefetch = 1 : i64, scratch_operands = 4 : i64, tpu.core_type = #tpu.core_type<tc>, window_params = [{transform_indices = @transform_0, window_bounds = array<i64: 8, 1>}, {transform_indices = @transform_1, window_bounds = array<i64: 8, 8, 32>}, {pipeline_mode = #tpu.pipeline_mode<synchronous>, transform_indices = @transform_2, window_bounds = array<i64: 2, 32, 128>}, {pipeline_mode = #tpu.pipeline_mode<synchronous>, transform_indices = @transform_3, window_bounds = array<i64: 2, 32, 128>}, {pipeline_mode = #tpu.pipeline_mode<synchronous>, transform_indices = @transform_4, window_bounds = array<i64: 2, 128>}, {pipeline_mode = #tpu.pipeline_mode<synchronous>, transform_indices = @transform_5, window_bounds = array<i64: 32, 128>}, {pipeline_mode = #tpu.pipeline_mode<synchronous>, transform_indices = @transform_6, window_bounds = array<i64: 1, 128>}, {transform_indices = @transform_7, window_bounds = array<i64: 8, 128>}]} {
    %c8_i32 = arith.constant 8 : i32
    %0 = arith.muli %arg1, %c8_i32 : i32
    %c0_i32 = arith.constant 0 : i32
    %1 = arith.cmpi eq, %arg1, %c0_i32 : i32
    %2 = arith.extui %1 : i1 to i32
    %c0_i32_0 = arith.constant 0 : i32
    %3 = arith.cmpi ne, %2, %c0_i32_0 : i32
    scf.if %3 {
      %cst = arith.constant 0.000000e+00 : bf16
      %12 = vector.broadcast %cst : bf16 to vector<2x8x32xbf16>
      %c0 = arith.constant 0 : index
      %c0_4 = arith.constant 0 : index
      %c0_5 = arith.constant 0 : index
      %13 = vector.load %arg11[%c0, %c0_4, %c0_5] : memref<2x8x32xbf16, #tpu.memory_space<vmem>>, vector<2x8x32xbf16>
      tpu.vector_store %arg11[%c0, %c0_4, %c0_5], %12 {strides = array<i32>} : memref<2x8x32xbf16, #tpu.memory_space<vmem>>, vector<2x8x32xbf16>,
      %cst_6 = arith.constant 0.000000e+00 : f32
      %14 = vector.broadcast %cst_6 : f32 to vector<2x8x32xf32>
      %c0_7 = arith.constant 0 : index
      %c0_8 = arith.constant 0 : index
      %c0_9 = arith.constant 0 : index
      %15 = vector.load %arg12[%c0_7, %c0_8, %c0_9] : memref<2x8x32xf32, #tpu.memory_space<vmem>>, vector<2x8x32xf32>
      tpu.vector_store %arg12[%c0_7, %c0_8, %c0_9], %14 {strides = array<i32>} : memref<2x8x32xf32, #tpu.memory_space<vmem>>, vector<2x8x32xf32>,
      %cst_10 = arith.constant 0.000000e+00 : f32
      %16 = vector.broadcast %cst_10 : f32 to vector<8x32xf32>
      %c0_11 = arith.constant 0 : index
      %c0_12 = arith.constant 0 : index
      %17 = vector.load %arg13[%c0_11, %c0_12] : memref<8x32xf32, #tpu.memory_space<vmem>>, vector<8x32xf32>
      tpu.vector_store %arg13[%c0_11, %c0_12], %16 {strides = array<i32>} : memref<8x32xf32, #tpu.memory_space<vmem>>, vector<8x32xf32>,
      %cst_13 = arith.constant 0.000000e+00 : f32
      %18 = vector.broadcast %cst_13 : f32 to vector<8x128xf32>
      %c0_14 = arith.constant 0 : index
      %c0_15 = arith.constant 0 : index
      %19 = vector.load %arg10[%c0_14, %c0_15] : memref<8x128xf32, #tpu.memory_space<vmem>>, vector<8x128xf32>
      tpu.vector_store %arg10[%c0_14, %c0_15], %18 {strides = array<i32>} : memref<8x128xf32, #tpu.memory_space<vmem>>, vector<8x128xf32>,
    } else {
    }
    %4 = arith.index_cast %arg0 : i32 to index
    %5 = memref.load %arg2[%4] : memref<1xi32, #tpu.memory_space<smem>>
    %6 = arith.cmpi slt, %0, %5 : i32
    %7 = arith.extui %6 : i1 to i32
    %c0_i32_1 = arith.constant 0 : i32
    %8 = arith.cmpi ne, %7, %c0_i32_1 : i32
    scf.if %8 {
      %c0 = arith.constant 0 : index
      %c0_4 = arith.constant 0 : index
      %c0_5 = arith.constant 0 : index
      %12 = vector.load %arg4[%c0, %c0_4, %c0_5] : memref<8x8x32xbf16, #tpu.memory_space<vmem>>, vector<8x8x32xbf16>
      %13 = vector.shape_cast %12 : vector<8x8x32xbf16> to vector<64x32xbf16>
      %c0_6 = arith.constant 0 : index
      %c0_7 = arith.constant 0 : index
      %c0_8 = arith.constant 0 : index
      %14 = vector.load %arg5[%c0_6, %c0_7, %c0_8] : memref<2x32x128xbf16, #tpu.memory_space<vmem>>, vector<1x32x128xbf16>
      %15 = vector.shape_cast %14 : vector<1x32x128xbf16> to vector<32x128xbf16>
      %cst = arith.constant dense<0.000000e+00> : vector<64x128xf32>
      %16 = tpu.matmul %13, %15, %cst {dimension_numbers = #tpu.dot_dimension_numbers<[1], [0], [0], [1], [0, 0, 1, 1], [], []>} : vector<64x32xbf16>, vector<32x128xbf16>, vector<64x128xf32> -> vector<64x128xf32>
      %c0_9 = arith.constant 0 : index
      %c0_10 = arith.constant 0 : index
      %17 = vector.load %arg7[%c0_9, %c0_10] : memref<2x128xf32, #tpu.memory_space<vmem>>, vector<1x128xf32>
      %18 = vector.broadcast %17 : vector<1x128xf32> to vector<64x128xf32>
      %19 = arith.addf %16, %18 : vector<64x128xf32>
      %20 = vector.shape_cast %19 : vector<64x128xf32> to vector<8x8x128xf32>
      %c0_11 = arith.constant 0 : index
      %c0_12 = arith.constant 0 : index
      %c0_13 = arith.constant 0 : index
      %21 = vector.load %arg14[%c0_11, %c0_12, %c0_13] : memref<8x8x128xf32, #tpu.memory_space<vmem>>, vector<8x8x128xf32>
      tpu.vector_store %arg14[%c0_11, %c0_12, %c0_13], %20 {strides = array<i32>} : memref<8x8x128xf32, #tpu.memory_space<vmem>>, vector<8x8x128xf32>,
      %c0_14 = arith.constant 0 : index
      %c0_15 = arith.constant 0 : index
      %22 = vector.load %arg3[%c0_14, %c0_15] : memref<8x1xi32, #tpu.memory_space<vmem>>, vector<8x1xi32>
      %c1 = arith.constant 1 : index
      %c0_16 = arith.constant 0 : index
      %23 = vector.load %arg7[%c1, %c0_16] : memref<2x128xf32, #tpu.memory_space<vmem>>, vector<1x128xf32>
      %24 = vector.shape_cast %23 : vector<1x128xf32> to vector<1x128xf32>
      %25 = vector.broadcast %24 : vector<1x128xf32> to vector<8x128xf32>
      %c0_i32_17 = arith.constant 0 : i32
      %26 = arith.index_cast %c0_i32_17 : i32 to index
      %c0_18 = arith.constant 0 : index
      %c0_19 = arith.constant 0 : index
      %27 = vector.load %arg14[%26, %c0_18, %c0_19] : memref<8x8x128xf32, #tpu.memory_space<vmem>>, vector<1x8x128xf32>
      %28 = vector.shape_cast %27 : vector<1x8x128xf32> to vector<8x128xf32>
      %c0_20 = arith.constant 0 : index
      %c0_21 = arith.constant 0 : index
      %c0_22 = arith.constant 0 : index
      %29 = vector.load %arg11[%c0_20, %c0_21, %c0_22] : memref<2x8x32xbf16, #tpu.memory_space<vmem>>, vector<1x8x32xbf16>
      %30 = vector.shape_cast %29 : vector<1x8x32xbf16> to vector<8x32xbf16>
      %c0_23 = arith.constant 0 : index
      %c0_24 = arith.constant 0 : index
      %c0_25 = arith.constant 0 : index
      %31 = vector.load %arg6[%c0_23, %c0_24, %c0_25] : memref<2x32x128xbf16, #tpu.memory_space<vmem>>, vector<1x32x128xbf16>
      %32 = vector.shape_cast %31 : vector<1x32x128xbf16> to vector<32x128xbf16>
      %cst_26 = arith.constant dense<0.000000e+00> : vector<8x128xf32>
      %33 = tpu.matmul %30, %32, %cst_26 {dimension_numbers = #tpu.dot_dimension_numbers<[1], [0], [0], [1], [0, 0, 1, 1], [], []>} : vector<8x32xbf16>, vector<32x128xbf16>, vector<8x128xf32> -> vector<8x128xf32>
      %34 = arith.addf %28, %33 : vector<8x128xf32>
      %c0_27 = arith.constant 0 : index
      %c0_28 = arith.constant 0 : index
      %c0_29 = arith.constant 0 : index
      %35 = vector.load %arg12[%c0_27, %c0_28, %c0_29] : memref<2x8x32xf32, #tpu.memory_space<vmem>>, vector<1x8x32xf32>
      %36 = vector.shape_cast %35 : vector<1x8x32xf32> to vector<8x32xf32>
      %37 = vector.extract_strided_slice %34 {offsets = [0, 0], sizes = [8, 32], strides = [1, 1]} : vector<8x128xf32> to vector<8x32xf32>
      %cst_30 = arith.constant 0.000000e+00 : f32
      %38 = vector.broadcast %cst_30 : f32 to vector<8x32xf32>
      %39 = arith.subf %38, %37 : vector<8x32xf32>
      %40 = math.exp %39 : vector<8x32xf32>
      %cst_31 = arith.constant 1.000000e+00 : f32
      %41 = vector.broadcast %cst_31 : f32 to vector<8x32xf32>
      %42 = arith.addf %41, %40 : vector<8x32xf32>
      %43 = tpu.reciprocal %42 {approx = true} : vector<8x32xf32> -> vector<8x32xf32>
      %44 = vector.extract_strided_slice %34 {offsets = [0, 32], sizes = [8, 32], strides = [1, 1]} : vector<8x128xf32> to vector<8x32xf32>
      %cst_32 = arith.constant 0.000000e+00 : f32
      %45 = vector.broadcast %cst_32 : f32 to vector<8x32xf32>
      %46 = arith.subf %45, %44 : vector<8x32xf32>
      %47 = math.exp %46 : vector<8x32xf32>
      %cst_33 = arith.constant 1.000000e+00 : f32
      %48 = vector.broadcast %cst_33 : f32 to vector<8x32xf32>
      %49 = arith.addf %48, %47 : vector<8x32xf32>
      %50 = tpu.reciprocal %49 {approx = true} : vector<8x32xf32> -> vector<8x32xf32>
      %51 = vector.extract_strided_slice %34 {offsets = [0, 64], sizes = [8, 32], strides = [1, 1]} : vector<8x128xf32> to vector<8x32xf32>
      %52 = math.tanh %51 : vector<8x32xf32>
      %53 = vector.extract_strided_slice %34 {offsets = [0, 96], sizes = [8, 32], strides = [1, 1]} : vector<8x128xf32> to vector<8x32xf32>
      %cst_34 = arith.constant 0.000000e+00 : f32
      %54 = vector.broadcast %cst_34 : f32 to vector<8x32xf32>
      %55 = arith.subf %54, %53 : vector<8x32xf32>
      %56 = math.exp %55 : vector<8x32xf32>
      %cst_35 = arith.constant 1.000000e+00 : f32
      %57 = vector.broadcast %cst_35 : f32 to vector<8x32xf32>
      %58 = arith.addf %57, %56 : vector<8x32xf32>
      %59 = tpu.reciprocal %58 {approx = true} : vector<8x32xf32> -> vector<8x32xf32>
      %60 = arith.mulf %50, %36 : vector<8x32xf32>
      %61 = arith.mulf %43, %52 : vector<8x32xf32>
      %62 = arith.addf %60, %61 : vector<8x32xf32>
      %63 = math.tanh %62 : vector<8x32xf32>
      %64 = arith.mulf %59, %63 : vector<8x32xf32>
      %c0_36 = arith.constant 0 : index
      %c0_37 = arith.constant 0 : index
      %c0_38 = arith.constant 0 : index
      %65 = vector.load %arg12[%c0_36, %c0_37, %c0_38] : memref<2x8x32xf32, #tpu.memory_space<vmem>>, vector<1x8x32xf32>
      %66 = vector.shape_cast %65 : vector<1x8x32xf32> to vector<8x32xf32>
      %67 = vector.shape_cast %62 : vector<8x32xf32> to vector<1x8x32xf32>
      tpu.vector_store %arg12[%c0_36, %c0_37, %c0_38], %67 {strides = array<i32>} : memref<2x8x32xf32, #tpu.memory_space<vmem>>, vector<1x8x32xf32>,
      %68 = arith.truncf %64 : vector<8x32xf32> to vector<8x32xbf16>
      %c0_39 = arith.constant 0 : index
      %c0_40 = arith.constant 0 : index
      %c0_41 = arith.constant 0 : index
      %69 = vector.load %arg11[%c0_39, %c0_40, %c0_41] : memref<2x8x32xbf16, #tpu.memory_space<vmem>>, vector<1x8x32xbf16>
      %70 = vector.shape_cast %69 : vector<1x8x32xbf16> to vector<8x32xbf16>
      %71 = vector.shape_cast %68 : vector<8x32xbf16> to vector<1x8x32xbf16>
      tpu.vector_store %arg11[%c0_39, %c0_40, %c0_41], %71 {strides = array<i32>} : memref<2x8x32xbf16, #tpu.memory_space<vmem>>, vector<1x8x32xbf16>,
      %c1_42 = arith.constant 1 : index
      %c0_43 = arith.constant 0 : index
      %c0_44 = arith.constant 0 : index
      %72 = vector.load %arg5[%c1_42, %c0_43, %c0_44] : memref<2x32x128xbf16, #tpu.memory_space<vmem>>, vector<1x32x128xbf16>
      %73 = vector.shape_cast %72 : vector<1x32x128xbf16> to vector<32x128xbf16>
      %cst_45 = arith.constant dense<0.000000e+00> : vector<8x128xf32>
      %74 = tpu.matmul %68, %73, %cst_45 {dimension_numbers = #tpu.dot_dimension_numbers<[1], [0], [0], [1], [0, 0, 1, 1], [], []>} : vector<8x32xbf16>, vector<32x128xbf16>, vector<8x128xf32> -> vector<8x128xf32>
      %c1_46 = arith.constant 1 : index
      %c0_47 = arith.constant 0 : index
      %c0_48 = arith.constant 0 : index
      %75 = vector.load %arg11[%c1_46, %c0_47, %c0_48] : memref<2x8x32xbf16, #tpu.memory_space<vmem>>, vector<1x8x32xbf16>
      %76 = vector.shape_cast %75 : vector<1x8x32xbf16> to vector<8x32xbf16>
      %c1_49 = arith.constant 1 : index
      %c0_50 = arith.constant 0 : index
      %c0_51 = arith.constant 0 : index
      %77 = vector.load %arg6[%c1_49, %c0_50, %c0_51] : memref<2x32x128xbf16, #tpu.memory_space<vmem>>, vector<1x32x128xbf16>
      %78 = vector.shape_cast %77 : vector<1x32x128xbf16> to vector<32x128xbf16>
      %cst_52 = arith.constant dense<0.000000e+00> : vector<8x128xf32>
      %79 = tpu.matmul %76, %78, %cst_52 {dimension_numbers = #tpu.dot_dimension_numbers<[1], [0], [0], [1], [0, 0, 1, 1], [], []>} : vector<8x32xbf16>, vector<32x128xbf16>, vector<8x128xf32> -> vector<8x128xf32>
      %80 = arith.addf %74, %79 : vector<8x128xf32>
      %81 = arith.addf %80, %25 : vector<8x128xf32>
      %c1_53 = arith.constant 1 : index
      %c0_54 = arith.constant 0 : index
      %c0_55 = arith.constant 0 : index
      %82 = vector.load %arg12[%c1_53, %c0_54, %c0_55] : memref<2x8x32xf32, #tpu.memory_space<vmem>>, vector<1x8x32xf32>
      %83 = vector.shape_cast %82 : vector<1x8x32xf32> to vector<8x32xf32>
      %84 = vector.extract_strided_slice %81 {offsets = [0, 0], sizes = [8, 32], strides = [1, 1]} : vector<8x128xf32> to vector<8x32xf32>
      %cst_56 = arith.constant 0.000000e+00 : f32
      %85 = vector.broadcast %cst_56 : f32 to vector<8x32xf32>
      %86 = arith.subf %85, %84 : vector<8x32xf32>
      %87 = math.exp %86 : vector<8x32xf32>
      %cst_57 = arith.constant 1.000000e+00 : f32
      %88 = vector.broadcast %cst_57 : f32 to vector<8x32xf32>
      %89 = arith.addf %88, %87 : vector<8x32xf32>
      %90 = tpu.reciprocal %89 {approx = true} : vector<8x32xf32> -> vector<8x32xf32>
      %91 = vector.extract_strided_slice %81 {offsets = [0, 32], sizes = [8, 32], strides = [1, 1]} : vector<8x128xf32> to vector<8x32xf32>
      %cst_58 = arith.constant 0.000000e+00 : f32
      %92 = vector.broadcast %cst_58 : f32 to vector<8x32xf32>
      %93 = arith.subf %92, %91 : vector<8x32xf32>
      %94 = math.exp %93 : vector<8x32xf32>
      %cst_59 = arith.constant 1.000000e+00 : f32
      %95 = vector.broadcast %cst_59 : f32 to vector<8x32xf32>
      %96 = arith.addf %95, %94 : vector<8x32xf32>
      %97 = tpu.reciprocal %96 {approx = true} : vector<8x32xf32> -> vector<8x32xf32>
      %98 = vector.extract_strided_slice %81 {offsets = [0, 64], sizes = [8, 32], strides = [1, 1]} : vector<8x128xf32> to vector<8x32xf32>
      %99 = math.tanh %98 : vector<8x32xf32>
      %100 = vector.extract_strided_slice %81 {offsets = [0, 96], sizes = [8, 32], strides = [1, 1]} : vector<8x128xf32> to vector<8x32xf32>
      %cst_60 = arith.constant 0.000000e+00 : f32
      %101 = vector.broadcast %cst_60 : f32 to vector<8x32xf32>
      %102 = arith.subf %101, %100 : vector<8x32xf32>
      %103 = math.exp %102 : vector<8x32xf32>
      %cst_61 = arith.constant 1.000000e+00 : f32
      %104 = vector.broadcast %cst_61 : f32 to vector<8x32xf32>
      %105 = arith.addf %104, %103 : vector<8x32xf32>
      %106 = tpu.reciprocal %105 {approx = true} : vector<8x32xf32> -> vector<8x32xf32>
      %107 = arith.mulf %97, %83 : vector<8x32xf32>
      %108 = arith.mulf %90, %99 : vector<8x32xf32>
      %109 = arith.addf %107, %108 : vector<8x32xf32>
      %110 = math.tanh %109 : vector<8x32xf32>
      %111 = arith.mulf %106, %110 : vector<8x32xf32>
      %c1_62 = arith.constant 1 : index
      %c0_63 = arith.constant 0 : index
      %c0_64 = arith.constant 0 : index
      %112 = vector.load %arg12[%c1_62, %c0_63, %c0_64] : memref<2x8x32xf32, #tpu.memory_space<vmem>>, vector<1x8x32xf32>
      %113 = vector.shape_cast %112 : vector<1x8x32xf32> to vector<8x32xf32>
      %114 = vector.shape_cast %109 : vector<8x32xf32> to vector<1x8x32xf32>
      tpu.vector_store %arg12[%c1_62, %c0_63, %c0_64], %114 {strides = array<i32>} : memref<2x8x32xf32, #tpu.memory_space<vmem>>, vector<1x8x32xf32>,
      %115 = arith.truncf %111 : vector<8x32xf32> to vector<8x32xbf16>
      %c1_65 = arith.constant 1 : index
      %c0_66 = arith.constant 0 : index
      %c0_67 = arith.constant 0 : index
      %116 = vector.load %arg11[%c1_65, %c0_66, %c0_67] : memref<2x8x32xbf16, #tpu.memory_space<vmem>>, vector<1x8x32xbf16>
      %117 = vector.shape_cast %116 : vector<1x8x32xbf16> to vector<8x32xbf16>
      %118 = vector.shape_cast %115 : vector<8x32xbf16> to vector<1x8x32xbf16>
      tpu.vector_store %arg11[%c1_65, %c0_66, %c0_67], %118 {strides = array<i32>} : memref<2x8x32xbf16, #tpu.memory_space<vmem>>, vector<1x8x32xbf16>,
      %c1_i32 = arith.constant 1 : i32
      %119 = vector.broadcast %c1_i32 : i32 to vector<8x1xi32>
      %120 = arith.subi %22, %119 : vector<8x1xi32>
      %121 = arith.addi %0, %c0_i32_17 : i32
      %122 = vector.broadcast %121 : i32 to vector<8x1xi32>
      %123 = arith.cmpi eq, %120, %122 : vector<8x1xi32>
      %124 = arith.extui %123 : vector<8x1xi1> to vector<8x1xi32>
      %125 = arith.sitofp %124 : vector<8x1xi32> to vector<8x1xf32>
      %c0_68 = arith.constant 0 : index
      %c0_69 = arith.constant 0 : index
      %126 = vector.load %arg13[%c0_68, %c0_69] : memref<8x32xf32, #tpu.memory_space<vmem>>, vector<8x32xf32>
      %127 = vector.broadcast %125 : vector<8x1xf32> to vector<8x32xf32>
      %128 = arith.mulf %127, %111 : vector<8x32xf32>
      %129 = arith.addf %126, %128 : vector<8x32xf32>
      %c0_70 = arith.constant 0 : index
      %c0_71 = arith.constant 0 : index
      %130 = vector.load %arg13[%c0_70, %c0_71] : memref<8x32xf32, #tpu.memory_space<vmem>>, vector<8x32xf32>
      tpu.vector_store %arg13[%c0_70, %c0_71], %129 {strides = array<i32>} : memref<8x32xf32, #tpu.memory_space<vmem>>, vector<8x32xf32>,
      %c1_i32_72 = arith.constant 1 : i32
      %131 = arith.index_cast %c1_i32_72 : i32 to index
      %c0_73 = arith.constant 0 : index
      %c0_74 = arith.constant 0 : index
      %132 = vector.load %arg14[%131, %c0_73, %c0_74] : memref<8x8x128xf32, #tpu.memory_space<vmem>>, vector<1x8x128xf32>
      %133 = vector.shape_cast %132 : vector<1x8x128xf32> to vector<8x128xf32>
      %c0_75 = arith.constant 0 : index
      %c0_76 = arith.constant 0 : index
      %c0_77 = arith.constant 0 : index
      %134 = vector.load %arg11[%c0_75, %c0_76, %c0_77] : memref<2x8x32xbf16, #tpu.memory_space<vmem>>, vector<1x8x32xbf16>
      %135 = vector.shape_cast %134 : vector<1x8x32xbf16> to vector<8x32xbf16>
      %c0_78 = arith.constant 0 : index
      %c0_79 = arith.constant 0 : index
      %c0_80 = arith.constant 0 : index
      %136 = vector.load %arg6[%c0_78, %c0_79, %c0_80] : memref<2x32x128xbf16, #tpu.memory_space<vmem>>, vector<1x32x128xbf16>
      %137 = vector.shape_cast %136 : vector<1x32x128xbf16> to vector<32x128xbf16>
      %cst_81 = arith.constant dense<0.000000e+00> : vector<8x128xf32>
      %138 = tpu.matmul %135, %137, %cst_81 {dimension_numbers = #tpu.dot_dimension_numbers<[1], [0], [0], [1], [0, 0, 1, 1], [], []>} : vector<8x32xbf16>, vector<32x128xbf16>, vector<8x128xf32> -> vector<8x128xf32>
      %139 = arith.addf %133, %138 : vector<8x128xf32>
      %c0_82 = arith.constant 0 : index
      %c0_83 = arith.constant 0 : index
      %c0_84 = arith.constant 0 : index
      %140 = vector.load %arg12[%c0_82, %c0_83, %c0_84] : memref<2x8x32xf32, #tpu.memory_space<vmem>>, vector<1x8x32xf32>
      %141 = vector.shape_cast %140 : vector<1x8x32xf32> to vector<8x32xf32>
      %142 = vector.extract_strided_slice %139 {offsets = [0, 0], sizes = [8, 32], strides = [1, 1]} : vector<8x128xf32> to vector<8x32xf32>
      %cst_85 = arith.constant 0.000000e+00 : f32
      %143 = vector.broadcast %cst_85 : f32 to vector<8x32xf32>
      %144 = arith.subf %143, %142 : vector<8x32xf32>
      %145 = math.exp %144 : vector<8x32xf32>
      %cst_86 = arith.constant 1.000000e+00 : f32
      %146 = vector.broadcast %cst_86 : f32 to vector<8x32xf32>
      %147 = arith.addf %146, %145 : vector<8x32xf32>
      %148 = tpu.reciprocal %147 {approx = true} : vector<8x32xf32> -> vector<8x32xf32>
      %149 = vector.extract_strided_slice %139 {offsets = [0, 32], sizes = [8, 32], strides = [1, 1]} : vector<8x128xf32> to vector<8x32xf32>
      %cst_87 = arith.constant 0.000000e+00 : f32
      %150 = vector.broadcast %cst_87 : f32 to vector<8x32xf32>
      %151 = arith.subf %150, %149 : vector<8x32xf32>
      %152 = math.exp %151 : vector<8x32xf32>
      %cst_88 = arith.constant 1.000000e+00 : f32
      %153 = vector.broadcast %cst_88 : f32 to vector<8x32xf32>
      %154 = arith.addf %153, %152 : vector<8x32xf32>
      %155 = tpu.reciprocal %154 {approx = true} : vector<8x32xf32> -> vector<8x32xf32>
      %156 = vector.extract_strided_slice %139 {offsets = [0, 64], sizes = [8, 32], strides = [1, 1]} : vector<8x128xf32> to vector<8x32xf32>
      %157 = math.tanh %156 : vector<8x32xf32>
      %158 = vector.extract_strided_slice %139 {offsets = [0, 96], sizes = [8, 32], strides = [1, 1]} : vector<8x128xf32> to vector<8x32xf32>
      %cst_89 = arith.constant 0.000000e+00 : f32
      %159 = vector.broadcast %cst_89 : f32 to vector<8x32xf32>
      %160 = arith.subf %159, %158 : vector<8x32xf32>
      %161 = math.exp %160 : vector<8x32xf32>
      %cst_90 = arith.constant 1.000000e+00 : f32
      %162 = vector.broadcast %cst_90 : f32 to vector<8x32xf32>
      %163 = arith.addf %162, %161 : vector<8x32xf32>
      %164 = tpu.reciprocal %163 {approx = true} : vector<8x32xf32> -> vector<8x32xf32>
      %165 = arith.mulf %155, %141 : vector<8x32xf32>
      %166 = arith.mulf %148, %157 : vector<8x32xf32>
      %167 = arith.addf %165, %166 : vector<8x32xf32>
      %168 = math.tanh %167 : vector<8x32xf32>
      %169 = arith.mulf %164, %168 : vector<8x32xf32>
      %c0_91 = arith.constant 0 : index
      %c0_92 = arith.constant 0 : index
      %c0_93 = arith.constant 0 : index
      %170 = vector.load %arg12[%c0_91, %c0_92, %c0_93] : memref<2x8x32xf32, #tpu.memory_space<vmem>>, vector<1x8x32xf32>
      %171 = vector.shape_cast %170 : vector<1x8x32xf32> to vector<8x32xf32>
      %172 = vector.shape_cast %167 : vector<8x32xf32> to vector<1x8x32xf32>
      tpu.vector_store %arg12[%c0_91, %c0_92, %c0_93], %172 {strides = array<i32>} : memref<2x8x32xf32, #tpu.memory_space<vmem>>, vector<1x8x32xf32>,
      %173 = arith.truncf %169 : vector<8x32xf32> to vector<8x32xbf16>
      %c0_94 = arith.constant 0 : index
      %c0_95 = arith.constant 0 : index
      %c0_96 = arith.constant 0 : index
      %174 = vector.load %arg11[%c0_94, %c0_95, %c0_96] : memref<2x8x32xbf16, #tpu.memory_space<vmem>>, vector<1x8x32xbf16>
      %175 = vector.shape_cast %174 : vector<1x8x32xbf16> to vector<8x32xbf16>
      %176 = vector.shape_cast %173 : vector<8x32xbf16> to vector<1x8x32xbf16>
      tpu.vector_store %arg11[%c0_94, %c0_95, %c0_96], %176 {strides = array<i32>} : memref<2x8x32xbf16, #tpu.memory_space<vmem>>, vector<1x8x32xbf16>,
      %c1_97 = arith.constant 1 : index
      %c0_98 = arith.constant 0 : index
      %c0_99 = arith.constant 0 : index
      %177 = vector.load %arg5[%c1_97, %c0_98, %c0_99] : memref<2x32x128xbf16, #tpu.memory_space<vmem>>, vector<1x32x128xbf16>
      %178 = vector.shape_cast %177 : vector<1x32x128xbf16> to vector<32x128xbf16>
      %cst_100 = arith.constant dense<0.000000e+00> : vector<8x128xf32>
      %179 = tpu.matmul %173, %178, %cst_100 {dimension_numbers = #tpu.dot_dimension_numbers<[1], [0], [0], [1], [0, 0, 1, 1], [], []>} : vector<8x32xbf16>, vector<32x128xbf16>, vector<8x128xf32> -> vector<8x128xf32>
      %c1_101 = arith.constant 1 : index
      %c0_102 = arith.constant 0 : index
      %c0_103 = arith.constant 0 : index
      %180 = vector.load %arg11[%c1_101, %c0_102, %c0_103] : memref<2x8x32xbf16, #tpu.memory_space<vmem>>, vector<1x8x32xbf16>
      %181 = vector.shape_cast %180 : vector<1x8x32xbf16> to vector<8x32xbf16>
      %c1_104 = arith.constant 1 : index
      %c0_105 = arith.constant 0 : index
      %c0_106 = arith.constant 0 : index
      %182 = vector.load %arg6[%c1_104, %c0_105, %c0_106] : memref<2x32x128xbf16, #tpu.memory_space<vmem>>, vector<1x32x128xbf16>
      %183 = vector.shape_cast %182 : vector<1x32x128xbf16> to vector<32x128xbf16>
      %cst_107 = arith.constant dense<0.000000e+00> : vector<8x128xf32>
      %184 = tpu.matmul %181, %183, %cst_107 {dimension_numbers = #tpu.dot_dimension_numbers<[1], [0], [0], [1], [0, 0, 1, 1], [], []>} : vector<8x32xbf16>, vector<32x128xbf16>, vector<8x128xf32> -> vector<8x128xf32>
      %185 = arith.addf %179, %184 : vector<8x128xf32>
      %186 = arith.addf %185, %25 : vector<8x128xf32>
      %c1_108 = arith.constant 1 : index
      %c0_109 = arith.constant 0 : index
      %c0_110 = arith.constant 0 : index
      %187 = vector.load %arg12[%c1_108, %c0_109, %c0_110] : memref<2x8x32xf32, #tpu.memory_space<vmem>>, vector<1x8x32xf32>
      %188 = vector.shape_cast %187 : vector<1x8x32xf32> to vector<8x32xf32>
      %189 = vector.extract_strided_slice %186 {offsets = [0, 0], sizes = [8, 32], strides = [1, 1]} : vector<8x128xf32> to vector<8x32xf32>
      %cst_111 = arith.constant 0.000000e+00 : f32
      %190 = vector.broadcast %cst_111 : f32 to vector<8x32xf32>
      %191 = arith.subf %190, %189 : vector<8x32xf32>
      %192 = math.exp %191 : vector<8x32xf32>
      %cst_112 = arith.constant 1.000000e+00 : f32
      %193 = vector.broadcast %cst_112 : f32 to vector<8x32xf32>
      %194 = arith.addf %193, %192 : vector<8x32xf32>
      %195 = tpu.reciprocal %194 {approx = true} : vector<8x32xf32> -> vector<8x32xf32>
      %196 = vector.extract_strided_slice %186 {offsets = [0, 32], sizes = [8, 32], strides = [1, 1]} : vector<8x128xf32> to vector<8x32xf32>
      %cst_113 = arith.constant 0.000000e+00 : f32
      %197 = vector.broadcast %cst_113 : f32 to vector<8x32xf32>
      %198 = arith.subf %197, %196 : vector<8x32xf32>
      %199 = math.exp %198 : vector<8x32xf32>
      %cst_114 = arith.constant 1.000000e+00 : f32
      %200 = vector.broadcast %cst_114 : f32 to vector<8x32xf32>
      %201 = arith.addf %200, %199 : vector<8x32xf32>
      %202 = tpu.reciprocal %201 {approx = true} : vector<8x32xf32> -> vector<8x32xf32>
      %203 = vector.extract_strided_slice %186 {offsets = [0, 64], sizes = [8, 32], strides = [1, 1]} : vector<8x128xf32> to vector<8x32xf32>
      %204 = math.tanh %203 : vector<8x32xf32>
      %205 = vector.extract_strided_slice %186 {offsets = [0, 96], sizes = [8, 32], strides = [1, 1]} : vector<8x128xf32> to vector<8x32xf32>
      %cst_115 = arith.constant 0.000000e+00 : f32
      %206 = vector.broadcast %cst_115 : f32 to vector<8x32xf32>
      %207 = arith.subf %206, %205 : vector<8x32xf32>
      %208 = math.exp %207 : vector<8x32xf32>
      %cst_116 = arith.constant 1.000000e+00 : f32
      %209 = vector.broadcast %cst_116 : f32 to vector<8x32xf32>
      %210 = arith.addf %209, %208 : vector<8x32xf32>
      %211 = tpu.reciprocal %210 {approx = true} : vector<8x32xf32> -> vector<8x32xf32>
      %212 = arith.mulf %202, %188 : vector<8x32xf32>
      %213 = arith.mulf %195, %204 : vector<8x32xf32>
      %214 = arith.addf %212, %213 : vector<8x32xf32>
      %215 = math.tanh %214 : vector<8x32xf32>
      %216 = arith.mulf %211, %215 : vector<8x32xf32>
      %c1_117 = arith.constant 1 : index
      %c0_118 = arith.constant 0 : index
      %c0_119 = arith.constant 0 : index
      %217 = vector.load %arg12[%c1_117, %c0_118, %c0_119] : memref<2x8x32xf32, #tpu.memory_space<vmem>>, vector<1x8x32xf32>
      %218 = vector.shape_cast %217 : vector<1x8x32xf32> to vector<8x32xf32>
      %219 = vector.shape_cast %214 : vector<8x32xf32> to vector<1x8x32xf32>
      tpu.vector_store %arg12[%c1_117, %c0_118, %c0_119], %219 {strides = array<i32>} : memref<2x8x32xf32, #tpu.memory_space<vmem>>, vector<1x8x32xf32>,
      %220 = arith.truncf %216 : vector<8x32xf32> to vector<8x32xbf16>
      %c1_120 = arith.constant 1 : index
      %c0_121 = arith.constant 0 : index
      %c0_122 = arith.constant 0 : index
      %221 = vector.load %arg11[%c1_120, %c0_121, %c0_122] : memref<2x8x32xbf16, #tpu.memory_space<vmem>>, vector<1x8x32xbf16>
      %222 = vector.shape_cast %221 : vector<1x8x32xbf16> to vector<8x32xbf16>
      %223 = vector.shape_cast %220 : vector<8x32xbf16> to vector<1x8x32xbf16>
      tpu.vector_store %arg11[%c1_120, %c0_121, %c0_122], %223 {strides = array<i32>} : memref<2x8x32xbf16, #tpu.memory_space<vmem>>, vector<1x8x32xbf16>,
      %c1_i32_123 = arith.constant 1 : i32
      %224 = vector.broadcast %c1_i32_123 : i32 to vector<8x1xi32>
      %225 = arith.subi %22, %224 : vector<8x1xi32>
      %226 = arith.addi %0, %c1_i32_72 : i32
      %227 = vector.broadcast %226 : i32 to vector<8x1xi32>
      %228 = arith.cmpi eq, %225, %227 : vector<8x1xi32>
      %229 = arith.extui %228 : vector<8x1xi1> to vector<8x1xi32>
      %230 = arith.sitofp %229 : vector<8x1xi32> to vector<8x1xf32>
      %c0_124 = arith.constant 0 : index
      %c0_125 = arith.constant 0 : index
      %231 = vector.load %arg13[%c0_124, %c0_125] : memref<8x32xf32, #tpu.memory_space<vmem>>, vector<8x32xf32>
      %232 = vector.broadcast %230 : vector<8x1xf32> to vector<8x32xf32>
      %233 = arith.mulf %232, %216 : vector<8x32xf32>
      %234 = arith.addf %231, %233 : vector<8x32xf32>
      %c0_126 = arith.constant 0 : index
      %c0_127 = arith.constant 0 : index
      %235 = vector.load %arg13[%c0_126, %c0_127] : memref<8x32xf32, #tpu.memory_space<vmem>>, vector<8x32xf32>
      tpu.vector_store %arg13[%c0_126, %c0_127], %234 {strides = array<i32>} : memref<8x32xf32, #tpu.memory_space<vmem>>, vector<8x32xf32>,
      %c2_i32 = arith.constant 2 : i32
      %236 = arith.index_cast %c2_i32 : i32 to index
      %c0_128 = arith.constant 0 : index
      %c0_129 = arith.constant 0 : index
      %237 = vector.load %arg14[%236, %c0_128, %c0_129] : memref<8x8x128xf32, #tpu.memory_space<vmem>>, vector<1x8x128xf32>
      %238 = vector.shape_cast %237 : vector<1x8x128xf32> to vector<8x128xf32>
      %c0_130 = arith.constant 0 : index
      %c0_131 = arith.constant 0 : index
      %c0_132 = arith.constant 0 : index
      %239 = vector.load %arg11[%c0_130, %c0_131, %c0_132] : memref<2x8x32xbf16, #tpu.memory_space<vmem>>, vector<1x8x32xbf16>
      %240 = vector.shape_cast %239 : vector<1x8x32xbf16> to vector<8x32xbf16>
      %c0_133 = arith.constant 0 : index
      %c0_134 = arith.constant 0 : index
      %c0_135 = arith.constant 0 : index
      %241 = vector.load %arg6[%c0_133, %c0_134, %c0_135] : memref<2x32x128xbf16, #tpu.memory_space<vmem>>, vector<1x32x128xbf16>
      %242 = vector.shape_cast %241 : vector<1x32x128xbf16> to vector<32x128xbf16>
      %cst_136 = arith.constant dense<0.000000e+00> : vector<8x128xf32>
      %243 = tpu.matmul %240, %242, %cst_136 {dimension_numbers = #tpu.dot_dimension_numbers<[1], [0], [0], [1], [0, 0, 1, 1], [], []>} : vector<8x32xbf16>, vector<32x128xbf16>, vector<8x128xf32> -> vector<8x128xf32>
      %244 = arith.addf %238, %243 : vector<8x128xf32>
      %c0_137 = arith.constant 0 : index
      %c0_138 = arith.constant 0 : index
      %c0_139 = arith.constant 0 : index
      %245 = vector.load %arg12[%c0_137, %c0_138, %c0_139] : memref<2x8x32xf32, #tpu.memory_space<vmem>>, vector<1x8x32xf32>
      %246 = vector.shape_cast %245 : vector<1x8x32xf32> to vector<8x32xf32>
      %247 = vector.extract_strided_slice %244 {offsets = [0, 0], sizes = [8, 32], strides = [1, 1]} : vector<8x128xf32> to vector<8x32xf32>
      %cst_140 = arith.constant 0.000000e+00 : f32
      %248 = vector.broadcast %cst_140 : f32 to vector<8x32xf32>
      %249 = arith.subf %248, %247 : vector<8x32xf32>
      %250 = math.exp %249 : vector<8x32xf32>
      %cst_141 = arith.constant 1.000000e+00 : f32
      %251 = vector.broadcast %cst_141 : f32 to vector<8x32xf32>
      %252 = arith.addf %251, %250 : vector<8x32xf32>
      %253 = tpu.reciprocal %252 {approx = true} : vector<8x32xf32> -> vector<8x32xf32>
      %254 = vector.extract_strided_slice %244 {offsets = [0, 32], sizes = [8, 32], strides = [1, 1]} : vector<8x128xf32> to vector<8x32xf32>
      %cst_142 = arith.constant 0.000000e+00 : f32
      %255 = vector.broadcast %cst_142 : f32 to vector<8x32xf32>
      %256 = arith.subf %255, %254 : vector<8x32xf32>
      %257 = math.exp %256 : vector<8x32xf32>
      %cst_143 = arith.constant 1.000000e+00 : f32
      %258 = vector.broadcast %cst_143 : f32 to vector<8x32xf32>
      %259 = arith.addf %258, %257 : vector<8x32xf32>
      %260 = tpu.reciprocal %259 {approx = true} : vector<8x32xf32> -> vector<8x32xf32>
      %261 = vector.extract_strided_slice %244 {offsets = [0, 64], sizes = [8, 32], strides = [1, 1]} : vector<8x128xf32> to vector<8x32xf32>
      %262 = math.tanh %261 : vector<8x32xf32>
      %263 = vector.extract_strided_slice %244 {offsets = [0, 96], sizes = [8, 32], strides = [1, 1]} : vector<8x128xf32> to vector<8x32xf32>
      %cst_144 = arith.constant 0.000000e+00 : f32
      %264 = vector.broadcast %cst_144 : f32 to vector<8x32xf32>
      %265 = arith.subf %264, %263 : vector<8x32xf32>
      %266 = math.exp %265 : vector<8x32xf32>
      %cst_145 = arith.constant 1.000000e+00 : f32
      %267 = vector.broadcast %cst_145 : f32 to vector<8x32xf32>
      %268 = arith.addf %267, %266 : vector<8x32xf32>
      %269 = tpu.reciprocal %268 {approx = true} : vector<8x32xf32> -> vector<8x32xf32>
      %270 = arith.mulf %260, %246 : vector<8x32xf32>
      %271 = arith.mulf %253, %262 : vector<8x32xf32>
      %272 = arith.addf %270, %271 : vector<8x32xf32>
      %273 = math.tanh %272 : vector<8x32xf32>
      %274 = arith.mulf %269, %273 : vector<8x32xf32>
      %c0_146 = arith.constant 0 : index
      %c0_147 = arith.constant 0 : index
      %c0_148 = arith.constant 0 : index
      %275 = vector.load %arg12[%c0_146, %c0_147, %c0_148] : memref<2x8x32xf32, #tpu.memory_space<vmem>>, vector<1x8x32xf32>
      %276 = vector.shape_cast %275 : vector<1x8x32xf32> to vector<8x32xf32>
      %277 = vector.shape_cast %272 : vector<8x32xf32> to vector<1x8x32xf32>
      tpu.vector_store %arg12[%c0_146, %c0_147, %c0_148], %277 {strides = array<i32>} : memref<2x8x32xf32, #tpu.memory_space<vmem>>, vector<1x8x32xf32>,
      %278 = arith.truncf %274 : vector<8x32xf32> to vector<8x32xbf16>
      %c0_149 = arith.constant 0 : index
      %c0_150 = arith.constant 0 : index
      %c0_151 = arith.constant 0 : index
      %279 = vector.load %arg11[%c0_149, %c0_150, %c0_151] : memref<2x8x32xbf16, #tpu.memory_space<vmem>>, vector<1x8x32xbf16>
      %280 = vector.shape_cast %279 : vector<1x8x32xbf16> to vector<8x32xbf16>
      %281 = vector.shape_cast %278 : vector<8x32xbf16> to vector<1x8x32xbf16>
      tpu.vector_store %arg11[%c0_149, %c0_150, %c0_151], %281 {strides = array<i32>} : memref<2x8x32xbf16, #tpu.memory_space<vmem>>, vector<1x8x32xbf16>,
      %c1_152 = arith.constant 1 : index
      %c0_153 = arith.constant 0 : index
      %c0_154 = arith.constant 0 : index
      %282 = vector.load %arg5[%c1_152, %c0_153, %c0_154] : memref<2x32x128xbf16, #tpu.memory_space<vmem>>, vector<1x32x128xbf16>
      %283 = vector.shape_cast %282 : vector<1x32x128xbf16> to vector<32x128xbf16>
      %cst_155 = arith.constant dense<0.000000e+00> : vector<8x128xf32>
      %284 = tpu.matmul %278, %283, %cst_155 {dimension_numbers = #tpu.dot_dimension_numbers<[1], [0], [0], [1], [0, 0, 1, 1], [], []>} : vector<8x32xbf16>, vector<32x128xbf16>, vector<8x128xf32> -> vector<8x128xf32>
      %c1_156 = arith.constant 1 : index
      %c0_157 = arith.constant 0 : index
      %c0_158 = arith.constant 0 : index
      %285 = vector.load %arg11[%c1_156, %c0_157, %c0_158] : memref<2x8x32xbf16, #tpu.memory_space<vmem>>, vector<1x8x32xbf16>
      %286 = vector.shape_cast %285 : vector<1x8x32xbf16> to vector<8x32xbf16>
      %c1_159 = arith.constant 1 : index
      %c0_160 = arith.constant 0 : index
      %c0_161 = arith.constant 0 : index
      %287 = vector.load %arg6[%c1_159, %c0_160, %c0_161] : memref<2x32x128xbf16, #tpu.memory_space<vmem>>, vector<1x32x128xbf16>
      %288 = vector.shape_cast %287 : vector<1x32x128xbf16> to vector<32x128xbf16>
      %cst_162 = arith.constant dense<0.000000e+00> : vector<8x128xf32>
      %289 = tpu.matmul %286, %288, %cst_162 {dimension_numbers = #tpu.dot_dimension_numbers<[1], [0], [0], [1], [0, 0, 1, 1], [], []>} : vector<8x32xbf16>, vector<32x128xbf16>, vector<8x128xf32> -> vector<8x128xf32>
      %290 = arith.addf %284, %289 : vector<8x128xf32>
      %291 = arith.addf %290, %25 : vector<8x128xf32>
      %c1_163 = arith.constant 1 : index
      %c0_164 = arith.constant 0 : index
      %c0_165 = arith.constant 0 : index
      %292 = vector.load %arg12[%c1_163, %c0_164, %c0_165] : memref<2x8x32xf32, #tpu.memory_space<vmem>>, vector<1x8x32xf32>
      %293 = vector.shape_cast %292 : vector<1x8x32xf32> to vector<8x32xf32>
      %294 = vector.extract_strided_slice %291 {offsets = [0, 0], sizes = [8, 32], strides = [1, 1]} : vector<8x128xf32> to vector<8x32xf32>
      %cst_166 = arith.constant 0.000000e+00 : f32
      %295 = vector.broadcast %cst_166 : f32 to vector<8x32xf32>
      %296 = arith.subf %295, %294 : vector<8x32xf32>
      %297 = math.exp %296 : vector<8x32xf32>
      %cst_167 = arith.constant 1.000000e+00 : f32
      %298 = vector.broadcast %cst_167 : f32 to vector<8x32xf32>
      %299 = arith.addf %298, %297 : vector<8x32xf32>
      %300 = tpu.reciprocal %299 {approx = true} : vector<8x32xf32> -> vector<8x32xf32>
      %301 = vector.extract_strided_slice %291 {offsets = [0, 32], sizes = [8, 32], strides = [1, 1]} : vector<8x128xf32> to vector<8x32xf32>
      %cst_168 = arith.constant 0.000000e+00 : f32
      %302 = vector.broadcast %cst_168 : f32 to vector<8x32xf32>
      %303 = arith.subf %302, %301 : vector<8x32xf32>
      %304 = math.exp %303 : vector<8x32xf32>
      %cst_169 = arith.constant 1.000000e+00 : f32
      %305 = vector.broadcast %cst_169 : f32 to vector<8x32xf32>
      %306 = arith.addf %305, %304 : vector<8x32xf32>
      %307 = tpu.reciprocal %306 {approx = true} : vector<8x32xf32> -> vector<8x32xf32>
      %308 = vector.extract_strided_slice %291 {offsets = [0, 64], sizes = [8, 32], strides = [1, 1]} : vector<8x128xf32> to vector<8x32xf32>
      %309 = math.tanh %308 : vector<8x32xf32>
      %310 = vector.extract_strided_slice %291 {offsets = [0, 96], sizes = [8, 32], strides = [1, 1]} : vector<8x128xf32> to vector<8x32xf32>
      %cst_170 = arith.constant 0.000000e+00 : f32
      %311 = vector.broadcast %cst_170 : f32 to vector<8x32xf32>
      %312 = arith.subf %311, %310 : vector<8x32xf32>
      %313 = math.exp %312 : vector<8x32xf32>
      %cst_171 = arith.constant 1.000000e+00 : f32
      %314 = vector.broadcast %cst_171 : f32 to vector<8x32xf32>
      %315 = arith.addf %314, %313 : vector<8x32xf32>
      %316 = tpu.reciprocal %315 {approx = true} : vector<8x32xf32> -> vector<8x32xf32>
      %317 = arith.mulf %307, %293 : vector<8x32xf32>
      %318 = arith.mulf %300, %309 : vector<8x32xf32>
      %319 = arith.addf %317, %318 : vector<8x32xf32>
      %320 = math.tanh %319 : vector<8x32xf32>
      %321 = arith.mulf %316, %320 : vector<8x32xf32>
      %c1_172 = arith.constant 1 : index
      %c0_173 = arith.constant 0 : index
      %c0_174 = arith.constant 0 : index
      %322 = vector.load %arg12[%c1_172, %c0_173, %c0_174] : memref<2x8x32xf32, #tpu.memory_space<vmem>>, vector<1x8x32xf32>
      %323 = vector.shape_cast %322 : vector<1x8x32xf32> to vector<8x32xf32>
      %324 = vector.shape_cast %319 : vector<8x32xf32> to vector<1x8x32xf32>
      tpu.vector_store %arg12[%c1_172, %c0_173, %c0_174], %324 {strides = array<i32>} : memref<2x8x32xf32, #tpu.memory_space<vmem>>, vector<1x8x32xf32>,
      %325 = arith.truncf %321 : vector<8x32xf32> to vector<8x32xbf16>
      %c1_175 = arith.constant 1 : index
      %c0_176 = arith.constant 0 : index
      %c0_177 = arith.constant 0 : index
      %326 = vector.load %arg11[%c1_175, %c0_176, %c0_177] : memref<2x8x32xbf16, #tpu.memory_space<vmem>>, vector<1x8x32xbf16>
      %327 = vector.shape_cast %326 : vector<1x8x32xbf16> to vector<8x32xbf16>
      %328 = vector.shape_cast %325 : vector<8x32xbf16> to vector<1x8x32xbf16>
      tpu.vector_store %arg11[%c1_175, %c0_176, %c0_177], %328 {strides = array<i32>} : memref<2x8x32xbf16, #tpu.memory_space<vmem>>, vector<1x8x32xbf16>,
      %c1_i32_178 = arith.constant 1 : i32
      %329 = vector.broadcast %c1_i32_178 : i32 to vector<8x1xi32>
      %330 = arith.subi %22, %329 : vector<8x1xi32>
      %331 = arith.addi %0, %c2_i32 : i32
      %332 = vector.broadcast %331 : i32 to vector<8x1xi32>
      %333 = arith.cmpi eq, %330, %332 : vector<8x1xi32>
      %334 = arith.extui %333 : vector<8x1xi1> to vector<8x1xi32>
      %335 = arith.sitofp %334 : vector<8x1xi32> to vector<8x1xf32>
      %c0_179 = arith.constant 0 : index
      %c0_180 = arith.constant 0 : index
      %336 = vector.load %arg13[%c0_179, %c0_180] : memref<8x32xf32, #tpu.memory_space<vmem>>, vector<8x32xf32>
      %337 = vector.broadcast %335 : vector<8x1xf32> to vector<8x32xf32>
      %338 = arith.mulf %337, %321 : vector<8x32xf32>
      %339 = arith.addf %336, %338 : vector<8x32xf32>
      %c0_181 = arith.constant 0 : index
      %c0_182 = arith.constant 0 : index
      %340 = vector.load %arg13[%c0_181, %c0_182] : memref<8x32xf32, #tpu.memory_space<vmem>>, vector<8x32xf32>
      tpu.vector_store %arg13[%c0_181, %c0_182], %339 {strides = array<i32>} : memref<8x32xf32, #tpu.memory_space<vmem>>, vector<8x32xf32>,
      %c3_i32 = arith.constant 3 : i32
      %341 = arith.index_cast %c3_i32 : i32 to index
      %c0_183 = arith.constant 0 : index
      %c0_184 = arith.constant 0 : index
      %342 = vector.load %arg14[%341, %c0_183, %c0_184] : memref<8x8x128xf32, #tpu.memory_space<vmem>>, vector<1x8x128xf32>
      %343 = vector.shape_cast %342 : vector<1x8x128xf32> to vector<8x128xf32>
      %c0_185 = arith.constant 0 : index
      %c0_186 = arith.constant 0 : index
      %c0_187 = arith.constant 0 : index
      %344 = vector.load %arg11[%c0_185, %c0_186, %c0_187] : memref<2x8x32xbf16, #tpu.memory_space<vmem>>, vector<1x8x32xbf16>
      %345 = vector.shape_cast %344 : vector<1x8x32xbf16> to vector<8x32xbf16>
      %c0_188 = arith.constant 0 : index
      %c0_189 = arith.constant 0 : index
      %c0_190 = arith.constant 0 : index
      %346 = vector.load %arg6[%c0_188, %c0_189, %c0_190] : memref<2x32x128xbf16, #tpu.memory_space<vmem>>, vector<1x32x128xbf16>
      %347 = vector.shape_cast %346 : vector<1x32x128xbf16> to vector<32x128xbf16>
      %cst_191 = arith.constant dense<0.000000e+00> : vector<8x128xf32>
      %348 = tpu.matmul %345, %347, %cst_191 {dimension_numbers = #tpu.dot_dimension_numbers<[1], [0], [0], [1], [0, 0, 1, 1], [], []>} : vector<8x32xbf16>, vector<32x128xbf16>, vector<8x128xf32> -> vector<8x128xf32>
      %349 = arith.addf %343, %348 : vector<8x128xf32>
      %c0_192 = arith.constant 0 : index
      %c0_193 = arith.constant 0 : index
      %c0_194 = arith.constant 0 : index
      %350 = vector.load %arg12[%c0_192, %c0_193, %c0_194] : memref<2x8x32xf32, #tpu.memory_space<vmem>>, vector<1x8x32xf32>
      %351 = vector.shape_cast %350 : vector<1x8x32xf32> to vector<8x32xf32>
      %352 = vector.extract_strided_slice %349 {offsets = [0, 0], sizes = [8, 32], strides = [1, 1]} : vector<8x128xf32> to vector<8x32xf32>
      %cst_195 = arith.constant 0.000000e+00 : f32
      %353 = vector.broadcast %cst_195 : f32 to vector<8x32xf32>
      %354 = arith.subf %353, %352 : vector<8x32xf32>
      %355 = math.exp %354 : vector<8x32xf32>
      %cst_196 = arith.constant 1.000000e+00 : f32
      %356 = vector.broadcast %cst_196 : f32 to vector<8x32xf32>
      %357 = arith.addf %356, %355 : vector<8x32xf32>
      %358 = tpu.reciprocal %357 {approx = true} : vector<8x32xf32> -> vector<8x32xf32>
      %359 = vector.extract_strided_slice %349 {offsets = [0, 32], sizes = [8, 32], strides = [1, 1]} : vector<8x128xf32> to vector<8x32xf32>
      %cst_197 = arith.constant 0.000000e+00 : f32
      %360 = vector.broadcast %cst_197 : f32 to vector<8x32xf32>
      %361 = arith.subf %360, %359 : vector<8x32xf32>
      %362 = math.exp %361 : vector<8x32xf32>
      %cst_198 = arith.constant 1.000000e+00 : f32
      %363 = vector.broadcast %cst_198 : f32 to vector<8x32xf32>
      %364 = arith.addf %363, %362 : vector<8x32xf32>
      %365 = tpu.reciprocal %364 {approx = true} : vector<8x32xf32> -> vector<8x32xf32>
      %366 = vector.extract_strided_slice %349 {offsets = [0, 64], sizes = [8, 32], strides = [1, 1]} : vector<8x128xf32> to vector<8x32xf32>
      %367 = math.tanh %366 : vector<8x32xf32>
      %368 = vector.extract_strided_slice %349 {offsets = [0, 96], sizes = [8, 32], strides = [1, 1]} : vector<8x128xf32> to vector<8x32xf32>
      %cst_199 = arith.constant 0.000000e+00 : f32
      %369 = vector.broadcast %cst_199 : f32 to vector<8x32xf32>
      %370 = arith.subf %369, %368 : vector<8x32xf32>
      %371 = math.exp %370 : vector<8x32xf32>
      %cst_200 = arith.constant 1.000000e+00 : f32
      %372 = vector.broadcast %cst_200 : f32 to vector<8x32xf32>
      %373 = arith.addf %372, %371 : vector<8x32xf32>
      %374 = tpu.reciprocal %373 {approx = true} : vector<8x32xf32> -> vector<8x32xf32>
      %375 = arith.mulf %365, %351 : vector<8x32xf32>
      %376 = arith.mulf %358, %367 : vector<8x32xf32>
      %377 = arith.addf %375, %376 : vector<8x32xf32>
      %378 = math.tanh %377 : vector<8x32xf32>
      %379 = arith.mulf %374, %378 : vector<8x32xf32>
      %c0_201 = arith.constant 0 : index
      %c0_202 = arith.constant 0 : index
      %c0_203 = arith.constant 0 : index
      %380 = vector.load %arg12[%c0_201, %c0_202, %c0_203] : memref<2x8x32xf32, #tpu.memory_space<vmem>>, vector<1x8x32xf32>
      %381 = vector.shape_cast %380 : vector<1x8x32xf32> to vector<8x32xf32>
      %382 = vector.shape_cast %377 : vector<8x32xf32> to vector<1x8x32xf32>
      tpu.vector_store %arg12[%c0_201, %c0_202, %c0_203], %382 {strides = array<i32>} : memref<2x8x32xf32, #tpu.memory_space<vmem>>, vector<1x8x32xf32>,
      %383 = arith.truncf %379 : vector<8x32xf32> to vector<8x32xbf16>
      %c0_204 = arith.constant 0 : index
      %c0_205 = arith.constant 0 : index
      %c0_206 = arith.constant 0 : index
      %384 = vector.load %arg11[%c0_204, %c0_205, %c0_206] : memref<2x8x32xbf16, #tpu.memory_space<vmem>>, vector<1x8x32xbf16>
      %385 = vector.shape_cast %384 : vector<1x8x32xbf16> to vector<8x32xbf16>
      %386 = vector.shape_cast %383 : vector<8x32xbf16> to vector<1x8x32xbf16>
      tpu.vector_store %arg11[%c0_204, %c0_205, %c0_206], %386 {strides = array<i32>} : memref<2x8x32xbf16, #tpu.memory_space<vmem>>, vector<1x8x32xbf16>,
      %c1_207 = arith.constant 1 : index
      %c0_208 = arith.constant 0 : index
      %c0_209 = arith.constant 0 : index
      %387 = vector.load %arg5[%c1_207, %c0_208, %c0_209] : memref<2x32x128xbf16, #tpu.memory_space<vmem>>, vector<1x32x128xbf16>
      %388 = vector.shape_cast %387 : vector<1x32x128xbf16> to vector<32x128xbf16>
      %cst_210 = arith.constant dense<0.000000e+00> : vector<8x128xf32>
      %389 = tpu.matmul %383, %388, %cst_210 {dimension_numbers = #tpu.dot_dimension_numbers<[1], [0], [0], [1], [0, 0, 1, 1], [], []>} : vector<8x32xbf16>, vector<32x128xbf16>, vector<8x128xf32> -> vector<8x128xf32>
      %c1_211 = arith.constant 1 : index
      %c0_212 = arith.constant 0 : index
      %c0_213 = arith.constant 0 : index
      %390 = vector.load %arg11[%c1_211, %c0_212, %c0_213] : memref<2x8x32xbf16, #tpu.memory_space<vmem>>, vector<1x8x32xbf16>
      %391 = vector.shape_cast %390 : vector<1x8x32xbf16> to vector<8x32xbf16>
      %c1_214 = arith.constant 1 : index
      %c0_215 = arith.constant 0 : index
      %c0_216 = arith.constant 0 : index
      %392 = vector.load %arg6[%c1_214, %c0_215, %c0_216] : memref<2x32x128xbf16, #tpu.memory_space<vmem>>, vector<1x32x128xbf16>
      %393 = vector.shape_cast %392 : vector<1x32x128xbf16> to vector<32x128xbf16>
      %cst_217 = arith.constant dense<0.000000e+00> : vector<8x128xf32>
      %394 = tpu.matmul %391, %393, %cst_217 {dimension_numbers = #tpu.dot_dimension_numbers<[1], [0], [0], [1], [0, 0, 1, 1], [], []>} : vector<8x32xbf16>, vector<32x128xbf16>, vector<8x128xf32> -> vector<8x128xf32>
      %395 = arith.addf %389, %394 : vector<8x128xf32>
      %396 = arith.addf %395, %25 : vector<8x128xf32>
      %c1_218 = arith.constant 1 : index
      %c0_219 = arith.constant 0 : index
      %c0_220 = arith.constant 0 : index
      %397 = vector.load %arg12[%c1_218, %c0_219, %c0_220] : memref<2x8x32xf32, #tpu.memory_space<vmem>>, vector<1x8x32xf32>
      %398 = vector.shape_cast %397 : vector<1x8x32xf32> to vector<8x32xf32>
      %399 = vector.extract_strided_slice %396 {offsets = [0, 0], sizes = [8, 32], strides = [1, 1]} : vector<8x128xf32> to vector<8x32xf32>
      %cst_221 = arith.constant 0.000000e+00 : f32
      %400 = vector.broadcast %cst_221 : f32 to vector<8x32xf32>
      %401 = arith.subf %400, %399 : vector<8x32xf32>
      %402 = math.exp %401 : vector<8x32xf32>
      %cst_222 = arith.constant 1.000000e+00 : f32
      %403 = vector.broadcast %cst_222 : f32 to vector<8x32xf32>
      %404 = arith.addf %403, %402 : vector<8x32xf32>
      %405 = tpu.reciprocal %404 {approx = true} : vector<8x32xf32> -> vector<8x32xf32>
      %406 = vector.extract_strided_slice %396 {offsets = [0, 32], sizes = [8, 32], strides = [1, 1]} : vector<8x128xf32> to vector<8x32xf32>
      %cst_223 = arith.constant 0.000000e+00 : f32
      %407 = vector.broadcast %cst_223 : f32 to vector<8x32xf32>
      %408 = arith.subf %407, %406 : vector<8x32xf32>
      %409 = math.exp %408 : vector<8x32xf32>
      %cst_224 = arith.constant 1.000000e+00 : f32
      %410 = vector.broadcast %cst_224 : f32 to vector<8x32xf32>
      %411 = arith.addf %410, %409 : vector<8x32xf32>
      %412 = tpu.reciprocal %411 {approx = true} : vector<8x32xf32> -> vector<8x32xf32>
      %413 = vector.extract_strided_slice %396 {offsets = [0, 64], sizes = [8, 32], strides = [1, 1]} : vector<8x128xf32> to vector<8x32xf32>
      %414 = math.tanh %413 : vector<8x32xf32>
      %415 = vector.extract_strided_slice %396 {offsets = [0, 96], sizes = [8, 32], strides = [1, 1]} : vector<8x128xf32> to vector<8x32xf32>
      %cst_225 = arith.constant 0.000000e+00 : f32
      %416 = vector.broadcast %cst_225 : f32 to vector<8x32xf32>
      %417 = arith.subf %416, %415 : vector<8x32xf32>
      %418 = math.exp %417 : vector<8x32xf32>
      %cst_226 = arith.constant 1.000000e+00 : f32
      %419 = vector.broadcast %cst_226 : f32 to vector<8x32xf32>
      %420 = arith.addf %419, %418 : vector<8x32xf32>
      %421 = tpu.reciprocal %420 {approx = true} : vector<8x32xf32> -> vector<8x32xf32>
      %422 = arith.mulf %412, %398 : vector<8x32xf32>
      %423 = arith.mulf %405, %414 : vector<8x32xf32>
      %424 = arith.addf %422, %423 : vector<8x32xf32>
      %425 = math.tanh %424 : vector<8x32xf32>
      %426 = arith.mulf %421, %425 : vector<8x32xf32>
      %c1_227 = arith.constant 1 : index
      %c0_228 = arith.constant 0 : index
      %c0_229 = arith.constant 0 : index
      %427 = vector.load %arg12[%c1_227, %c0_228, %c0_229] : memref<2x8x32xf32, #tpu.memory_space<vmem>>, vector<1x8x32xf32>
      %428 = vector.shape_cast %427 : vector<1x8x32xf32> to vector<8x32xf32>
      %429 = vector.shape_cast %424 : vector<8x32xf32> to vector<1x8x32xf32>
      tpu.vector_store %arg12[%c1_227, %c0_228, %c0_229], %429 {strides = array<i32>} : memref<2x8x32xf32, #tpu.memory_space<vmem>>, vector<1x8x32xf32>,
      %430 = arith.truncf %426 : vector<8x32xf32> to vector<8x32xbf16>
      %c1_230 = arith.constant 1 : index
      %c0_231 = arith.constant 0 : index
      %c0_232 = arith.constant 0 : index
      %431 = vector.load %arg11[%c1_230, %c0_231, %c0_232] : memref<2x8x32xbf16, #tpu.memory_space<vmem>>, vector<1x8x32xbf16>
      %432 = vector.shape_cast %431 : vector<1x8x32xbf16> to vector<8x32xbf16>
      %433 = vector.shape_cast %430 : vector<8x32xbf16> to vector<1x8x32xbf16>
      tpu.vector_store %arg11[%c1_230, %c0_231, %c0_232], %433 {strides = array<i32>} : memref<2x8x32xbf16, #tpu.memory_space<vmem>>, vector<1x8x32xbf16>,
      %c1_i32_233 = arith.constant 1 : i32
      %434 = vector.broadcast %c1_i32_233 : i32 to vector<8x1xi32>
      %435 = arith.subi %22, %434 : vector<8x1xi32>
      %436 = arith.addi %0, %c3_i32 : i32
      %437 = vector.broadcast %436 : i32 to vector<8x1xi32>
      %438 = arith.cmpi eq, %435, %437 : vector<8x1xi32>
      %439 = arith.extui %438 : vector<8x1xi1> to vector<8x1xi32>
      %440 = arith.sitofp %439 : vector<8x1xi32> to vector<8x1xf32>
      %c0_234 = arith.constant 0 : index
      %c0_235 = arith.constant 0 : index
      %441 = vector.load %arg13[%c0_234, %c0_235] : memref<8x32xf32, #tpu.memory_space<vmem>>, vector<8x32xf32>
      %442 = vector.broadcast %440 : vector<8x1xf32> to vector<8x32xf32>
      %443 = arith.mulf %442, %426 : vector<8x32xf32>
      %444 = arith.addf %441, %443 : vector<8x32xf32>
      %c0_236 = arith.constant 0 : index
      %c0_237 = arith.constant 0 : index
      %445 = vector.load %arg13[%c0_236, %c0_237] : memref<8x32xf32, #tpu.memory_space<vmem>>, vector<8x32xf32>
      tpu.vector_store %arg13[%c0_236, %c0_237], %444 {strides = array<i32>} : memref<8x32xf32, #tpu.memory_space<vmem>>, vector<8x32xf32>,
      %c4_i32 = arith.constant 4 : i32
      %446 = arith.index_cast %c4_i32 : i32 to index
      %c0_238 = arith.constant 0 : index
      %c0_239 = arith.constant 0 : index
      %447 = vector.load %arg14[%446, %c0_238, %c0_239] : memref<8x8x128xf32, #tpu.memory_space<vmem>>, vector<1x8x128xf32>
      %448 = vector.shape_cast %447 : vector<1x8x128xf32> to vector<8x128xf32>
      %c0_240 = arith.constant 0 : index
      %c0_241 = arith.constant 0 : index
      %c0_242 = arith.constant 0 : index
      %449 = vector.load %arg11[%c0_240, %c0_241, %c0_242] : memref<2x8x32xbf16, #tpu.memory_space<vmem>>, vector<1x8x32xbf16>
      %450 = vector.shape_cast %449 : vector<1x8x32xbf16> to vector<8x32xbf16>
      %c0_243 = arith.constant 0 : index
      %c0_244 = arith.constant 0 : index
      %c0_245 = arith.constant 0 : index
      %451 = vector.load %arg6[%c0_243, %c0_244, %c0_245] : memref<2x32x128xbf16, #tpu.memory_space<vmem>>, vector<1x32x128xbf16>
      %452 = vector.shape_cast %451 : vector<1x32x128xbf16> to vector<32x128xbf16>
      %cst_246 = arith.constant dense<0.000000e+00> : vector<8x128xf32>
      %453 = tpu.matmul %450, %452, %cst_246 {dimension_numbers = #tpu.dot_dimension_numbers<[1], [0], [0], [1], [0, 0, 1, 1], [], []>} : vector<8x32xbf16>, vector<32x128xbf16>, vector<8x128xf32> -> vector<8x128xf32>
      %454 = arith.addf %448, %453 : vector<8x128xf32>
      %c0_247 = arith.constant 0 : index
      %c0_248 = arith.constant 0 : index
      %c0_249 = arith.constant 0 : index
      %455 = vector.load %arg12[%c0_247, %c0_248, %c0_249] : memref<2x8x32xf32, #tpu.memory_space<vmem>>, vector<1x8x32xf32>
      %456 = vector.shape_cast %455 : vector<1x8x32xf32> to vector<8x32xf32>
      %457 = vector.extract_strided_slice %454 {offsets = [0, 0], sizes = [8, 32], strides = [1, 1]} : vector<8x128xf32> to vector<8x32xf32>
      %cst_250 = arith.constant 0.000000e+00 : f32
      %458 = vector.broadcast %cst_250 : f32 to vector<8x32xf32>
      %459 = arith.subf %458, %457 : vector<8x32xf32>
      %460 = math.exp %459 : vector<8x32xf32>
      %cst_251 = arith.constant 1.000000e+00 : f32
      %461 = vector.broadcast %cst_251 : f32 to vector<8x32xf32>
      %462 = arith.addf %461, %460 : vector<8x32xf32>
      %463 = tpu.reciprocal %462 {approx = true} : vector<8x32xf32> -> vector<8x32xf32>
      %464 = vector.extract_strided_slice %454 {offsets = [0, 32], sizes = [8, 32], strides = [1, 1]} : vector<8x128xf32> to vector<8x32xf32>
      %cst_252 = arith.constant 0.000000e+00 : f32
      %465 = vector.broadcast %cst_252 : f32 to vector<8x32xf32>
      %466 = arith.subf %465, %464 : vector<8x32xf32>
      %467 = math.exp %466 : vector<8x32xf32>
      %cst_253 = arith.constant 1.000000e+00 : f32
      %468 = vector.broadcast %cst_253 : f32 to vector<8x32xf32>
      %469 = arith.addf %468, %467 : vector<8x32xf32>
      %470 = tpu.reciprocal %469 {approx = true} : vector<8x32xf32> -> vector<8x32xf32>
      %471 = vector.extract_strided_slice %454 {offsets = [0, 64], sizes = [8, 32], strides = [1, 1]} : vector<8x128xf32> to vector<8x32xf32>
      %472 = math.tanh %471 : vector<8x32xf32>
      %473 = vector.extract_strided_slice %454 {offsets = [0, 96], sizes = [8, 32], strides = [1, 1]} : vector<8x128xf32> to vector<8x32xf32>
      %cst_254 = arith.constant 0.000000e+00 : f32
      %474 = vector.broadcast %cst_254 : f32 to vector<8x32xf32>
      %475 = arith.subf %474, %473 : vector<8x32xf32>
      %476 = math.exp %475 : vector<8x32xf32>
      %cst_255 = arith.constant 1.000000e+00 : f32
      %477 = vector.broadcast %cst_255 : f32 to vector<8x32xf32>
      %478 = arith.addf %477, %476 : vector<8x32xf32>
      %479 = tpu.reciprocal %478 {approx = true} : vector<8x32xf32> -> vector<8x32xf32>
      %480 = arith.mulf %470, %456 : vector<8x32xf32>
      %481 = arith.mulf %463, %472 : vector<8x32xf32>
      %482 = arith.addf %480, %481 : vector<8x32xf32>
      %483 = math.tanh %482 : vector<8x32xf32>
      %484 = arith.mulf %479, %483 : vector<8x32xf32>
      %c0_256 = arith.constant 0 : index
      %c0_257 = arith.constant 0 : index
      %c0_258 = arith.constant 0 : index
      %485 = vector.load %arg12[%c0_256, %c0_257, %c0_258] : memref<2x8x32xf32, #tpu.memory_space<vmem>>, vector<1x8x32xf32>
      %486 = vector.shape_cast %485 : vector<1x8x32xf32> to vector<8x32xf32>
      %487 = vector.shape_cast %482 : vector<8x32xf32> to vector<1x8x32xf32>
      tpu.vector_store %arg12[%c0_256, %c0_257, %c0_258], %487 {strides = array<i32>} : memref<2x8x32xf32, #tpu.memory_space<vmem>>, vector<1x8x32xf32>,
      %488 = arith.truncf %484 : vector<8x32xf32> to vector<8x32xbf16>
      %c0_259 = arith.constant 0 : index
      %c0_260 = arith.constant 0 : index
      %c0_261 = arith.constant 0 : index
      %489 = vector.load %arg11[%c0_259, %c0_260, %c0_261] : memref<2x8x32xbf16, #tpu.memory_space<vmem>>, vector<1x8x32xbf16>
      %490 = vector.shape_cast %489 : vector<1x8x32xbf16> to vector<8x32xbf16>
      %491 = vector.shape_cast %488 : vector<8x32xbf16> to vector<1x8x32xbf16>
      tpu.vector_store %arg11[%c0_259, %c0_260, %c0_261], %491 {strides = array<i32>} : memref<2x8x32xbf16, #tpu.memory_space<vmem>>, vector<1x8x32xbf16>,
      %c1_262 = arith.constant 1 : index
      %c0_263 = arith.constant 0 : index
      %c0_264 = arith.constant 0 : index
      %492 = vector.load %arg5[%c1_262, %c0_263, %c0_264] : memref<2x32x128xbf16, #tpu.memory_space<vmem>>, vector<1x32x128xbf16>
      %493 = vector.shape_cast %492 : vector<1x32x128xbf16> to vector<32x128xbf16>
      %cst_265 = arith.constant dense<0.000000e+00> : vector<8x128xf32>
      %494 = tpu.matmul %488, %493, %cst_265 {dimension_numbers = #tpu.dot_dimension_numbers<[1], [0], [0], [1], [0, 0, 1, 1], [], []>} : vector<8x32xbf16>, vector<32x128xbf16>, vector<8x128xf32> -> vector<8x128xf32>
      %c1_266 = arith.constant 1 : index
      %c0_267 = arith.constant 0 : index
      %c0_268 = arith.constant 0 : index
      %495 = vector.load %arg11[%c1_266, %c0_267, %c0_268] : memref<2x8x32xbf16, #tpu.memory_space<vmem>>, vector<1x8x32xbf16>
      %496 = vector.shape_cast %495 : vector<1x8x32xbf16> to vector<8x32xbf16>
      %c1_269 = arith.constant 1 : index
      %c0_270 = arith.constant 0 : index
      %c0_271 = arith.constant 0 : index
      %497 = vector.load %arg6[%c1_269, %c0_270, %c0_271] : memref<2x32x128xbf16, #tpu.memory_space<vmem>>, vector<1x32x128xbf16>
      %498 = vector.shape_cast %497 : vector<1x32x128xbf16> to vector<32x128xbf16>
      %cst_272 = arith.constant dense<0.000000e+00> : vector<8x128xf32>
      %499 = tpu.matmul %496, %498, %cst_272 {dimension_numbers = #tpu.dot_dimension_numbers<[1], [0], [0], [1], [0, 0, 1, 1], [], []>} : vector<8x32xbf16>, vector<32x128xbf16>, vector<8x128xf32> -> vector<8x128xf32>
      %500 = arith.addf %494, %499 : vector<8x128xf32>
      %501 = arith.addf %500, %25 : vector<8x128xf32>
      %c1_273 = arith.constant 1 : index
      %c0_274 = arith.constant 0 : index
      %c0_275 = arith.constant 0 : index
      %502 = vector.load %arg12[%c1_273, %c0_274, %c0_275] : memref<2x8x32xf32, #tpu.memory_space<vmem>>, vector<1x8x32xf32>
      %503 = vector.shape_cast %502 : vector<1x8x32xf32> to vector<8x32xf32>
      %504 = vector.extract_strided_slice %501 {offsets = [0, 0], sizes = [8, 32], strides = [1, 1]} : vector<8x128xf32> to vector<8x32xf32>
      %cst_276 = arith.constant 0.000000e+00 : f32
      %505 = vector.broadcast %cst_276 : f32 to vector<8x32xf32>
      %506 = arith.subf %505, %504 : vector<8x32xf32>
      %507 = math.exp %506 : vector<8x32xf32>
      %cst_277 = arith.constant 1.000000e+00 : f32
      %508 = vector.broadcast %cst_277 : f32 to vector<8x32xf32>
      %509 = arith.addf %508, %507 : vector<8x32xf32>
      %510 = tpu.reciprocal %509 {approx = true} : vector<8x32xf32> -> vector<8x32xf32>
      %511 = vector.extract_strided_slice %501 {offsets = [0, 32], sizes = [8, 32], strides = [1, 1]} : vector<8x128xf32> to vector<8x32xf32>
      %cst_278 = arith.constant 0.000000e+00 : f32
      %512 = vector.broadcast %cst_278 : f32 to vector<8x32xf32>
      %513 = arith.subf %512, %511 : vector<8x32xf32>
      %514 = math.exp %513 : vector<8x32xf32>
      %cst_279 = arith.constant 1.000000e+00 : f32
      %515 = vector.broadcast %cst_279 : f32 to vector<8x32xf32>
      %516 = arith.addf %515, %514 : vector<8x32xf32>
      %517 = tpu.reciprocal %516 {approx = true} : vector<8x32xf32> -> vector<8x32xf32>
      %518 = vector.extract_strided_slice %501 {offsets = [0, 64], sizes = [8, 32], strides = [1, 1]} : vector<8x128xf32> to vector<8x32xf32>
      %519 = math.tanh %518 : vector<8x32xf32>
      %520 = vector.extract_strided_slice %501 {offsets = [0, 96], sizes = [8, 32], strides = [1, 1]} : vector<8x128xf32> to vector<8x32xf32>
      %cst_280 = arith.constant 0.000000e+00 : f32
      %521 = vector.broadcast %cst_280 : f32 to vector<8x32xf32>
      %522 = arith.subf %521, %520 : vector<8x32xf32>
      %523 = math.exp %522 : vector<8x32xf32>
      %cst_281 = arith.constant 1.000000e+00 : f32
      %524 = vector.broadcast %cst_281 : f32 to vector<8x32xf32>
      %525 = arith.addf %524, %523 : vector<8x32xf32>
      %526 = tpu.reciprocal %525 {approx = true} : vector<8x32xf32> -> vector<8x32xf32>
      %527 = arith.mulf %517, %503 : vector<8x32xf32>
      %528 = arith.mulf %510, %519 : vector<8x32xf32>
      %529 = arith.addf %527, %528 : vector<8x32xf32>
      %530 = math.tanh %529 : vector<8x32xf32>
      %531 = arith.mulf %526, %530 : vector<8x32xf32>
      %c1_282 = arith.constant 1 : index
      %c0_283 = arith.constant 0 : index
      %c0_284 = arith.constant 0 : index
      %532 = vector.load %arg12[%c1_282, %c0_283, %c0_284] : memref<2x8x32xf32, #tpu.memory_space<vmem>>, vector<1x8x32xf32>
      %533 = vector.shape_cast %532 : vector<1x8x32xf32> to vector<8x32xf32>
      %534 = vector.shape_cast %529 : vector<8x32xf32> to vector<1x8x32xf32>
      tpu.vector_store %arg12[%c1_282, %c0_283, %c0_284], %534 {strides = array<i32>} : memref<2x8x32xf32, #tpu.memory_space<vmem>>, vector<1x8x32xf32>,
      %535 = arith.truncf %531 : vector<8x32xf32> to vector<8x32xbf16>
      %c1_285 = arith.constant 1 : index
      %c0_286 = arith.constant 0 : index
      %c0_287 = arith.constant 0 : index
      %536 = vector.load %arg11[%c1_285, %c0_286, %c0_287] : memref<2x8x32xbf16, #tpu.memory_space<vmem>>, vector<1x8x32xbf16>
      %537 = vector.shape_cast %536 : vector<1x8x32xbf16> to vector<8x32xbf16>
      %538 = vector.shape_cast %535 : vector<8x32xbf16> to vector<1x8x32xbf16>
      tpu.vector_store %arg11[%c1_285, %c0_286, %c0_287], %538 {strides = array<i32>} : memref<2x8x32xbf16, #tpu.memory_space<vmem>>, vector<1x8x32xbf16>,
      %c1_i32_288 = arith.constant 1 : i32
      %539 = vector.broadcast %c1_i32_288 : i32 to vector<8x1xi32>
      %540 = arith.subi %22, %539 : vector<8x1xi32>
      %541 = arith.addi %0, %c4_i32 : i32
      %542 = vector.broadcast %541 : i32 to vector<8x1xi32>
      %543 = arith.cmpi eq, %540, %542 : vector<8x1xi32>
      %544 = arith.extui %543 : vector<8x1xi1> to vector<8x1xi32>
      %545 = arith.sitofp %544 : vector<8x1xi32> to vector<8x1xf32>
      %c0_289 = arith.constant 0 : index
      %c0_290 = arith.constant 0 : index
      %546 = vector.load %arg13[%c0_289, %c0_290] : memref<8x32xf32, #tpu.memory_space<vmem>>, vector<8x32xf32>
      %547 = vector.broadcast %545 : vector<8x1xf32> to vector<8x32xf32>
      %548 = arith.mulf %547, %531 : vector<8x32xf32>
      %549 = arith.addf %546, %548 : vector<8x32xf32>
      %c0_291 = arith.constant 0 : index
      %c0_292 = arith.constant 0 : index
      %550 = vector.load %arg13[%c0_291, %c0_292] : memref<8x32xf32, #tpu.memory_space<vmem>>, vector<8x32xf32>
      tpu.vector_store %arg13[%c0_291, %c0_292], %549 {strides = array<i32>} : memref<8x32xf32, #tpu.memory_space<vmem>>, vector<8x32xf32>,
      %c5_i32 = arith.constant 5 : i32
      %551 = arith.index_cast %c5_i32 : i32 to index
      %c0_293 = arith.constant 0 : index
      %c0_294 = arith.constant 0 : index
      %552 = vector.load %arg14[%551, %c0_293, %c0_294] : memref<8x8x128xf32, #tpu.memory_space<vmem>>, vector<1x8x128xf32>
      %553 = vector.shape_cast %552 : vector<1x8x128xf32> to vector<8x128xf32>
      %c0_295 = arith.constant 0 : index
      %c0_296 = arith.constant 0 : index
      %c0_297 = arith.constant 0 : index
      %554 = vector.load %arg11[%c0_295, %c0_296, %c0_297] : memref<2x8x32xbf16, #tpu.memory_space<vmem>>, vector<1x8x32xbf16>
      %555 = vector.shape_cast %554 : vector<1x8x32xbf16> to vector<8x32xbf16>
      %c0_298 = arith.constant 0 : index
      %c0_299 = arith.constant 0 : index
      %c0_300 = arith.constant 0 : index
      %556 = vector.load %arg6[%c0_298, %c0_299, %c0_300] : memref<2x32x128xbf16, #tpu.memory_space<vmem>>, vector<1x32x128xbf16>
      %557 = vector.shape_cast %556 : vector<1x32x128xbf16> to vector<32x128xbf16>
      %cst_301 = arith.constant dense<0.000000e+00> : vector<8x128xf32>
      %558 = tpu.matmul %555, %557, %cst_301 {dimension_numbers = #tpu.dot_dimension_numbers<[1], [0], [0], [1], [0, 0, 1, 1], [], []>} : vector<8x32xbf16>, vector<32x128xbf16>, vector<8x128xf32> -> vector<8x128xf32>
      %559 = arith.addf %553, %558 : vector<8x128xf32>
      %c0_302 = arith.constant 0 : index
      %c0_303 = arith.constant 0 : index
      %c0_304 = arith.constant 0 : index
      %560 = vector.load %arg12[%c0_302, %c0_303, %c0_304] : memref<2x8x32xf32, #tpu.memory_space<vmem>>, vector<1x8x32xf32>
      %561 = vector.shape_cast %560 : vector<1x8x32xf32> to vector<8x32xf32>
      %562 = vector.extract_strided_slice %559 {offsets = [0, 0], sizes = [8, 32], strides = [1, 1]} : vector<8x128xf32> to vector<8x32xf32>
      %cst_305 = arith.constant 0.000000e+00 : f32
      %563 = vector.broadcast %cst_305 : f32 to vector<8x32xf32>
      %564 = arith.subf %563, %562 : vector<8x32xf32>
      %565 = math.exp %564 : vector<8x32xf32>
      %cst_306 = arith.constant 1.000000e+00 : f32
      %566 = vector.broadcast %cst_306 : f32 to vector<8x32xf32>
      %567 = arith.addf %566, %565 : vector<8x32xf32>
      %568 = tpu.reciprocal %567 {approx = true} : vector<8x32xf32> -> vector<8x32xf32>
      %569 = vector.extract_strided_slice %559 {offsets = [0, 32], sizes = [8, 32], strides = [1, 1]} : vector<8x128xf32> to vector<8x32xf32>
      %cst_307 = arith.constant 0.000000e+00 : f32
      %570 = vector.broadcast %cst_307 : f32 to vector<8x32xf32>
      %571 = arith.subf %570, %569 : vector<8x32xf32>
      %572 = math.exp %571 : vector<8x32xf32>
      %cst_308 = arith.constant 1.000000e+00 : f32
      %573 = vector.broadcast %cst_308 : f32 to vector<8x32xf32>
      %574 = arith.addf %573, %572 : vector<8x32xf32>
      %575 = tpu.reciprocal %574 {approx = true} : vector<8x32xf32> -> vector<8x32xf32>
      %576 = vector.extract_strided_slice %559 {offsets = [0, 64], sizes = [8, 32], strides = [1, 1]} : vector<8x128xf32> to vector<8x32xf32>
      %577 = math.tanh %576 : vector<8x32xf32>
      %578 = vector.extract_strided_slice %559 {offsets = [0, 96], sizes = [8, 32], strides = [1, 1]} : vector<8x128xf32> to vector<8x32xf32>
      %cst_309 = arith.constant 0.000000e+00 : f32
      %579 = vector.broadcast %cst_309 : f32 to vector<8x32xf32>
      %580 = arith.subf %579, %578 : vector<8x32xf32>
      %581 = math.exp %580 : vector<8x32xf32>
      %cst_310 = arith.constant 1.000000e+00 : f32
      %582 = vector.broadcast %cst_310 : f32 to vector<8x32xf32>
      %583 = arith.addf %582, %581 : vector<8x32xf32>
      %584 = tpu.reciprocal %583 {approx = true} : vector<8x32xf32> -> vector<8x32xf32>
      %585 = arith.mulf %575, %561 : vector<8x32xf32>
      %586 = arith.mulf %568, %577 : vector<8x32xf32>
      %587 = arith.addf %585, %586 : vector<8x32xf32>
      %588 = math.tanh %587 : vector<8x32xf32>
      %589 = arith.mulf %584, %588 : vector<8x32xf32>
      %c0_311 = arith.constant 0 : index
      %c0_312 = arith.constant 0 : index
      %c0_313 = arith.constant 0 : index
      %590 = vector.load %arg12[%c0_311, %c0_312, %c0_313] : memref<2x8x32xf32, #tpu.memory_space<vmem>>, vector<1x8x32xf32>
      %591 = vector.shape_cast %590 : vector<1x8x32xf32> to vector<8x32xf32>
      %592 = vector.shape_cast %587 : vector<8x32xf32> to vector<1x8x32xf32>
      tpu.vector_store %arg12[%c0_311, %c0_312, %c0_313], %592 {strides = array<i32>} : memref<2x8x32xf32, #tpu.memory_space<vmem>>, vector<1x8x32xf32>,
      %593 = arith.truncf %589 : vector<8x32xf32> to vector<8x32xbf16>
      %c0_314 = arith.constant 0 : index
      %c0_315 = arith.constant 0 : index
      %c0_316 = arith.constant 0 : index
      %594 = vector.load %arg11[%c0_314, %c0_315, %c0_316] : memref<2x8x32xbf16, #tpu.memory_space<vmem>>, vector<1x8x32xbf16>
      %595 = vector.shape_cast %594 : vector<1x8x32xbf16> to vector<8x32xbf16>
      %596 = vector.shape_cast %593 : vector<8x32xbf16> to vector<1x8x32xbf16>
      tpu.vector_store %arg11[%c0_314, %c0_315, %c0_316], %596 {strides = array<i32>} : memref<2x8x32xbf16, #tpu.memory_space<vmem>>, vector<1x8x32xbf16>,
      %c1_317 = arith.constant 1 : index
      %c0_318 = arith.constant 0 : index
      %c0_319 = arith.constant 0 : index
      %597 = vector.load %arg5[%c1_317, %c0_318, %c0_319] : memref<2x32x128xbf16, #tpu.memory_space<vmem>>, vector<1x32x128xbf16>
      %598 = vector.shape_cast %597 : vector<1x32x128xbf16> to vector<32x128xbf16>
      %cst_320 = arith.constant dense<0.000000e+00> : vector<8x128xf32>
      %599 = tpu.matmul %593, %598, %cst_320 {dimension_numbers = #tpu.dot_dimension_numbers<[1], [0], [0], [1], [0, 0, 1, 1], [], []>} : vector<8x32xbf16>, vector<32x128xbf16>, vector<8x128xf32> -> vector<8x128xf32>
      %c1_321 = arith.constant 1 : index
      %c0_322 = arith.constant 0 : index
      %c0_323 = arith.constant 0 : index
      %600 = vector.load %arg11[%c1_321, %c0_322, %c0_323] : memref<2x8x32xbf16, #tpu.memory_space<vmem>>, vector<1x8x32xbf16>
      %601 = vector.shape_cast %600 : vector<1x8x32xbf16> to vector<8x32xbf16>
      %c1_324 = arith.constant 1 : index
      %c0_325 = arith.constant 0 : index
      %c0_326 = arith.constant 0 : index
      %602 = vector.load %arg6[%c1_324, %c0_325, %c0_326] : memref<2x32x128xbf16, #tpu.memory_space<vmem>>, vector<1x32x128xbf16>
      %603 = vector.shape_cast %602 : vector<1x32x128xbf16> to vector<32x128xbf16>
      %cst_327 = arith.constant dense<0.000000e+00> : vector<8x128xf32>
      %604 = tpu.matmul %601, %603, %cst_327 {dimension_numbers = #tpu.dot_dimension_numbers<[1], [0], [0], [1], [0, 0, 1, 1], [], []>} : vector<8x32xbf16>, vector<32x128xbf16>, vector<8x128xf32> -> vector<8x128xf32>
      %605 = arith.addf %599, %604 : vector<8x128xf32>
      %606 = arith.addf %605, %25 : vector<8x128xf32>
      %c1_328 = arith.constant 1 : index
      %c0_329 = arith.constant 0 : index
      %c0_330 = arith.constant 0 : index
      %607 = vector.load %arg12[%c1_328, %c0_329, %c0_330] : memref<2x8x32xf32, #tpu.memory_space<vmem>>, vector<1x8x32xf32>
      %608 = vector.shape_cast %607 : vector<1x8x32xf32> to vector<8x32xf32>
      %609 = vector.extract_strided_slice %606 {offsets = [0, 0], sizes = [8, 32], strides = [1, 1]} : vector<8x128xf32> to vector<8x32xf32>
      %cst_331 = arith.constant 0.000000e+00 : f32
      %610 = vector.broadcast %cst_331 : f32 to vector<8x32xf32>
      %611 = arith.subf %610, %609 : vector<8x32xf32>
      %612 = math.exp %611 : vector<8x32xf32>
      %cst_332 = arith.constant 1.000000e+00 : f32
      %613 = vector.broadcast %cst_332 : f32 to vector<8x32xf32>
      %614 = arith.addf %613, %612 : vector<8x32xf32>
      %615 = tpu.reciprocal %614 {approx = true} : vector<8x32xf32> -> vector<8x32xf32>
      %616 = vector.extract_strided_slice %606 {offsets = [0, 32], sizes = [8, 32], strides = [1, 1]} : vector<8x128xf32> to vector<8x32xf32>
      %cst_333 = arith.constant 0.000000e+00 : f32
      %617 = vector.broadcast %cst_333 : f32 to vector<8x32xf32>
      %618 = arith.subf %617, %616 : vector<8x32xf32>
      %619 = math.exp %618 : vector<8x32xf32>
      %cst_334 = arith.constant 1.000000e+00 : f32
      %620 = vector.broadcast %cst_334 : f32 to vector<8x32xf32>
      %621 = arith.addf %620, %619 : vector<8x32xf32>
      %622 = tpu.reciprocal %621 {approx = true} : vector<8x32xf32> -> vector<8x32xf32>
      %623 = vector.extract_strided_slice %606 {offsets = [0, 64], sizes = [8, 32], strides = [1, 1]} : vector<8x128xf32> to vector<8x32xf32>
      %624 = math.tanh %623 : vector<8x32xf32>
      %625 = vector.extract_strided_slice %606 {offsets = [0, 96], sizes = [8, 32], strides = [1, 1]} : vector<8x128xf32> to vector<8x32xf32>
      %cst_335 = arith.constant 0.000000e+00 : f32
      %626 = vector.broadcast %cst_335 : f32 to vector<8x32xf32>
      %627 = arith.subf %626, %625 : vector<8x32xf32>
      %628 = math.exp %627 : vector<8x32xf32>
      %cst_336 = arith.constant 1.000000e+00 : f32
      %629 = vector.broadcast %cst_336 : f32 to vector<8x32xf32>
      %630 = arith.addf %629, %628 : vector<8x32xf32>
      %631 = tpu.reciprocal %630 {approx = true} : vector<8x32xf32> -> vector<8x32xf32>
      %632 = arith.mulf %622, %608 : vector<8x32xf32>
      %633 = arith.mulf %615, %624 : vector<8x32xf32>
      %634 = arith.addf %632, %633 : vector<8x32xf32>
      %635 = math.tanh %634 : vector<8x32xf32>
      %636 = arith.mulf %631, %635 : vector<8x32xf32>
      %c1_337 = arith.constant 1 : index
      %c0_338 = arith.constant 0 : index
      %c0_339 = arith.constant 0 : index
      %637 = vector.load %arg12[%c1_337, %c0_338, %c0_339] : memref<2x8x32xf32, #tpu.memory_space<vmem>>, vector<1x8x32xf32>
      %638 = vector.shape_cast %637 : vector<1x8x32xf32> to vector<8x32xf32>
      %639 = vector.shape_cast %634 : vector<8x32xf32> to vector<1x8x32xf32>
      tpu.vector_store %arg12[%c1_337, %c0_338, %c0_339], %639 {strides = array<i32>} : memref<2x8x32xf32, #tpu.memory_space<vmem>>, vector<1x8x32xf32>,
      %640 = arith.truncf %636 : vector<8x32xf32> to vector<8x32xbf16>
      %c1_340 = arith.constant 1 : index
      %c0_341 = arith.constant 0 : index
      %c0_342 = arith.constant 0 : index
      %641 = vector.load %arg11[%c1_340, %c0_341, %c0_342] : memref<2x8x32xbf16, #tpu.memory_space<vmem>>, vector<1x8x32xbf16>
      %642 = vector.shape_cast %641 : vector<1x8x32xbf16> to vector<8x32xbf16>
      %643 = vector.shape_cast %640 : vector<8x32xbf16> to vector<1x8x32xbf16>
      tpu.vector_store %arg11[%c1_340, %c0_341, %c0_342], %643 {strides = array<i32>} : memref<2x8x32xbf16, #tpu.memory_space<vmem>>, vector<1x8x32xbf16>,
      %c1_i32_343 = arith.constant 1 : i32
      %644 = vector.broadcast %c1_i32_343 : i32 to vector<8x1xi32>
      %645 = arith.subi %22, %644 : vector<8x1xi32>
      %646 = arith.addi %0, %c5_i32 : i32
      %647 = vector.broadcast %646 : i32 to vector<8x1xi32>
      %648 = arith.cmpi eq, %645, %647 : vector<8x1xi32>
      %649 = arith.extui %648 : vector<8x1xi1> to vector<8x1xi32>
      %650 = arith.sitofp %649 : vector<8x1xi32> to vector<8x1xf32>
      %c0_344 = arith.constant 0 : index
      %c0_345 = arith.constant 0 : index
      %651 = vector.load %arg13[%c0_344, %c0_345] : memref<8x32xf32, #tpu.memory_space<vmem>>, vector<8x32xf32>
      %652 = vector.broadcast %650 : vector<8x1xf32> to vector<8x32xf32>
      %653 = arith.mulf %652, %636 : vector<8x32xf32>
      %654 = arith.addf %651, %653 : vector<8x32xf32>
      %c0_346 = arith.constant 0 : index
      %c0_347 = arith.constant 0 : index
      %655 = vector.load %arg13[%c0_346, %c0_347] : memref<8x32xf32, #tpu.memory_space<vmem>>, vector<8x32xf32>
      tpu.vector_store %arg13[%c0_346, %c0_347], %654 {strides = array<i32>} : memref<8x32xf32, #tpu.memory_space<vmem>>, vector<8x32xf32>,
      %c6_i32 = arith.constant 6 : i32
      %656 = arith.index_cast %c6_i32 : i32 to index
      %c0_348 = arith.constant 0 : index
      %c0_349 = arith.constant 0 : index
      %657 = vector.load %arg14[%656, %c0_348, %c0_349] : memref<8x8x128xf32, #tpu.memory_space<vmem>>, vector<1x8x128xf32>
      %658 = vector.shape_cast %657 : vector<1x8x128xf32> to vector<8x128xf32>
      %c0_350 = arith.constant 0 : index
      %c0_351 = arith.constant 0 : index
      %c0_352 = arith.constant 0 : index
      %659 = vector.load %arg11[%c0_350, %c0_351, %c0_352] : memref<2x8x32xbf16, #tpu.memory_space<vmem>>, vector<1x8x32xbf16>
      %660 = vector.shape_cast %659 : vector<1x8x32xbf16> to vector<8x32xbf16>
      %c0_353 = arith.constant 0 : index
      %c0_354 = arith.constant 0 : index
      %c0_355 = arith.constant 0 : index
      %661 = vector.load %arg6[%c0_353, %c0_354, %c0_355] : memref<2x32x128xbf16, #tpu.memory_space<vmem>>, vector<1x32x128xbf16>
      %662 = vector.shape_cast %661 : vector<1x32x128xbf16> to vector<32x128xbf16>
      %cst_356 = arith.constant dense<0.000000e+00> : vector<8x128xf32>
      %663 = tpu.matmul %660, %662, %cst_356 {dimension_numbers = #tpu.dot_dimension_numbers<[1], [0], [0], [1], [0, 0, 1, 1], [], []>} : vector<8x32xbf16>, vector<32x128xbf16>, vector<8x128xf32> -> vector<8x128xf32>
      %664 = arith.addf %658, %663 : vector<8x128xf32>
      %c0_357 = arith.constant 0 : index
      %c0_358 = arith.constant 0 : index
      %c0_359 = arith.constant 0 : index
      %665 = vector.load %arg12[%c0_357, %c0_358, %c0_359] : memref<2x8x32xf32, #tpu.memory_space<vmem>>, vector<1x8x32xf32>
      %666 = vector.shape_cast %665 : vector<1x8x32xf32> to vector<8x32xf32>
      %667 = vector.extract_strided_slice %664 {offsets = [0, 0], sizes = [8, 32], strides = [1, 1]} : vector<8x128xf32> to vector<8x32xf32>
      %cst_360 = arith.constant 0.000000e+00 : f32
      %668 = vector.broadcast %cst_360 : f32 to vector<8x32xf32>
      %669 = arith.subf %668, %667 : vector<8x32xf32>
      %670 = math.exp %669 : vector<8x32xf32>
      %cst_361 = arith.constant 1.000000e+00 : f32
      %671 = vector.broadcast %cst_361 : f32 to vector<8x32xf32>
      %672 = arith.addf %671, %670 : vector<8x32xf32>
      %673 = tpu.reciprocal %672 {approx = true} : vector<8x32xf32> -> vector<8x32xf32>
      %674 = vector.extract_strided_slice %664 {offsets = [0, 32], sizes = [8, 32], strides = [1, 1]} : vector<8x128xf32> to vector<8x32xf32>
      %cst_362 = arith.constant 0.000000e+00 : f32
      %675 = vector.broadcast %cst_362 : f32 to vector<8x32xf32>
      %676 = arith.subf %675, %674 : vector<8x32xf32>
      %677 = math.exp %676 : vector<8x32xf32>
      %cst_363 = arith.constant 1.000000e+00 : f32
      %678 = vector.broadcast %cst_363 : f32 to vector<8x32xf32>
      %679 = arith.addf %678, %677 : vector<8x32xf32>
      %680 = tpu.reciprocal %679 {approx = true} : vector<8x32xf32> -> vector<8x32xf32>
      %681 = vector.extract_strided_slice %664 {offsets = [0, 64], sizes = [8, 32], strides = [1, 1]} : vector<8x128xf32> to vector<8x32xf32>
      %682 = math.tanh %681 : vector<8x32xf32>
      %683 = vector.extract_strided_slice %664 {offsets = [0, 96], sizes = [8, 32], strides = [1, 1]} : vector<8x128xf32> to vector<8x32xf32>
      %cst_364 = arith.constant 0.000000e+00 : f32
      %684 = vector.broadcast %cst_364 : f32 to vector<8x32xf32>
      %685 = arith.subf %684, %683 : vector<8x32xf32>
      %686 = math.exp %685 : vector<8x32xf32>
      %cst_365 = arith.constant 1.000000e+00 : f32
      %687 = vector.broadcast %cst_365 : f32 to vector<8x32xf32>
      %688 = arith.addf %687, %686 : vector<8x32xf32>
      %689 = tpu.reciprocal %688 {approx = true} : vector<8x32xf32> -> vector<8x32xf32>
      %690 = arith.mulf %680, %666 : vector<8x32xf32>
      %691 = arith.mulf %673, %682 : vector<8x32xf32>
      %692 = arith.addf %690, %691 : vector<8x32xf32>
      %693 = math.tanh %692 : vector<8x32xf32>
      %694 = arith.mulf %689, %693 : vector<8x32xf32>
      %c0_366 = arith.constant 0 : index
      %c0_367 = arith.constant 0 : index
      %c0_368 = arith.constant 0 : index
      %695 = vector.load %arg12[%c0_366, %c0_367, %c0_368] : memref<2x8x32xf32, #tpu.memory_space<vmem>>, vector<1x8x32xf32>
      %696 = vector.shape_cast %695 : vector<1x8x32xf32> to vector<8x32xf32>
      %697 = vector.shape_cast %692 : vector<8x32xf32> to vector<1x8x32xf32>
      tpu.vector_store %arg12[%c0_366, %c0_367, %c0_368], %697 {strides = array<i32>} : memref<2x8x32xf32, #tpu.memory_space<vmem>>, vector<1x8x32xf32>,
      %698 = arith.truncf %694 : vector<8x32xf32> to vector<8x32xbf16>
      %c0_369 = arith.constant 0 : index
      %c0_370 = arith.constant 0 : index
      %c0_371 = arith.constant 0 : index
      %699 = vector.load %arg11[%c0_369, %c0_370, %c0_371] : memref<2x8x32xbf16, #tpu.memory_space<vmem>>, vector<1x8x32xbf16>
      %700 = vector.shape_cast %699 : vector<1x8x32xbf16> to vector<8x32xbf16>
      %701 = vector.shape_cast %698 : vector<8x32xbf16> to vector<1x8x32xbf16>
      tpu.vector_store %arg11[%c0_369, %c0_370, %c0_371], %701 {strides = array<i32>} : memref<2x8x32xbf16, #tpu.memory_space<vmem>>, vector<1x8x32xbf16>,
      %c1_372 = arith.constant 1 : index
      %c0_373 = arith.constant 0 : index
      %c0_374 = arith.constant 0 : index
      %702 = vector.load %arg5[%c1_372, %c0_373, %c0_374] : memref<2x32x128xbf16, #tpu.memory_space<vmem>>, vector<1x32x128xbf16>
      %703 = vector.shape_cast %702 : vector<1x32x128xbf16> to vector<32x128xbf16>
      %cst_375 = arith.constant dense<0.000000e+00> : vector<8x128xf32>
      %704 = tpu.matmul %698, %703, %cst_375 {dimension_numbers = #tpu.dot_dimension_numbers<[1], [0], [0], [1], [0, 0, 1, 1], [], []>} : vector<8x32xbf16>, vector<32x128xbf16>, vector<8x128xf32> -> vector<8x128xf32>
      %c1_376 = arith.constant 1 : index
      %c0_377 = arith.constant 0 : index
      %c0_378 = arith.constant 0 : index
      %705 = vector.load %arg11[%c1_376, %c0_377, %c0_378] : memref<2x8x32xbf16, #tpu.memory_space<vmem>>, vector<1x8x32xbf16>
      %706 = vector.shape_cast %705 : vector<1x8x32xbf16> to vector<8x32xbf16>
      %c1_379 = arith.constant 1 : index
      %c0_380 = arith.constant 0 : index
      %c0_381 = arith.constant 0 : index
      %707 = vector.load %arg6[%c1_379, %c0_380, %c0_381] : memref<2x32x128xbf16, #tpu.memory_space<vmem>>, vector<1x32x128xbf16>
      %708 = vector.shape_cast %707 : vector<1x32x128xbf16> to vector<32x128xbf16>
      %cst_382 = arith.constant dense<0.000000e+00> : vector<8x128xf32>
      %709 = tpu.matmul %706, %708, %cst_382 {dimension_numbers = #tpu.dot_dimension_numbers<[1], [0], [0], [1], [0, 0, 1, 1], [], []>} : vector<8x32xbf16>, vector<32x128xbf16>, vector<8x128xf32> -> vector<8x128xf32>
      %710 = arith.addf %704, %709 : vector<8x128xf32>
      %711 = arith.addf %710, %25 : vector<8x128xf32>
      %c1_383 = arith.constant 1 : index
      %c0_384 = arith.constant 0 : index
      %c0_385 = arith.constant 0 : index
      %712 = vector.load %arg12[%c1_383, %c0_384, %c0_385] : memref<2x8x32xf32, #tpu.memory_space<vmem>>, vector<1x8x32xf32>
      %713 = vector.shape_cast %712 : vector<1x8x32xf32> to vector<8x32xf32>
      %714 = vector.extract_strided_slice %711 {offsets = [0, 0], sizes = [8, 32], strides = [1, 1]} : vector<8x128xf32> to vector<8x32xf32>
      %cst_386 = arith.constant 0.000000e+00 : f32
      %715 = vector.broadcast %cst_386 : f32 to vector<8x32xf32>
      %716 = arith.subf %715, %714 : vector<8x32xf32>
      %717 = math.exp %716 : vector<8x32xf32>
      %cst_387 = arith.constant 1.000000e+00 : f32
      %718 = vector.broadcast %cst_387 : f32 to vector<8x32xf32>
      %719 = arith.addf %718, %717 : vector<8x32xf32>
      %720 = tpu.reciprocal %719 {approx = true} : vector<8x32xf32> -> vector<8x32xf32>
      %721 = vector.extract_strided_slice %711 {offsets = [0, 32], sizes = [8, 32], strides = [1, 1]} : vector<8x128xf32> to vector<8x32xf32>
      %cst_388 = arith.constant 0.000000e+00 : f32
      %722 = vector.broadcast %cst_388 : f32 to vector<8x32xf32>
      %723 = arith.subf %722, %721 : vector<8x32xf32>
      %724 = math.exp %723 : vector<8x32xf32>
      %cst_389 = arith.constant 1.000000e+00 : f32
      %725 = vector.broadcast %cst_389 : f32 to vector<8x32xf32>
      %726 = arith.addf %725, %724 : vector<8x32xf32>
      %727 = tpu.reciprocal %726 {approx = true} : vector<8x32xf32> -> vector<8x32xf32>
      %728 = vector.extract_strided_slice %711 {offsets = [0, 64], sizes = [8, 32], strides = [1, 1]} : vector<8x128xf32> to vector<8x32xf32>
      %729 = math.tanh %728 : vector<8x32xf32>
      %730 = vector.extract_strided_slice %711 {offsets = [0, 96], sizes = [8, 32], strides = [1, 1]} : vector<8x128xf32> to vector<8x32xf32>
      %cst_390 = arith.constant 0.000000e+00 : f32
      %731 = vector.broadcast %cst_390 : f32 to vector<8x32xf32>
      %732 = arith.subf %731, %730 : vector<8x32xf32>
      %733 = math.exp %732 : vector<8x32xf32>
      %cst_391 = arith.constant 1.000000e+00 : f32
      %734 = vector.broadcast %cst_391 : f32 to vector<8x32xf32>
      %735 = arith.addf %734, %733 : vector<8x32xf32>
      %736 = tpu.reciprocal %735 {approx = true} : vector<8x32xf32> -> vector<8x32xf32>
      %737 = arith.mulf %727, %713 : vector<8x32xf32>
      %738 = arith.mulf %720, %729 : vector<8x32xf32>
      %739 = arith.addf %737, %738 : vector<8x32xf32>
      %740 = math.tanh %739 : vector<8x32xf32>
      %741 = arith.mulf %736, %740 : vector<8x32xf32>
      %c1_392 = arith.constant 1 : index
      %c0_393 = arith.constant 0 : index
      %c0_394 = arith.constant 0 : index
      %742 = vector.load %arg12[%c1_392, %c0_393, %c0_394] : memref<2x8x32xf32, #tpu.memory_space<vmem>>, vector<1x8x32xf32>
      %743 = vector.shape_cast %742 : vector<1x8x32xf32> to vector<8x32xf32>
      %744 = vector.shape_cast %739 : vector<8x32xf32> to vector<1x8x32xf32>
      tpu.vector_store %arg12[%c1_392, %c0_393, %c0_394], %744 {strides = array<i32>} : memref<2x8x32xf32, #tpu.memory_space<vmem>>, vector<1x8x32xf32>,
      %745 = arith.truncf %741 : vector<8x32xf32> to vector<8x32xbf16>
      %c1_395 = arith.constant 1 : index
      %c0_396 = arith.constant 0 : index
      %c0_397 = arith.constant 0 : index
      %746 = vector.load %arg11[%c1_395, %c0_396, %c0_397] : memref<2x8x32xbf16, #tpu.memory_space<vmem>>, vector<1x8x32xbf16>
      %747 = vector.shape_cast %746 : vector<1x8x32xbf16> to vector<8x32xbf16>
      %748 = vector.shape_cast %745 : vector<8x32xbf16> to vector<1x8x32xbf16>
      tpu.vector_store %arg11[%c1_395, %c0_396, %c0_397], %748 {strides = array<i32>} : memref<2x8x32xbf16, #tpu.memory_space<vmem>>, vector<1x8x32xbf16>,
      %c1_i32_398 = arith.constant 1 : i32
      %749 = vector.broadcast %c1_i32_398 : i32 to vector<8x1xi32>
      %750 = arith.subi %22, %749 : vector<8x1xi32>
      %751 = arith.addi %0, %c6_i32 : i32
      %752 = vector.broadcast %751 : i32 to vector<8x1xi32>
      %753 = arith.cmpi eq, %750, %752 : vector<8x1xi32>
      %754 = arith.extui %753 : vector<8x1xi1> to vector<8x1xi32>
      %755 = arith.sitofp %754 : vector<8x1xi32> to vector<8x1xf32>
      %c0_399 = arith.constant 0 : index
      %c0_400 = arith.constant 0 : index
      %756 = vector.load %arg13[%c0_399, %c0_400] : memref<8x32xf32, #tpu.memory_space<vmem>>, vector<8x32xf32>
      %757 = vector.broadcast %755 : vector<8x1xf32> to vector<8x32xf32>
      %758 = arith.mulf %757, %741 : vector<8x32xf32>
      %759 = arith.addf %756, %758 : vector<8x32xf32>
      %c0_401 = arith.constant 0 : index
      %c0_402 = arith.constant 0 : index
      %760 = vector.load %arg13[%c0_401, %c0_402] : memref<8x32xf32, #tpu.memory_space<vmem>>, vector<8x32xf32>
      tpu.vector_store %arg13[%c0_401, %c0_402], %759 {strides = array<i32>} : memref<8x32xf32, #tpu.memory_space<vmem>>, vector<8x32xf32>,
      %c7_i32 = arith.constant 7 : i32
      %761 = arith.index_cast %c7_i32 : i32 to index
      %c0_403 = arith.constant 0 : index
      %c0_404 = arith.constant 0 : index
      %762 = vector.load %arg14[%761, %c0_403, %c0_404] : memref<8x8x128xf32, #tpu.memory_space<vmem>>, vector<1x8x128xf32>
      %763 = vector.shape_cast %762 : vector<1x8x128xf32> to vector<8x128xf32>
      %c0_405 = arith.constant 0 : index
      %c0_406 = arith.constant 0 : index
      %c0_407 = arith.constant 0 : index
      %764 = vector.load %arg11[%c0_405, %c0_406, %c0_407] : memref<2x8x32xbf16, #tpu.memory_space<vmem>>, vector<1x8x32xbf16>
      %765 = vector.shape_cast %764 : vector<1x8x32xbf16> to vector<8x32xbf16>
      %c0_408 = arith.constant 0 : index
      %c0_409 = arith.constant 0 : index
      %c0_410 = arith.constant 0 : index
      %766 = vector.load %arg6[%c0_408, %c0_409, %c0_410] : memref<2x32x128xbf16, #tpu.memory_space<vmem>>, vector<1x32x128xbf16>
      %767 = vector.shape_cast %766 : vector<1x32x128xbf16> to vector<32x128xbf16>
      %cst_411 = arith.constant dense<0.000000e+00> : vector<8x128xf32>
      %768 = tpu.matmul %765, %767, %cst_411 {dimension_numbers = #tpu.dot_dimension_numbers<[1], [0], [0], [1], [0, 0, 1, 1], [], []>} : vector<8x32xbf16>, vector<32x128xbf16>, vector<8x128xf32> -> vector<8x128xf32>
      %769 = arith.addf %763, %768 : vector<8x128xf32>
      %c0_412 = arith.constant 0 : index
      %c0_413 = arith.constant 0 : index
      %c0_414 = arith.constant 0 : index
      %770 = vector.load %arg12[%c0_412, %c0_413, %c0_414] : memref<2x8x32xf32, #tpu.memory_space<vmem>>, vector<1x8x32xf32>
      %771 = vector.shape_cast %770 : vector<1x8x32xf32> to vector<8x32xf32>
      %772 = vector.extract_strided_slice %769 {offsets = [0, 0], sizes = [8, 32], strides = [1, 1]} : vector<8x128xf32> to vector<8x32xf32>
      %cst_415 = arith.constant 0.000000e+00 : f32
      %773 = vector.broadcast %cst_415 : f32 to vector<8x32xf32>
      %774 = arith.subf %773, %772 : vector<8x32xf32>
      %775 = math.exp %774 : vector<8x32xf32>
      %cst_416 = arith.constant 1.000000e+00 : f32
      %776 = vector.broadcast %cst_416 : f32 to vector<8x32xf32>
      %777 = arith.addf %776, %775 : vector<8x32xf32>
      %778 = tpu.reciprocal %777 {approx = true} : vector<8x32xf32> -> vector<8x32xf32>
      %779 = vector.extract_strided_slice %769 {offsets = [0, 32], sizes = [8, 32], strides = [1, 1]} : vector<8x128xf32> to vector<8x32xf32>
      %cst_417 = arith.constant 0.000000e+00 : f32
      %780 = vector.broadcast %cst_417 : f32 to vector<8x32xf32>
      %781 = arith.subf %780, %779 : vector<8x32xf32>
      %782 = math.exp %781 : vector<8x32xf32>
      %cst_418 = arith.constant 1.000000e+00 : f32
      %783 = vector.broadcast %cst_418 : f32 to vector<8x32xf32>
      %784 = arith.addf %783, %782 : vector<8x32xf32>
      %785 = tpu.reciprocal %784 {approx = true} : vector<8x32xf32> -> vector<8x32xf32>
      %786 = vector.extract_strided_slice %769 {offsets = [0, 64], sizes = [8, 32], strides = [1, 1]} : vector<8x128xf32> to vector<8x32xf32>
      %787 = math.tanh %786 : vector<8x32xf32>
      %788 = vector.extract_strided_slice %769 {offsets = [0, 96], sizes = [8, 32], strides = [1, 1]} : vector<8x128xf32> to vector<8x32xf32>
      %cst_419 = arith.constant 0.000000e+00 : f32
      %789 = vector.broadcast %cst_419 : f32 to vector<8x32xf32>
      %790 = arith.subf %789, %788 : vector<8x32xf32>
      %791 = math.exp %790 : vector<8x32xf32>
      %cst_420 = arith.constant 1.000000e+00 : f32
      %792 = vector.broadcast %cst_420 : f32 to vector<8x32xf32>
      %793 = arith.addf %792, %791 : vector<8x32xf32>
      %794 = tpu.reciprocal %793 {approx = true} : vector<8x32xf32> -> vector<8x32xf32>
      %795 = arith.mulf %785, %771 : vector<8x32xf32>
      %796 = arith.mulf %778, %787 : vector<8x32xf32>
      %797 = arith.addf %795, %796 : vector<8x32xf32>
      %798 = math.tanh %797 : vector<8x32xf32>
      %799 = arith.mulf %794, %798 : vector<8x32xf32>
      %c0_421 = arith.constant 0 : index
      %c0_422 = arith.constant 0 : index
      %c0_423 = arith.constant 0 : index
      %800 = vector.load %arg12[%c0_421, %c0_422, %c0_423] : memref<2x8x32xf32, #tpu.memory_space<vmem>>, vector<1x8x32xf32>
      %801 = vector.shape_cast %800 : vector<1x8x32xf32> to vector<8x32xf32>
      %802 = vector.shape_cast %797 : vector<8x32xf32> to vector<1x8x32xf32>
      tpu.vector_store %arg12[%c0_421, %c0_422, %c0_423], %802 {strides = array<i32>} : memref<2x8x32xf32, #tpu.memory_space<vmem>>, vector<1x8x32xf32>,
      %803 = arith.truncf %799 : vector<8x32xf32> to vector<8x32xbf16>
      %c0_424 = arith.constant 0 : index
      %c0_425 = arith.constant 0 : index
      %c0_426 = arith.constant 0 : index
      %804 = vector.load %arg11[%c0_424, %c0_425, %c0_426] : memref<2x8x32xbf16, #tpu.memory_space<vmem>>, vector<1x8x32xbf16>
      %805 = vector.shape_cast %804 : vector<1x8x32xbf16> to vector<8x32xbf16>
      %806 = vector.shape_cast %803 : vector<8x32xbf16> to vector<1x8x32xbf16>
      tpu.vector_store %arg11[%c0_424, %c0_425, %c0_426], %806 {strides = array<i32>} : memref<2x8x32xbf16, #tpu.memory_space<vmem>>, vector<1x8x32xbf16>,
      %c1_427 = arith.constant 1 : index
      %c0_428 = arith.constant 0 : index
      %c0_429 = arith.constant 0 : index
      %807 = vector.load %arg5[%c1_427, %c0_428, %c0_429] : memref<2x32x128xbf16, #tpu.memory_space<vmem>>, vector<1x32x128xbf16>
      %808 = vector.shape_cast %807 : vector<1x32x128xbf16> to vector<32x128xbf16>
      %cst_430 = arith.constant dense<0.000000e+00> : vector<8x128xf32>
      %809 = tpu.matmul %803, %808, %cst_430 {dimension_numbers = #tpu.dot_dimension_numbers<[1], [0], [0], [1], [0, 0, 1, 1], [], []>} : vector<8x32xbf16>, vector<32x128xbf16>, vector<8x128xf32> -> vector<8x128xf32>
      %c1_431 = arith.constant 1 : index
      %c0_432 = arith.constant 0 : index
      %c0_433 = arith.constant 0 : index
      %810 = vector.load %arg11[%c1_431, %c0_432, %c0_433] : memref<2x8x32xbf16, #tpu.memory_space<vmem>>, vector<1x8x32xbf16>
      %811 = vector.shape_cast %810 : vector<1x8x32xbf16> to vector<8x32xbf16>
      %c1_434 = arith.constant 1 : index
      %c0_435 = arith.constant 0 : index
      %c0_436 = arith.constant 0 : index
      %812 = vector.load %arg6[%c1_434, %c0_435, %c0_436] : memref<2x32x128xbf16, #tpu.memory_space<vmem>>, vector<1x32x128xbf16>
      %813 = vector.shape_cast %812 : vector<1x32x128xbf16> to vector<32x128xbf16>
      %cst_437 = arith.constant dense<0.000000e+00> : vector<8x128xf32>
      %814 = tpu.matmul %811, %813, %cst_437 {dimension_numbers = #tpu.dot_dimension_numbers<[1], [0], [0], [1], [0, 0, 1, 1], [], []>} : vector<8x32xbf16>, vector<32x128xbf16>, vector<8x128xf32> -> vector<8x128xf32>
      %815 = arith.addf %809, %814 : vector<8x128xf32>
      %816 = arith.addf %815, %25 : vector<8x128xf32>
      %c1_438 = arith.constant 1 : index
      %c0_439 = arith.constant 0 : index
      %c0_440 = arith.constant 0 : index
      %817 = vector.load %arg12[%c1_438, %c0_439, %c0_440] : memref<2x8x32xf32, #tpu.memory_space<vmem>>, vector<1x8x32xf32>
      %818 = vector.shape_cast %817 : vector<1x8x32xf32> to vector<8x32xf32>
      %819 = vector.extract_strided_slice %816 {offsets = [0, 0], sizes = [8, 32], strides = [1, 1]} : vector<8x128xf32> to vector<8x32xf32>
      %cst_441 = arith.constant 0.000000e+00 : f32
      %820 = vector.broadcast %cst_441 : f32 to vector<8x32xf32>
      %821 = arith.subf %820, %819 : vector<8x32xf32>
      %822 = math.exp %821 : vector<8x32xf32>
      %cst_442 = arith.constant 1.000000e+00 : f32
      %823 = vector.broadcast %cst_442 : f32 to vector<8x32xf32>
      %824 = arith.addf %823, %822 : vector<8x32xf32>
      %825 = tpu.reciprocal %824 {approx = true} : vector<8x32xf32> -> vector<8x32xf32>
      %826 = vector.extract_strided_slice %816 {offsets = [0, 32], sizes = [8, 32], strides = [1, 1]} : vector<8x128xf32> to vector<8x32xf32>
      %cst_443 = arith.constant 0.000000e+00 : f32
      %827 = vector.broadcast %cst_443 : f32 to vector<8x32xf32>
      %828 = arith.subf %827, %826 : vector<8x32xf32>
      %829 = math.exp %828 : vector<8x32xf32>
      %cst_444 = arith.constant 1.000000e+00 : f32
      %830 = vector.broadcast %cst_444 : f32 to vector<8x32xf32>
      %831 = arith.addf %830, %829 : vector<8x32xf32>
      %832 = tpu.reciprocal %831 {approx = true} : vector<8x32xf32> -> vector<8x32xf32>
      %833 = vector.extract_strided_slice %816 {offsets = [0, 64], sizes = [8, 32], strides = [1, 1]} : vector<8x128xf32> to vector<8x32xf32>
      %834 = math.tanh %833 : vector<8x32xf32>
      %835 = vector.extract_strided_slice %816 {offsets = [0, 96], sizes = [8, 32], strides = [1, 1]} : vector<8x128xf32> to vector<8x32xf32>
      %cst_445 = arith.constant 0.000000e+00 : f32
      %836 = vector.broadcast %cst_445 : f32 to vector<8x32xf32>
      %837 = arith.subf %836, %835 : vector<8x32xf32>
      %838 = math.exp %837 : vector<8x32xf32>
      %cst_446 = arith.constant 1.000000e+00 : f32
      %839 = vector.broadcast %cst_446 : f32 to vector<8x32xf32>
      %840 = arith.addf %839, %838 : vector<8x32xf32>
      %841 = tpu.reciprocal %840 {approx = true} : vector<8x32xf32> -> vector<8x32xf32>
      %842 = arith.mulf %832, %818 : vector<8x32xf32>
      %843 = arith.mulf %825, %834 : vector<8x32xf32>
      %844 = arith.addf %842, %843 : vector<8x32xf32>
      %845 = math.tanh %844 : vector<8x32xf32>
      %846 = arith.mulf %841, %845 : vector<8x32xf32>
      %c1_447 = arith.constant 1 : index
      %c0_448 = arith.constant 0 : index
      %c0_449 = arith.constant 0 : index
      %847 = vector.load %arg12[%c1_447, %c0_448, %c0_449] : memref<2x8x32xf32, #tpu.memory_space<vmem>>, vector<1x8x32xf32>
      %848 = vector.shape_cast %847 : vector<1x8x32xf32> to vector<8x32xf32>
      %849 = vector.shape_cast %844 : vector<8x32xf32> to vector<1x8x32xf32>
      tpu.vector_store %arg12[%c1_447, %c0_448, %c0_449], %849 {strides = array<i32>} : memref<2x8x32xf32, #tpu.memory_space<vmem>>, vector<1x8x32xf32>,
      %850 = arith.truncf %846 : vector<8x32xf32> to vector<8x32xbf16>
      %c1_450 = arith.constant 1 : index
      %c0_451 = arith.constant 0 : index
      %c0_452 = arith.constant 0 : index
      %851 = vector.load %arg11[%c1_450, %c0_451, %c0_452] : memref<2x8x32xbf16, #tpu.memory_space<vmem>>, vector<1x8x32xbf16>
      %852 = vector.shape_cast %851 : vector<1x8x32xbf16> to vector<8x32xbf16>
      %853 = vector.shape_cast %850 : vector<8x32xbf16> to vector<1x8x32xbf16>
      tpu.vector_store %arg11[%c1_450, %c0_451, %c0_452], %853 {strides = array<i32>} : memref<2x8x32xbf16, #tpu.memory_space<vmem>>, vector<1x8x32xbf16>,
      %c1_i32_453 = arith.constant 1 : i32
      %854 = vector.broadcast %c1_i32_453 : i32 to vector<8x1xi32>
      %855 = arith.subi %22, %854 : vector<8x1xi32>
      %856 = arith.addi %0, %c7_i32 : i32
      %857 = vector.broadcast %856 : i32 to vector<8x1xi32>
      %858 = arith.cmpi eq, %855, %857 : vector<8x1xi32>
      %859 = arith.extui %858 : vector<8x1xi1> to vector<8x1xi32>
      %860 = arith.sitofp %859 : vector<8x1xi32> to vector<8x1xf32>
      %c0_454 = arith.constant 0 : index
      %c0_455 = arith.constant 0 : index
      %861 = vector.load %arg13[%c0_454, %c0_455] : memref<8x32xf32, #tpu.memory_space<vmem>>, vector<8x32xf32>
      %862 = vector.broadcast %860 : vector<8x1xf32> to vector<8x32xf32>
      %863 = arith.mulf %862, %846 : vector<8x32xf32>
      %864 = arith.addf %861, %863 : vector<8x32xf32>
      %c0_456 = arith.constant 0 : index
      %c0_457 = arith.constant 0 : index
      %865 = vector.load %arg13[%c0_456, %c0_457] : memref<8x32xf32, #tpu.memory_space<vmem>>, vector<8x32xf32>
      tpu.vector_store %arg13[%c0_456, %c0_457], %864 {strides = array<i32>} : memref<8x32xf32, #tpu.memory_space<vmem>>, vector<8x32xf32>,
      %c8_i32_458 = arith.constant 8 : i32
    } else {
    }
    %c0_i32_2 = arith.constant 0 : i32
    %9 = arith.cmpi eq, %arg1, %c0_i32_2 : i32
    %10 = arith.extui %9 : i1 to i32
    %c0_i32_3 = arith.constant 0 : i32
    %11 = arith.cmpi ne, %10, %c0_i32_3 : i32
    scf.if %11 {
      %c0 = arith.constant 0 : index
      %c0_4 = arith.constant 0 : index
      %12 = vector.load %arg13[%c0, %c0_4] : memref<8x32xf32, #tpu.memory_space<vmem>>, vector<8x32xf32>
      %13 = arith.truncf %12 : vector<8x32xf32> to vector<8x32xbf16>
      %c0_5 = arith.constant 0 : index
      %c0_6 = arith.constant 0 : index
      %14 = vector.load %arg8[%c0_5, %c0_6] : memref<32x128xbf16, #tpu.memory_space<vmem>>, vector<32x128xbf16>
      %cst = arith.constant dense<0.000000e+00> : vector<8x128xf32>
      %15 = tpu.matmul %13, %14, %cst {dimension_numbers = #tpu.dot_dimension_numbers<[1], [0], [0], [1], [0, 0, 1, 1], [], []>} : vector<8x32xbf16>, vector<32x128xbf16>, vector<8x128xf32> -> vector<8x128xf32>
      %c0_7 = arith.constant 0 : index
      %c0_8 = arith.constant 0 : index
      %16 = vector.load %arg9[%c0_7, %c0_8] : memref<1x128xf32, #tpu.memory_space<vmem>>, vector<1x128xf32>
      %17 = vector.broadcast %16 : vector<1x128xf32> to vector<8x128xf32>
      %18 = arith.addf %15, %17 : vector<8x128xf32>
      %c0_9 = arith.constant 0 : index
      %c0_10 = arith.constant 0 : index
      %19 = vector.load %arg10[%c0_9, %c0_10] : memref<8x128xf32, #tpu.memory_space<vmem>>, vector<8x128xf32>
      tpu.vector_store %arg10[%c0_9, %c0_10], %18 {strides = array<i32>} : memref<8x128xf32, #tpu.memory_space<vmem>>, vector<8x128xf32>,
    } else {
    }
    return
  }
  func.func @transform_0(%arg0: i32, %arg1: i32, %arg2: memref<1xi32, #tpu.memory_space<smem>>) -> (i32, i32) {
    %c0_i32 = arith.constant 0 : i32
    %c0_i32_0 = arith.constant 0 : i32
    return %arg0, %c0_i32 : i32, i32
  }
  func.func @transform_1(%arg0: i32, %arg1: i32, %arg2: memref<1xi32, #tpu.memory_space<smem>>) -> (i32, i32, i32) {
    %c0_i32 = arith.constant 0 : i32
    %c0_i32_0 = arith.constant 0 : i32
    return %arg1, %arg0, %c0_i32 : i32, i32, i32
  }
  func.func @transform_2(%arg0: i32, %arg1: i32, %arg2: memref<1xi32, #tpu.memory_space<smem>>) -> (i32, i32, i32) {
    %c0_i32 = arith.constant 0 : i32
    %c0_i32_0 = arith.constant 0 : i32
    %c0_i32_1 = arith.constant 0 : i32
    %c0_i32_2 = arith.constant 0 : i32
    return %c0_i32, %c0_i32_0, %c0_i32_1 : i32, i32, i32
  }
  func.func @transform_3(%arg0: i32, %arg1: i32, %arg2: memref<1xi32, #tpu.memory_space<smem>>) -> (i32, i32, i32) {
    %c0_i32 = arith.constant 0 : i32
    %c0_i32_0 = arith.constant 0 : i32
    %c0_i32_1 = arith.constant 0 : i32
    %c0_i32_2 = arith.constant 0 : i32
    return %c0_i32, %c0_i32_0, %c0_i32_1 : i32, i32, i32
  }
  func.func @transform_4(%arg0: i32, %arg1: i32, %arg2: memref<1xi32, #tpu.memory_space<smem>>) -> (i32, i32) {
    %c0_i32 = arith.constant 0 : i32
    %c0_i32_0 = arith.constant 0 : i32
    %c0_i32_1 = arith.constant 0 : i32
    return %c0_i32, %c0_i32_0 : i32, i32
  }
  func.func @transform_5(%arg0: i32, %arg1: i32, %arg2: memref<1xi32, #tpu.memory_space<smem>>) -> (i32, i32) {
    %c0_i32 = arith.constant 0 : i32
    %c0_i32_0 = arith.constant 0 : i32
    %c0_i32_1 = arith.constant 0 : i32
    return %c0_i32, %c0_i32_0 : i32, i32
  }
  func.func @transform_6(%arg0: i32, %arg1: i32, %arg2: memref<1xi32, #tpu.memory_space<smem>>) -> (i32, i32) {
    %c0_i32 = arith.constant 0 : i32
    %c0_i32_0 = arith.constant 0 : i32
    %c0_i32_1 = arith.constant 0 : i32
    return %c0_i32, %c0_i32_0 : i32, i32
  }
  func.func @transform_7(%arg0: i32, %arg1: i32, %arg2: memref<1xi32, #tpu.memory_space<smem>>) -> (i32, i32) {
    %c0_i32 = arith.constant 0 : i32
    %c0_i32_0 = arith.constant 0 : i32
    return %arg0, %c0_i32 : i32, i32
  }
}

</mosaic_0001>

<llo_original>
// kernel: tpu_custom_call.1
$region0: #{tpu_custom_call.1}
  #allocation0 [shape = 'u32[]', space=smem, size = 0x4, offset = 0x4, fixed_abs, tag = 'smem constant byte address 0x4 - core index']
  #allocation1 [shape = 'u32[144,128]{1,0:T(1,128)}', space=vmem, size = 0x12000, scoped, tag = 'internal scratch']
  #allocation2 [shape = 'bf16[2,8,32]{2,1,0:T(8,128)(2,1)}', space=vmem, size = 0x1000, scoped, tag = 'scratch operand']
  #allocation3 [shape = 'f32[2,8,32]{2,1,0:T(8,128)}', space=vmem, size = 0x2000, scoped, tag = 'scratch operand']
  #allocation4 [shape = 'f32[8,32]{1,0:T(8,128)}', space=vmem, size = 0x1000, scoped, tag = 'scratch operand']
  #allocation5 [shape = 'f32[8,8,128]{2,1,0:T(8,128)}', space=vmem, size = 0x8000, scoped, tag = 'scratch operand']
  #allocation6 [shape = 's32[1]{0}', space=sflag, size = 0x4, scoped, tag = 'scoped memory for tpu_custom_call.1']
  #allocation7 [shape = 's32[1]{0:T(128)S(6)}', space=smem, size = 0x200, scoped, tag = 'prefetched SMEM operand 0']
  %s0 = inlined_call_operand.<no memory space> [shape: s32[1], index: 0, kind: input, shape index: {}]
  %s1 = inlined_call_operand.hbm [shape: s32[8,1], index: 1, kind: input, shape index: {}]
  %s2 = inlined_call_operand.hbm [shape: bf16[8,8,32], index: 2, kind: input, shape index: {}]
  %s3 = inlined_call_operand.hbm [shape: bf16[2,32,128], index: 3, kind: input, shape index: {}]
  %s4 = inlined_call_operand.hbm [shape: bf16[2,32,128], index: 4, kind: input, shape index: {}]
  %s5 = inlined_call_operand.hbm [shape: f32[2,128], index: 5, kind: input, shape index: {}]
  %s6 = inlined_call_operand.hbm [shape: bf16[32,128], index: 6, kind: input, shape index: {}]
  %s7 = inlined_call_operand.hbm [shape: f32[1,128], index: 7, kind: input, shape index: {}]
  %s8 = inlined_call_operand.hbm [shape: f32[8,128], index: 8, kind: output, shape index: {}]
  %s9 = sld [smem:[#allocation0]]
  $region78: #{tpu_custom_call.1} parent=0
    _
  %s11 = ssub.s32 1, %s9
  %s12 = scalar_select 0, %s11, %s9
  %13 = sst [smem:[#allocation7]] %s0
  $region1: #{tpu_custom_call.1} parent=0
    #allocation8 [shape = 'u8[4096]{0}', space=vmem, size = 0x1000, scoped, tag = 'input window, operand 1, single buffered']
    #allocation9 [shape = 's32[1]{0}', space=sflag, size = 0x4, scoped, tag = 'scoped memory for tpu_custom_call.1']
    #allocation10 [shape = 's32[1]{0}', space=sflag, size = 0x4, scoped, tag = 'scoped memory for tpu_custom_call.1']
    #allocation11 [shape = 'u8[16384]{0}', space=vmem, size = 0x4000, scoped, tag = 'input window, operand 2, single buffered']
    #allocation12 [shape = 's32[1]{0}', space=sflag, size = 0x4, scoped, tag = 'scoped memory for tpu_custom_call.1']
    #allocation13 [shape = 'u8[16384]{0}', space=vmem, size = 0x4000, scoped, tag = 'input window, operand 3, single buffered']
    #allocation14 [shape = 'u8[16384]{0}', space=vmem, size = 0x4000, scoped, tag = 'input window, operand 4, single buffered']
    #allocation15 [shape = 's32[1]{0}', space=sflag, size = 0x4, scoped, tag = 'scoped memory for tpu_custom_call.1']
    #allocation16 [shape = 'u8[1024]{0}', space=vmem, size = 0x400, scoped, tag = 'input window, operand 5, single buffered']
    #allocation17 [shape = 'u8[8192]{0}', space=vmem, size = 0x2000, scoped, tag = 'input window, operand 6, single buffered']
    #allocation18 [shape = 's32[1]{0}', space=sflag, size = 0x4, scoped, tag = 'scoped memory for tpu_custom_call.1']
    #allocation19 [shape = 'u8[512]{0}', space=vmem, size = 0x400, scoped, tag = 'input window, operand 7, single buffered']
    #allocation20 [shape = 'u8[4096]{0}', space=vmem, size = 0x1000, scoped, tag = 'output window, operand 0, single buffered']
    %14 = vsyncpa [#allocation9], 0
    %15 = vsyncpa [#allocation12], 0
    %16 = vsyncpa [#allocation15], 0
    %17 = vsyncpa [#allocation18], 0
    %18 = vsyncpa [#allocation10], 0
    // Predicated region
    $region2: #{tpu_custom_call.1} parent=1 // pred_check
      _
    $region3: #{tpu_custom_call.1} parent=1 // pred_check_branch
      %20 = sbr.rel (0) target = $region5
    $region4: #{tpu_custom_call.1} parent=1 // pred_region
      %s22 = ssub.s32 128, 128
      %23 = vsyncadd [#allocation9], %s22
      %s25 = sshll.u32 [#allocation8], 4
      %s26 = int_to_ptr.vmem [resolvable:$true] %s25
      %28 = dma.hbm_to_vmem [thread:$0]  %s1, 128, %s26, [#allocation9]
    $region5: #{tpu_custom_call.1} parent=1 // pred_fallthru
      _
    // Predicated region
    $region6: #{tpu_custom_call.1} parent=1 // pred_check
      _
    $region7: #{tpu_custom_call.1} parent=1 // pred_check_branch
      %30 = sbr.rel (0) target = $region9
    $region8: #{tpu_custom_call.1} parent=1 // pred_region
      %s32 = ssub.s32 512, 512
      %33 = vsyncadd [#allocation12], %s32
      %s34 = sshll.u32 [#allocation11], 4
      %s35 = int_to_ptr.vmem [resolvable:$true] %s34
      %40 = dma.hbm_to_vmem [thread:$0]  %s2, 512, %s35, [#allocation12], 64, 64, 4
    $region9: #{tpu_custom_call.1} parent=1 // pred_fallthru
      _
    // Predicated region
    $region10: #{tpu_custom_call.1} parent=1 // pred_check
      _
    $region11: #{tpu_custom_call.1} parent=1 // pred_check_branch
      %42 = sbr.rel (0) target = $region13
    $region12: #{tpu_custom_call.1} parent=1 // pred_region
      %s44 = ssub.s32 512, 512
      %45 = vsyncadd [#allocation12], %s44
      %s46 = sshll.u32 [#allocation13], 4
      %s47 = int_to_ptr.vmem [resolvable:$true] %s46
      %52 = dma.hbm_to_vmem [thread:$0]  %s3, 512, %s47, [#allocation12], 64, 64, 4
    $region13: #{tpu_custom_call.1} parent=1 // pred_fallthru
      _
    // Predicated region
    $region14: #{tpu_custom_call.1} parent=1 // pred_check
      _
    $region15: #{tpu_custom_call.1} parent=1 // pred_check_branch
      %54 = sbr.rel (0) target = $region17
    $region16: #{tpu_custom_call.1} parent=1 // pred_region
      %s56 = ssub.s32 512, 512
      %57 = vsyncadd [#allocation15], %s56
      %s58 = sshll.u32 [#allocation14], 4
      %s59 = int_to_ptr.vmem [resolvable:$true] %s58
      %64 = dma.hbm_to_vmem [thread:$0]  %s4, 512, %s59, [#allocation15], 64, 64, 4
    $region17: #{tpu_custom_call.1} parent=1 // pred_fallthru
      _
    // Predicated region
    $region18: #{tpu_custom_call.1} parent=1 // pred_check
      _
    $region19: #{tpu_custom_call.1} parent=1 // pred_check_branch
      %66 = sbr.rel (0) target = $region21
    $region20: #{tpu_custom_call.1} parent=1 // pred_region
      %s68 = ssub.s32 32, 32
      %69 = vsyncadd [#allocation15], %s68
      %s71 = sshll.u32 [#allocation16], 4
      %s72 = int_to_ptr.vmem [resolvable:$true] %s71
      %74 = dma.hbm_to_vmem [thread:$0]  %s5, 32, %s72, [#allocation15]
    $region21: #{tpu_custom_call.1} parent=1 // pred_fallthru
      _
    // Predicated region
    $region22: #{tpu_custom_call.1} parent=1 // pred_check
      _
    $region23: #{tpu_custom_call.1} parent=1 // pred_check_branch
      %76 = sbr.rel (0) target = $region25
    $region24: #{tpu_custom_call.1} parent=1 // pred_region
      %s78 = ssub.s32 256, 256
      %79 = vsyncadd [#allocation18], %s78
      %s80 = sshll.u32 [#allocation17], 4
      %s81 = int_to_ptr.vmem [resolvable:$true] %s80
      %86 = dma.hbm_to_vmem [thread:$0]  %s6, 256, %s81, [#allocation18], 64, 64, 4
    $region25: #{tpu_custom_call.1} parent=1 // pred_fallthru
      _
    // Predicated region
    $region26: #{tpu_custom_call.1} parent=1 // pred_check
      _
    $region27: #{tpu_custom_call.1} parent=1 // pred_check_branch
      %88 = sbr.rel (0) target = $region29
    $region28: #{tpu_custom_call.1} parent=1 // pred_region
      %s90 = ssub.s32 16, 16
      %91 = vsyncadd [#allocation18], %s90
      %s93 = sshll.u32 [#allocation19], 4
      %s94 = int_to_ptr.vmem [resolvable:$true] %s93
      %96 = dma.hbm_to_vmem [thread:$0]  %s7, 16, %s94, [#allocation18]
    $region29: #{tpu_custom_call.1} parent=1 // pred_fallthru
      _
    // Predicated region
    $region30: #{tpu_custom_call.1} parent=1 // pred_check
      _
    $region31: #{tpu_custom_call.1} parent=1 // pred_check_branch
      %98 = sbr.rel (0) target = $region33
    $region32: #{tpu_custom_call.1} parent=1 // pred_region
      %99 = dma.done [#allocation9], 128
    $region33: #{tpu_custom_call.1} parent=1 // pred_fallthru
      _
    // Predicated region
    $region34: #{tpu_custom_call.1} parent=1 // pred_check
      _
    $region35: #{tpu_custom_call.1} parent=1 // pred_check_branch
      %101 = sbr.rel (0) target = $region37
    $region36: #{tpu_custom_call.1} parent=1 // pred_region
      %102 = dma.done [#allocation12], 512
    $region37: #{tpu_custom_call.1} parent=1 // pred_fallthru
      _
    // Predicated region
    $region38: #{tpu_custom_call.1} parent=1 // pred_check
      _
    $region39: #{tpu_custom_call.1} parent=1 // pred_check_branch
      %104 = sbr.rel (0) target = $region41
    $region40: #{tpu_custom_call.1} parent=1 // pred_region
      %105 = dma.done [#allocation12], 512
    $region41: #{tpu_custom_call.1} parent=1 // pred_fallthru
      _
    // Predicated region
    $region42: #{tpu_custom_call.1} parent=1 // pred_check
      _
    $region43: #{tpu_custom_call.1} parent=1 // pred_check_branch
      %107 = sbr.rel (0) target = $region45
    $region44: #{tpu_custom_call.1} parent=1 // pred_region
      %108 = dma.done [#allocation15], 512
    $region45: #{tpu_custom_call.1} parent=1 // pred_fallthru
      _
    // Predicated region
    $region46: #{tpu_custom_call.1} parent=1 // pred_check
      _
    $region47: #{tpu_custom_call.1} parent=1 // pred_check_branch
      %110 = sbr.rel (0) target = $region49
    $region48: #{tpu_custom_call.1} parent=1 // pred_region
      %111 = dma.done [#allocation15], 32
    $region49: #{tpu_custom_call.1} parent=1 // pred_fallthru
      _
    // Predicated region
    $region50: #{tpu_custom_call.1} parent=1 // pred_check
      _
    $region51: #{tpu_custom_call.1} parent=1 // pred_check_branch
      %113 = sbr.rel (0) target = $region53
    $region52: #{tpu_custom_call.1} parent=1 // pred_region
      %114 = dma.done [#allocation18], 256
    $region53: #{tpu_custom_call.1} parent=1 // pred_fallthru
      _
    // Predicated region
    $region54: #{tpu_custom_call.1} parent=1 // pred_check
      _
    $region55: #{tpu_custom_call.1} parent=1 // pred_check_branch
      %116 = sbr.rel (0) target = $region57
    $region56: #{tpu_custom_call.1} parent=1 // pred_region
      %117 = dma.done [#allocation18], 16
    $region57: #{tpu_custom_call.1} parent=1 // pred_fallthru
      _
    %s119 = smul.u32 0, 8
    %p120 = scmp.eq.s32.totalorder 0, 0
    // Predicated region
    $region58: #{tpu_custom_call.1} parent=1 // pred_check
      %p121 = pneg %p120
    $region59: #{tpu_custom_call.1} parent=1 // pred_check_branch
      %123 = sbr.rel (%p121) target = $region61
    $region60: #{tpu_custom_call.1} parent=1 // pred_region
      %vm124 = vcmask 257024
      %125 = vst.msk [vmem:[#allocation2] sm:$0xf] %vm124, 0
      %126 = vst.msk [vmem:[#allocation2 + $0x4] sm:$0xf] %vm124, 0
      %vm127 = vcmask 261120
      %128 = vst.msk [vmem:[#allocation3] sm:$0xff] %vm127, 0.0
      %129 = vst.msk [vmem:[#allocation3 + $0x8] sm:$0xff] %vm127, 0.0
      %130 = vst.msk [vmem:[#allocation4] sm:$0xff] %vm127, 0.0
      %131 = vst [vmem:[#allocation20] sm:$0xff] 0.0
    $region61: #{tpu_custom_call.1} parent=1 // pred_fallthru
      _
    %s132 = sld [smem:[#allocation7]]
    %p133 = scmp.lt.s32.totalorder %s119, %s132
    // Predicated region
    $region62: #{tpu_custom_call.1} parent=1 // pred_check
      %p134 = pneg %p133
    $region63: #{tpu_custom_call.1} parent=1 // pred_check_branch
      %136 = sbr.rel (%p134) target = $region65
    $region64: #{tpu_custom_call.1} parent=1 // pred_region
      %v137 = vld [vmem:[#allocation11] sm:$0xf]
      %v138 = vld [vmem:[#allocation11 + $0x4] sm:$0xf]
      %v139 = vld [vmem:[#allocation11 + $0x8] sm:$0xf]
      %v140 = vld [vmem:[#allocation11 + $0xc] sm:$0xf]
      %v141 = vld [vmem:[#allocation11 + $0x10] sm:$0xf]
      %v142 = vld [vmem:[#allocation11 + $0x14] sm:$0xf]
      %v143 = vld [vmem:[#allocation11 + $0x18] sm:$0xf]
      %v144 = vld [vmem:[#allocation11 + $0x1c] sm:$0xf]
      %v145 = vld [vmem:[#allocation13] sm:$0xf]
      %v146 = vld [vmem:[#allocation13 + $0x4] sm:$0xf]
      %v147 = vld [vmem:[#allocation13 + $0x8] sm:$0xf]
      %v148 = vld [vmem:[#allocation13 + $0xc] sm:$0xf]
      %v149 = vld [vmem:[#allocation16] sm:$0x1]
      %v150 = vlaneseq
      %v151 = vshrl.u32 %v150, 7
      %v152 = vsub.s32 0, %v151
      %v153 = vrot.slane %v149, %v152
      %v162 = vunpack.c.l.b16 %v137
      %v163 = vunpack.c.l.b16 %v138
      %v164 = vunpack.c.l.b16 %v139
      %v165 = vunpack.c.l.b16 %v140
      %v166 = vunpack.c.l.b16 %v141
      %v167 = vunpack.c.l.b16 %v142
      %v168 = vunpack.c.l.b16 %v143
      %v169 = vunpack.c.l.b16 %v144
      %v170 = vpack.c.b16 %v163, %v162
      %v171 = vpack.c.b16 %v165, %v164
      %v172 = vpack.c.b16 %v167, %v166
      %v173 = vpack.c.b16 %v169, %v168
      %v178 = vunpack.c.l.b16 %v145
      %v179 = vunpack.c.l.b16 %v146
      %v180 = vunpack.c.l.b16 %v147
      %v181 = vunpack.c.l.b16 %v148
      %v182 = vpack.c.b16 %v179, %v178
      %v183 = vpack.c.b16 %v181, %v180
      %vm186 = vcmask 261120
      %v188 = vsel %vm186, %v170, 0
      %v191 = vsel %vm186, %v171, 0
      %v194 = vsel %vm186, %v172, 0
      %v197 = vsel %vm186, %v173, 0
      %199 = vmatprep.subr.bf16.mxu0 0
      %200 = vmatpush1.bf16.msra.mxu0 %v182
      %201 = vmatprep.subr.bf16.mxu0 0
      %202 = vmatpush1.bf16.msra.mxu0 %v183
      %203 = vmatprep.subr.bf16.mxu0 0
      %204 = vmatpush1.bf16.msra.mxu0 0
      %205 = vmatprep.subr.bf16.mxu0 0
      %206 = vmatpush1.bf16.msra.mxu0 0
      %207 = vmatprep.subr.bf16.mxu0 0
      %208 = vmatpush1.bf16.msra.mxu0 0
      %209 = vmatprep.subr.bf16.mxu0 0
      %210 = vmatpush1.bf16.msra.mxu0 0
      %211 = vmatprep.subr.bf16.mxu0 0
      %212 = vmatpush1.bf16.msra.mxu0 0
      %213 = vmatprep.subr.bf16.mxu0 0
      %214 = vmatpush1.bf16.msra.mxu0 0
      %215 = vmatprep.subr.bf16.mxu0 0
      %216 = vmatpush1.bf16.msra.mxu0 0
      %217 = vmatprep.subr.bf16.mxu0 0
      %218 = vmatpush1.bf16.msra.mxu0 0
      %219 = vmatprep.subr.bf16.mxu0 0
      %220 = vmatpush1.bf16.msra.mxu0 0
      %221 = vmatprep.subr.bf16.mxu0 0
      %222 = vmatpush1.bf16.msra.mxu0 0
      %223 = vmatprep.subr.bf16.mxu0 0
      %224 = vmatpush1.bf16.msra.mxu0 0
      %225 = vmatprep.subr.bf16.mxu0 0
      %226 = vmatpush1.bf16.msra.mxu0 0
      %227 = vmatprep.subr.bf16.mxu0 0
      %228 = vmatpush1.bf16.msra.mxu0 0
      %229 = vmatprep.subr.bf16.mxu0 0
      %230 = vmatpush1.bf16.msra.mxu0 0
      %231 = vmatprep.mubr.bf16.mxu0 0
      %232 = vmatmul.mubr.bf16.gmra.mrb[0].mxu0 %v188
      %v233 = vpop.f32.mrb[0].mxu0
      %v234 = vadd.f32 %v153, %v233
      %v235 = vpop.f32.mrb[0].mxu0
      %v236 = vpop.f32.mrb[0].mxu0
      %v237 = vadd.f32 %v153, %v236
      %v238 = vpop.f32.mrb[0].mxu0
      %239 = vmatprep.mubr.bf16.mxu0 0
      %240 = vmatmul.mubr.bf16.gmra.mrb[0].mxu0 %v191
      %v241 = vpop.f32.mrb[0].mxu0
      %v242 = vadd.f32 %v153, %v241
      %v243 = vpop.f32.mrb[0].mxu0
      %v244 = vpop.f32.mrb[0].mxu0
      %v245 = vadd.f32 %v153, %v244
      %v246 = vpop.f32.mrb[0].mxu0
      %247 = vmatprep.mubr.bf16.mxu0 0
      %248 = vmatmul.mubr.bf16.gmra.mrb[0].mxu0 %v194
      %v249 = vpop.f32.mrb[0].mxu0
      %v250 = vadd.f32 %v153, %v249
      %v251 = vpop.f32.mrb[0].mxu0
      %v252 = vpop.f32.mrb[0].mxu0
      %v253 = vadd.f32 %v153, %v252
      %v254 = vpop.f32.mrb[0].mxu0
      %255 = vmatprep.mubr.bf16.mxu0 0
      %256 = vmatmul.mubr.bf16.gmra.mrb[0].mxu0 %v197
      %v257 = vpop.f32.mrb[0].mxu0
      %v258 = vadd.f32 %v153, %v257
      %v259 = vpop.f32.mrb[0].mxu0
      %v260 = vpop.f32.mrb[0].mxu0
      %v261 = vadd.f32 %v153, %v260
      %v262 = vpop.f32.mrb[0].mxu0
      %263 = vdwg.mxu0
      %264 = vst [vmem:[#allocation5] sm:$0xff] %v234
      %265 = vst [vmem:[#allocation5 + $0x8] sm:$0xff] %v237
      %266 = vst [vmem:[#allocation5 + $0x10] sm:$0xff] %v242
      %267 = vst [vmem:[#allocation5 + $0x18] sm:$0xff] %v245
      %268 = vst [vmem:[#allocation5 + $0x20] sm:$0xff] %v250
      %269 = vst [vmem:[#allocation5 + $0x28] sm:$0xff] %v253
      %270 = vst [vmem:[#allocation5 + $0x30] sm:$0xff] %v258
      %271 = vst [vmem:[#allocation5 + $0x38] sm:$0xff] %v261
      %v272 = vld [vmem:[#allocation8] sm:$0xff]
      %v273 = vld [vmem:[#allocation16 + $0x1] sm:$0x1]
      %v274 = vlaneseq
      %v275 = vshrl.u32 %v274, 7
      %v276 = vsub.s32 0, %v275
      %v277 = vrot.slane %v273, %v276
      %v278 = vld [vmem:[#allocation5] sm:$0xff]
      %v279 = vld [vmem:[#allocation2] sm:$0xf]
      %v280 = vld [vmem:[#allocation14] sm:$0xf]
      %v281 = vld [vmem:[#allocation14 + $0x4] sm:$0xf]
      %v282 = vld [vmem:[#allocation14 + $0x8] sm:$0xf]
      %v283 = vld [vmem:[#allocation14 + $0xc] sm:$0xf]
      %v288 = vunpack.c.l.b16 %v280
      %v289 = vunpack.c.l.b16 %v281
      %v290 = vunpack.c.l.b16 %v282
      %v291 = vunpack.c.l.b16 %v283
      %v292 = vpack.c.b16 %v289, %v288
      %v293 = vpack.c.b16 %v291, %v290
      %v297 = vsel %vm186, %v279, 0
      %299 = vmatprep.subr.bf16.mxu0 0
      %300 = vmatpush1.bf16.msra.mxu0 %v292
      %301 = vmatprep.subr.bf16.mxu0 0
      %302 = vmatpush1.bf16.msra.mxu0 %v293
      %303 = vmatprep.subr.bf16.mxu0 0
      %304 = vmatpush1.bf16.msra.mxu0 0
      %305 = vmatprep.subr.bf16.mxu0 0
      %306 = vmatpush1.bf16.msra.mxu0 0
      %307 = vmatprep.subr.bf16.mxu0 0
      %308 = vmatpush1.bf16.msra.mxu0 0
      %309 = vmatprep.subr.bf16.mxu0 0
      %310 = vmatpush1.bf16.msra.mxu0 0
      %311 = vmatprep.subr.bf16.mxu0 0
      %312 = vmatpush1.bf16.msra.mxu0 0
      %313 = vmatprep.subr.bf16.mxu0 0
      %314 = vmatpush1.bf16.msra.mxu0 0
      %315 = vmatprep.subr.bf16.mxu0 0
      %316 = vmatpush1.bf16.msra.mxu0 0
      %317 = vmatprep.subr.bf16.mxu0 0
      %318 = vmatpush1.bf16.msra.mxu0 0
      %319 = vmatprep.subr.bf16.mxu0 0
      %320 = vmatpush1.bf16.msra.mxu0 0
      %321 = vmatprep.subr.bf16.mxu0 0
      %322 = vmatpush1.bf16.msra.mxu0 0
      %323 = vmatprep.subr.bf16.mxu0 0
      %324 = vmatpush1.bf16.msra.mxu0 0
      %325 = vmatprep.subr.bf16.mxu0 0
      %326 = vmatpush1.bf16.msra.mxu0 0
      %327 = vmatprep.subr.bf16.mxu0 0
      %328 = vmatpush1.bf16.msra.mxu0 0
      %329 = vmatprep.subr.bf16.mxu0 0
      %330 = vmatpush1.bf16.msra.mxu0 0
      %331 = vmatprep.mubr.bf16.mxu0 0
      %332 = vmatmul.mubr.bf16.gmra.mrb[0].mxu0 %v297
      %v333 = vpop.f32.mrb[0].mxu0
      %v334 = vadd.f32 0.0, %v333
      %v335 = vpop.f32.mrb[0].mxu0
      %v336 = vpop.f32.mrb[0].mxu0
      %v337 = vpop.f32.mrb[0].mxu0
      %338 = vdwg.mxu0
      %v339 = vadd.f32 %v278, %v334
      %v340 = vld [vmem:[#allocation3] sm:$0xff]
      %v341 = vsub.f32 0.0, %v339
      %v342 = vmul.f32 %v341, 1.442695
      %v343 = vpow.pop %v342
      %v344 = vadd.f32 %v343, 1.0
      %v345 = vrcp.pop %v344
      %v346 = vtanh.pop %v339
      %348 = vrot.lane.b32.xlu0 %v340, 32
      %v349 = vpop.permute.xlu0 %348
      %v351 = vmul.f32 %v345, %v349
      %353 = vrot.lane.b32.xlu0 %v346, 64
      %v354 = vpop.permute.xlu0 %353
      %v356 = vmul.f32 %v345, %v354
      %358 = vrot.lane.b32.xlu0 %v356, 32
      %v359 = vpop.permute.xlu0 %358
      %v361 = vadd.f32 %v351, %v359
      %v362 = vtanh.pop %v361
      %364 = vrot.lane.b32.xlu0 %v362, 64
      %v365 = vpop.permute.xlu0 %364
      %v367 = vmul.f32 %v345, %v365
      %369 = vrot.lane.b32.xlu0 %v361, 96
      %v370 = vpop.permute.xlu0 %369
      %372 = vst.msk [vmem:[#allocation3] sm:$0xff] %vm186, %v370
      %v373 = vpack.c.bf16 %v367, %v367
      %v375 = vunpack.c.l.b16 %v373
      %v376 = vpack.c.b16 %v375, %v375
      %377 = vrot.lane.b32.xlu0 %v376, 32
      %v378 = vpop.permute.xlu0 %377
      %vm380 = vcmask 257024
      %381 = vst.msk [vmem:[#allocation2] sm:$0xf] %vm380, %v378
      %s382 = scalar_lea.vmem [#allocation13], 16
      %v383 = vld [vmem:[%s382] sm:$0xf]
      %v384 = vld [vmem:[%s382 + $0x4] sm:$0xf]
      %v385 = vld [vmem:[%s382 + $0x8] sm:$0xf]
      %v386 = vld [vmem:[%s382 + $0xc] sm:$0xf]
      %s387 = scalar_lea.vmem [#allocation2], 4
      %v388 = vld [vmem:[%s387] sm:$0xf]
      %s389 = scalar_lea.vmem [#allocation14], 16
      %v390 = vld [vmem:[%s389] sm:$0xf]
      %v391 = vld [vmem:[%s389 + $0x4] sm:$0xf]
      %v392 = vld [vmem:[%s389 + $0x8] sm:$0xf]
      %v393 = vld [vmem:[%s389 + $0xc] sm:$0xf]
      %v398 = vunpack.c.l.b16 %v390
      %v399 = vunpack.c.l.b16 %v391
      %v400 = vunpack.c.l.b16 %v392
      %v401 = vunpack.c.l.b16 %v393
      %v402 = vpack.c.b16 %v399, %v398
      %v403 = vpack.c.b16 %v401, %v400
      %v407 = vsel %vm186, %v388, 0
      %409 = vmatprep.subr.bf16.mxu0 0
      %410 = vmatpush1.bf16.msra.mxu0 %v402
      %411 = vmatprep.subr.bf16.mxu0 0
      %412 = vmatpush1.bf16.msra.mxu0 %v403
      %413 = vmatprep.subr.bf16.mxu0 0
      %414 = vmatpush1.bf16.msra.mxu0 0
      %415 = vmatprep.subr.bf16.mxu0 0
      %416 = vmatpush1.bf16.msra.mxu0 0
      %417 = vmatprep.subr.bf16.mxu0 0
      %418 = vmatpush1.bf16.msra.mxu0 0
      %419 = vmatprep.subr.bf16.mxu0 0
      %420 = vmatpush1.bf16.msra.mxu0 0
      %421 = vmatprep.subr.bf16.mxu0 0
      %422 = vmatpush1.bf16.msra.mxu0 0
      %423 = vmatprep.subr.bf16.mxu0 0
      %424 = vmatpush1.bf16.msra.mxu0 0
      %425 = vmatprep.subr.bf16.mxu0 0
      %426 = vmatpush1.bf16.msra.mxu0 0
      %427 = vmatprep.subr.bf16.mxu0 0
      %428 = vmatpush1.bf16.msra.mxu0 0
      %429 = vmatprep.subr.bf16.mxu0 0
      %430 = vmatpush1.bf16.msra.mxu0 0
      %431 = vmatprep.subr.bf16.mxu0 0
      %432 = vmatpush1.bf16.msra.mxu0 0
      %433 = vmatprep.subr.bf16.mxu0 0
      %434 = vmatpush1.bf16.msra.mxu0 0
      %435 = vmatprep.subr.bf16.mxu0 0
      %436 = vmatpush1.bf16.msra.mxu0 0
      %437 = vmatprep.subr.bf16.mxu0 0
      %438 = vmatpush1.bf16.msra.mxu0 0
      %439 = vmatprep.subr.bf16.mxu0 0
      %440 = vmatpush1.bf16.msra.mxu0 0
      %441 = vmatprep.mubr.bf16.mxu0 0
      %442 = vmatmul.mubr.bf16.gmra.mrb[0].mxu0 %v407
      %v443 = vpop.f32.mrb[0].mxu0
      %v444 = vadd.f32 0.0, %v443
      %v445 = vpop.f32.mrb[0].mxu0
      %v446 = vpop.f32.mrb[0].mxu0
      %v447 = vpop.f32.mrb[0].mxu0
      %448 = vdwg.mxu0
      %449 = vrot.lane.b32.xlu0 %v373, 32
      %v450 = vpop.permute.xlu0 %449
      %v455 = vunpack.c.l.b16 %v383
      %v456 = vunpack.c.l.b16 %v384
      %v457 = vunpack.c.l.b16 %v385
      %v458 = vunpack.c.l.b16 %v386
      %v459 = vpack.c.b16 %v456, %v455
      %v460 = vpack.c.b16 %v458, %v457
      %v464 = vsel %vm186, %v450, 0
      %466 = vmatprep.subr.bf16.mxu0 0
      %467 = vmatpush1.bf16.msra.mxu0 %v459
      %468 = vmatprep.subr.bf16.mxu0 0
      %469 = vmatpush1.bf16.msra.mxu0 %v460
      %470 = vmatprep.subr.bf16.mxu0 0
      %471 = vmatpush1.bf16.msra.mxu0 0
      %472 = vmatprep.subr.bf16.mxu0 0
      %473 = vmatpush1.bf16.msra.mxu0 0
      %474 = vmatprep.subr.bf16.mxu0 0
      %475 = vmatpush1.bf16.msra.mxu0 0
      %476 = vmatprep.subr.bf16.mxu0 0
      %477 = vmatpush1.bf16.msra.mxu0 0
      %478 = vmatprep.subr.bf16.mxu0 0
      %479 = vmatpush1.bf16.msra.mxu0 0
      %480 = vmatprep.subr.bf16.mxu0 0
      %481 = vmatpush1.bf16.msra.mxu0 0
      %482 = vmatprep.subr.bf16.mxu0 0
      %483 = vmatpush1.bf16.msra.mxu0 0
      %484 = vmatprep.subr.bf16.mxu0 0
      %485 = vmatpush1.bf16.msra.mxu0 0
      %486 = vmatprep.subr.bf16.mxu0 0
      %487 = vmatpush1.bf16.msra.mxu0 0
      %488 = vmatprep.subr.bf16.mxu0 0
      %489 = vmatpush1.bf16.msra.mxu0 0
      %490 = vmatprep.subr.bf16.mxu0 0
      %491 = vmatpush1.bf16.msra.mxu0 0
      %492 = vmatprep.subr.bf16.mxu0 0
      %493 = vmatpush1.bf16.msra.mxu0 0
      %494 = vmatprep.subr.bf16.mxu0 0
      %495 = vmatpush1.bf16.msra.mxu0 0
      %496 = vmatprep.subr.bf16.mxu0 0
      %497 = vmatpush1.bf16.msra.mxu0 0
      %498 = vmatprep.mubr.bf16.mxu0 0
      %499 = vmatmul.mubr.bf16.gmra.mrb[0].mxu0 %v464
      %v500 = vpop.f32.mrb[0].mxu0
      %v501 = vadd.f32 %v444, %v500
      %v502 = vpop.f32.mrb[0].mxu0
      %v503 = vpop.f32.mrb[0].mxu0
      %v504 = vpop.f32.mrb[0].mxu0
      %505 = vdwg.mxu0
      %v506 = vadd.f32 %v501, %v277
      %s507 = scalar_lea.vmem [#allocation3], 8
      %v508 = vld [vmem:[%s507] sm:$0xff]
      %v509 = vsub.f32 0.0, %v506
      %v510 = vmul.f32 %v509, 1.442695
      %v511 = vpow.pop %v510
      %v512 = vadd.f32 %v511, 1.0
      %v513 = vrcp.pop %v512
      %v514 = vtanh.pop %v506
      %516 = vrot.lane.b32.xlu0 %v508, 32
      %v517 = vpop.permute.xlu0 %516
      %v519 = vmul.f32 %v513, %v517
      %521 = vrot.lane.b32.xlu0 %v514, 64
      %v522 = vpop.permute.xlu0 %521
      %v524 = vmul.f32 %v513, %v522
      %526 = vrot.lane.b32.xlu0 %v524, 32
      %v527 = vpop.permute.xlu0 %526
      %v529 = vadd.f32 %v519, %v527
      %v530 = vtanh.pop %v529
      %532 = vrot.lane.b32.xlu0 %v530, 64
      %v533 = vpop.permute.xlu0 %532
      %v535 = vmul.f32 %v513, %v533
      %537 = vrot.lane.b32.xlu0 %v529, 96
      %v538 = vpop.permute.xlu0 %537
      %540 = vst.msk [vmem:[%s507] sm:$0xff] %vm186, %v538
      %v541 = vpack.c.bf16 %v535, %v535
      %v543 = vunpack.c.l.b16 %v541
      %v544 = vpack.c.b16 %v543, %v543
      %545 = vrot.lane.b32.xlu0 %v544, 32
      %v546 = vpop.permute.xlu0 %545
      %548 = vst.msk [vmem:[%s387] sm:$0xf] %vm380, %v546
      %v549 = vsub.s32 %v272, 1
      %v550 = vstv %s119
      %vm551 = vcmp.eq.s32.totalorder %v549, %v550
      %v552 = vsel %vm551, 1, 0
      %v553 = vcvt.s32.f32 %v552
      %v554 = vld [vmem:[#allocation4] sm:$0xff]
      %556 = vset.pattern.permute.xlu0 0
      %557 = vperm.xlu0 %556, %v553
      %v558 = vpop.permute.xlu0 %557
      %v560 = vmul.f32 %v558, %v535
      %562 = vrot.lane.b32.xlu0 %v560, 32
      %v563 = vpop.permute.xlu0 %562
      %v565 = vadd.f32 %v554, %v563
      %566 = vst.msk [vmem:[#allocation4] sm:$0xff] %vm186, %v565
      %s567 = scalar_lea.vmem [#allocation5], 8
      %v568 = vld [vmem:[%s567] sm:$0xff]
      %v569 = vld [vmem:[#allocation2] sm:$0xf]
      %v570 = vld [vmem:[#allocation14] sm:$0xf]
      %v571 = vld [vmem:[#allocation14 + $0x4] sm:$0xf]
      %v572 = vld [vmem:[#allocation14 + $0x8] sm:$0xf]
      %v573 = vld [vmem:[#allocation14 + $0xc] sm:$0xf]
      %v578 = vunpack.c.l.b16 %v570
      %v579 = vunpack.c.l.b16 %v571
      %v580 = vunpack.c.l.b16 %v572
      %v581 = vunpack.c.l.b16 %v573
      %v582 = vpack.c.b16 %v579, %v578
      %v583 = vpack.c.b16 %v581, %v580
      %v587 = vsel %vm186, %v569, 0
      %589 = vmatprep.subr.bf16.mxu0 0
      %590 = vmatpush1.bf16.msra.mxu0 %v582
      %591 = vmatprep.subr.bf16.mxu0 0
      %592 = vmatpush1.bf16.msra.mxu0 %v583
      %593 = vmatprep.subr.bf16.mxu0 0
      %594 = vmatpush1.bf16.msra.mxu0 0
      %595 = vmatprep.subr.bf16.mxu0 0
      %596 = vmatpush1.bf16.msra.mxu0 0
      %597 = vmatprep.subr.bf16.mxu0 0
      %598 = vmatpush1.bf16.msra.mxu0 0
      %599 = vmatprep.subr.bf16.mxu0 0
      %600 = vmatpush1.bf16.msra.mxu0 0
      %601 = vmatprep.subr.bf16.mxu0 0
      %602 = vmatpush1.bf16.msra.mxu0 0
      %603 = vmatprep.subr.bf16.mxu0 0
      %604 = vmatpush1.bf16.msra.mxu0 0
      %605 = vmatprep.subr.bf16.mxu0 0
      %606 = vmatpush1.bf16.msra.mxu0 0
      %607 = vmatprep.subr.bf16.mxu0 0
      %608 = vmatpush1.bf16.msra.mxu0 0
      %609 = vmatprep.subr.bf16.mxu0 0
      %610 = vmatpush1.bf16.msra.mxu0 0
      %611 = vmatprep.subr.bf16.mxu0 0
      %612 = vmatpush1.bf16.msra.mxu0 0
      %613 = vmatprep.subr.bf16.mxu0 0
      %614 = vmatpush1.bf16.msra.mxu0 0
      %615 = vmatprep.subr.bf16.mxu0 0
      %616 = vmatpush1.bf16.msra.mxu0 0
      %617 = vmatprep.subr.bf16.mxu0 0
      %618 = vmatpush1.bf16.msra.mxu0 0
      %619 = vmatprep.subr.bf16.mxu0 0
      %620 = vmatpush1.bf16.msra.mxu0 0
      %621 = vmatprep.mubr.bf16.mxu0 0
      %622 = vmatmul.mubr.bf16.gmra.mrb[0].mxu0 %v587
      %v623 = vpop.f32.mrb[0].mxu0
      %v624 = vadd.f32 0.0, %v623
      %v625 = vpop.f32.mrb[0].mxu0
      %v626 = vpop.f32.mrb[0].mxu0
      %v627 = vpop.f32.mrb[0].mxu0
      %628 = vdwg.mxu0
      %v629 = vadd.f32 %v568, %v624
      %v630 = vld [vmem:[#allocation3] sm:$0xff]
      %v631 = vsub.f32 0.0, %v629
      %v632 = vmul.f32 %v631, 1.442695
      %v633 = vpow.pop %v632
      %v634 = vadd.f32 %v633, 1.0
      %v635 = vrcp.pop %v634
      %v636 = vtanh.pop %v629
      %638 = vrot.lane.b32.xlu0 %v630, 32
      %v639 = vpop.permute.xlu0 %638
      %v641 = vmul.f32 %v635, %v639
      %643 = vrot.lane.b32.xlu0 %v636, 64
      %v644 = vpop.permute.xlu0 %643
      %v646 = vmul.f32 %v635, %v644
      %648 = vrot.lane.b32.xlu0 %v646, 32
      %v649 = vpop.permute.xlu0 %648
      %v651 = vadd.f32 %v641, %v649
      %v652 = vtanh.pop %v651
      %654 = vrot.lane.b32.xlu0 %v652, 64
      %v655 = vpop.permute.xlu0 %654
      %v657 = vmul.f32 %v635, %v655
      %659 = vrot.lane.b32.xlu0 %v651, 96
      %v660 = vpop.permute.xlu0 %659
      %662 = vst.msk [vmem:[#allocation3] sm:$0xff] %vm186, %v660
      %v663 = vpack.c.bf16 %v657, %v657
      %v665 = vunpack.c.l.b16 %v663
      %v666 = vpack.c.b16 %v665, %v665
      %667 = vrot.lane.b32.xlu0 %v666, 32
      %v668 = vpop.permute.xlu0 %667
      %670 = vst.msk [vmem:[#allocation2] sm:$0xf] %vm380, %v668
      %v671 = vld [vmem:[%s382] sm:$0xf]
      %v672 = vld [vmem:[%s382 + $0x4] sm:$0xf]
      %v673 = vld [vmem:[%s382 + $0x8] sm:$0xf]
      %v674 = vld [vmem:[%s382 + $0xc] sm:$0xf]
      %v675 = vld [vmem:[%s387] sm:$0xf]
      %v676 = vld [vmem:[%s389] sm:$0xf]
      %v677 = vld [vmem:[%s389 + $0x4] sm:$0xf]
      %v678 = vld [vmem:[%s389 + $0x8] sm:$0xf]
      %v679 = vld [vmem:[%s389 + $0xc] sm:$0xf]
      %v684 = vunpack.c.l.b16 %v676
      %v685 = vunpack.c.l.b16 %v677
      %v686 = vunpack.c.l.b16 %v678
      %v687 = vunpack.c.l.b16 %v679
      %v688 = vpack.c.b16 %v685, %v684
      %v689 = vpack.c.b16 %v687, %v686
      %v693 = vsel %vm186, %v675, 0
      %695 = vmatprep.subr.bf16.mxu0 0
      %696 = vmatpush1.bf16.msra.mxu0 %v688
      %697 = vmatprep.subr.bf16.mxu0 0
      %698 = vmatpush1.bf16.msra.mxu0 %v689
      %699 = vmatprep.subr.bf16.mxu0 0
      %700 = vmatpush1.bf16.msra.mxu0 0
      %701 = vmatprep.subr.bf16.mxu0 0
      %702 = vmatpush1.bf16.msra.mxu0 0
      %703 = vmatprep.subr.bf16.mxu0 0
      %704 = vmatpush1.bf16.msra.mxu0 0
      %705 = vmatprep.subr.bf16.mxu0 0
      %706 = vmatpush1.bf16.msra.mxu0 0
      %707 = vmatprep.subr.bf16.mxu0 0
      %708 = vmatpush1.bf16.msra.mxu0 0
      %709 = vmatprep.subr.bf16.mxu0 0
      %710 = vmatpush1.bf16.msra.mxu0 0
      %711 = vmatprep.subr.bf16.mxu0 0
      %712 = vmatpush1.bf16.msra.mxu0 0
      %713 = vmatprep.subr.bf16.mxu0 0
      %714 = vmatpush1.bf16.msra.mxu0 0
      %715 = vmatprep.subr.bf16.mxu0 0
      %716 = vmatpush1.bf16.msra.mxu0 0
      %717 = vmatprep.subr.bf16.mxu0 0
      %718 = vmatpush1.bf16.msra.mxu0 0
      %719 = vmatprep.subr.bf16.mxu0 0
      %720 = vmatpush1.bf16.msra.mxu0 0
      %721 = vmatprep.subr.bf16.mxu0 0
      %722 = vmatpush1.bf16.msra.mxu0 0
      %723 = vmatprep.subr.bf16.mxu0 0
      %724 = vmatpush1.bf16.msra.mxu0 0
      %725 = vmatprep.subr.bf16.mxu0 0
      %726 = vmatpush1.bf16.msra.mxu0 0
      %727 = vmatprep.mubr.bf16.mxu0 0
      %728 = vmatmul.mubr.bf16.gmra.mrb[0].mxu0 %v693
      %v729 = vpop.f32.mrb[0].mxu0
      %v730 = vadd.f32 0.0, %v729
      %v731 = vpop.f32.mrb[0].mxu0
      %v732 = vpop.f32.mrb[0].mxu0
      %v733 = vpop.f32.mrb[0].mxu0
      %734 = vdwg.mxu0
      %735 = vrot.lane.b32.xlu0 %v663, 32
      %v736 = vpop.permute.xlu0 %735
      %v741 = vunpack.c.l.b16 %v671
      %v742 = vunpack.c.l.b16 %v672
      %v743 = vunpack.c.l.b16 %v673
      %v744 = vunpack.c.l.b16 %v674
      %v745 = vpack.c.b16 %v742, %v741
      %v746 = vpack.c.b16 %v744, %v743
      %v750 = vsel %vm186, %v736, 0
      %752 = vmatprep.subr.bf16.mxu0 0
      %753 = vmatpush1.bf16.msra.mxu0 %v745
      %754 = vmatprep.subr.bf16.mxu0 0
      %755 = vmatpush1.bf16.msra.mxu0 %v746
      %756 = vmatprep.subr.bf16.mxu0 0
      %757 = vmatpush1.bf16.msra.mxu0 0
      %758 = vmatprep.subr.bf16.mxu0 0
      %759 = vmatpush1.bf16.msra.mxu0 0
      %760 = vmatprep.subr.bf16.mxu0 0
      %761 = vmatpush1.bf16.msra.mxu0 0
      %762 = vmatprep.subr.bf16.mxu0 0
      %763 = vmatpush1.bf16.msra.mxu0 0
      %764 = vmatprep.subr.bf16.mxu0 0
      %765 = vmatpush1.bf16.msra.mxu0 0
      %766 = vmatprep.subr.bf16.mxu0 0
      %767 = vmatpush1.bf16.msra.mxu0 0
      %768 = vmatprep.subr.bf16.mxu0 0
      %769 = vmatpush1.bf16.msra.mxu0 0
      %770 = vmatprep.subr.bf16.mxu0 0
      %771 = vmatpush1.bf16.msra.mxu0 0
      %772 = vmatprep.subr.bf16.mxu0 0
      %773 = vmatpush1.bf16.msra.mxu0 0
      %774 = vmatprep.subr.bf16.mxu0 0
      %775 = vmatpush1.bf16.msra.mxu0 0
      %776 = vmatprep.subr.bf16.mxu0 0
      %777 = vmatpush1.bf16.msra.mxu0 0
      %778 = vmatprep.subr.bf16.mxu0 0
      %779 = vmatpush1.bf16.msra.mxu0 0
      %780 = vmatprep.subr.bf16.mxu0 0
      %781 = vmatpush1.bf16.msra.mxu0 0
      %782 = vmatprep.subr.bf16.mxu0 0
      %783 = vmatpush1.bf16.msra.mxu0 0
      %784 = vmatprep.mubr.bf16.mxu0 0
      %785 = vmatmul.mubr.bf16.gmra.mrb[0].mxu0 %v750
      %v786 = vpop.f32.mrb[0].mxu0
      %v787 = vadd.f32 %v730, %v786
      %v788 = vpop.f32.mrb[0].mxu0
      %v789 = vpop.f32.mrb[0].mxu0
      %v790 = vpop.f32.mrb[0].mxu0
      %791 = vdwg.mxu0
      %v792 = vadd.f32 %v787, %v277
      %v793 = vld [vmem:[%s507] sm:$0xff]
      %v794 = vsub.f32 0.0, %v792
      %v795 = vmul.f32 %v794, 1.442695
      %v796 = vpow.pop %v795
      %v797 = vadd.f32 %v796, 1.0
      %v798 = vrcp.pop %v797
      %v799 = vtanh.pop %v792
      %801 = vrot.lane.b32.xlu0 %v793, 32
      %v802 = vpop.permute.xlu0 %801
      %v804 = vmul.f32 %v798, %v802
      %806 = vrot.lane.b32.xlu0 %v799, 64
      %v807 = vpop.permute.xlu0 %806
      %v809 = vmul.f32 %v798, %v807
      %811 = vrot.lane.b32.xlu0 %v809, 32
      %v812 = vpop.permute.xlu0 %811
      %v814 = vadd.f32 %v804, %v812
      %v815 = vtanh.pop %v814
      %817 = vrot.lane.b32.xlu0 %v815, 64
      %v818 = vpop.permute.xlu0 %817
      %v820 = vmul.f32 %v798, %v818
      %822 = vrot.lane.b32.xlu0 %v814, 96
      %v823 = vpop.permute.xlu0 %822
      %825 = vst.msk [vmem:[%s507] sm:$0xff] %vm186, %v823
      %v826 = vpack.c.bf16 %v820, %v820
      %v828 = vunpack.c.l.b16 %v826
      %v829 = vpack.c.b16 %v828, %v828
      %830 = vrot.lane.b32.xlu0 %v829, 32
      %v831 = vpop.permute.xlu0 %830
      %833 = vst.msk [vmem:[%s387] sm:$0xf] %vm380, %v831
      %s834 = sadd.s32 %s119, 1
      %v835 = vstv %s834
      %vm836 = vcmp.eq.s32.totalorder %v549, %v835
      %v837 = vsel %vm836, 1, 0
      %v838 = vcvt.s32.f32 %v837
      %v839 = vld [vmem:[#allocation4] sm:$0xff]
      %841 = vset.pattern.permute.xlu0 0
      %842 = vperm.xlu0 %841, %v838
      %v843 = vpop.permute.xlu0 %842
      %v845 = vmul.f32 %v843, %v820
      %847 = vrot.lane.b32.xlu0 %v845, 32
      %v848 = vpop.permute.xlu0 %847
      %v850 = vadd.f32 %v839, %v848
      %851 = vst.msk [vmem:[#allocation4] sm:$0xff] %vm186, %v850
      %s852 = scalar_lea.vmem [#allocation5], 16
      %v853 = vld [vmem:[%s852] sm:$0xff]
      %v854 = vld [vmem:[#allocation2] sm:$0xf]
      %v855 = vld [vmem:[#allocation14] sm:$0xf]
      %v856 = vld [vmem:[#allocation14 + $0x4] sm:$0xf]
      %v857 = vld [vmem:[#allocation14 + $0x8] sm:$0xf]
      %v858 = vld [vmem:[#allocation14 + $0xc] sm:$0xf]
      %v863 = vunpack.c.l.b16 %v855
      %v864 = vunpack.c.l.b16 %v856
      %v865 = vunpack.c.l.b16 %v857
      %v866 = vunpack.c.l.b16 %v858
      %v867 = vpack.c.b16 %v864, %v863
      %v868 = vpack.c.b16 %v866, %v865
      %v872 = vsel %vm186, %v854, 0
      %874 = vmatprep.subr.bf16.mxu0 0
      %875 = vmatpush1.bf16.msra.mxu0 %v867
      %876 = vmatprep.subr.bf16.mxu0 0
      %877 = vmatpush1.bf16.msra.mxu0 %v868
      %878 = vmatprep.subr.bf16.mxu0 0
      %879 = vmatpush1.bf16.msra.mxu0 0
      %880 = vmatprep.subr.bf16.mxu0 0
      %881 = vmatpush1.bf16.msra.mxu0 0
      %882 = vmatprep.subr.bf16.mxu0 0
      %883 = vmatpush1.bf16.msra.mxu0 0
      %884 = vmatprep.subr.bf16.mxu0 0
      %885 = vmatpush1.bf16.msra.mxu0 0
      %886 = vmatprep.subr.bf16.mxu0 0
      %887 = vmatpush1.bf16.msra.mxu0 0
      %888 = vmatprep.subr.bf16.mxu0 0
      %889 = vmatpush1.bf16.msra.mxu0 0
      %890 = vmatprep.subr.bf16.mxu0 0
      %891 = vmatpush1.bf16.msra.mxu0 0
      %892 = vmatprep.subr.bf16.mxu0 0
      %893 = vmatpush1.bf16.msra.mxu0 0
      %894 = vmatprep.subr.bf16.mxu0 0
      %895 = vmatpush1.bf16.msra.mxu0 0
      %896 = vmatprep.subr.bf16.mxu0 0
      %897 = vmatpush1.bf16.msra.mxu0 0
      %898 = vmatprep.subr.bf16.mxu0 0
      %899 = vmatpush1.bf16.msra.mxu0 0
      %900 = vmatprep.subr.bf16.mxu0 0
      %901 = vmatpush1.bf16.msra.mxu0 0
      %902 = vmatprep.subr.bf16.mxu0 0
      %903 = vmatpush1.bf16.msra.mxu0 0
      %904 = vmatprep.subr.bf16.mxu0 0
      %905 = vmatpush1.bf16.msra.mxu0 0
      %906 = vmatprep.mubr.bf16.mxu0 0
      %907 = vmatmul.mubr.bf16.gmra.mrb[0].mxu0 %v872
      %v908 = vpop.f32.mrb[0].mxu0
      %v909 = vadd.f32 0.0, %v908
      %v910 = vpop.f32.mrb[0].mxu0
      %v911 = vpop.f32.mrb[0].mxu0
      %v912 = vpop.f32.mrb[0].mxu0
      %913 = vdwg.mxu0
      %v914 = vadd.f32 %v853, %v909
      %v915 = vld [vmem:[#allocation3] sm:$0xff]
      %v916 = vsub.f32 0.0, %v914
      %v917 = vmul.f32 %v916, 1.442695
      %v918 = vpow.pop %v917
      %v919 = vadd.f32 %v918, 1.0
      %v920 = vrcp.pop %v919
      %v921 = vtanh.pop %v914
      %923 = vrot.lane.b32.xlu0 %v915, 32
      %v924 = vpop.permute.xlu0 %923
      %v926 = vmul.f32 %v920, %v924
      %928 = vrot.lane.b32.xlu0 %v921, 64
      %v929 = vpop.permute.xlu0 %928
      %v931 = vmul.f32 %v920, %v929
      %933 = vrot.lane.b32.xlu0 %v931, 32
      %v934 = vpop.permute.xlu0 %933
      %v936 = vadd.f32 %v926, %v934
      %v937 = vtanh.pop %v936
      %939 = vrot.lane.b32.xlu0 %v937, 64
      %v940 = vpop.permute.xlu0 %939
      %v942 = vmul.f32 %v920, %v940
      %944 = vrot.lane.b32.xlu0 %v936, 96
      %v945 = vpop.permute.xlu0 %944
      %947 = vst.msk [vmem:[#allocation3] sm:$0xff] %vm186, %v945
      %v948 = vpack.c.bf16 %v942, %v942
      %v950 = vunpack.c.l.b16 %v948
      %v951 = vpack.c.b16 %v950, %v950
      %952 = vrot.lane.b32.xlu0 %v951, 32
      %v953 = vpop.permute.xlu0 %952
      %955 = vst.msk [vmem:[#allocation2] sm:$0xf] %vm380, %v953
      %v956 = vld [vmem:[%s382] sm:$0xf]
      %v957 = vld [vmem:[%s382 + $0x4] sm:$0xf]
      %v958 = vld [vmem:[%s382 + $0x8] sm:$0xf]
      %v959 = vld [vmem:[%s382 + $0xc] sm:$0xf]
      %v960 = vld [vmem:[%s387] sm:$0xf]
      %v961 = vld [vmem:[%s389] sm:$0xf]
      %v962 = vld [vmem:[%s389 + $0x4] sm:$0xf]
      %v963 = vld [vmem:[%s389 + $0x8] sm:$0xf]
      %v964 = vld [vmem:[%s389 + $0xc] sm:$0xf]
      %v969 = vunpack.c.l.b16 %v961
      %v970 = vunpack.c.l.b16 %v962
      %v971 = vunpack.c.l.b16 %v963
      %v972 = vunpack.c.l.b16 %v964
      %v973 = vpack.c.b16 %v970, %v969
      %v974 = vpack.c.b16 %v972, %v971
      %v978 = vsel %vm186, %v960, 0
      %980 = vmatprep.subr.bf16.mxu0 0
      %981 = vmatpush1.bf16.msra.mxu0 %v973
      %982 = vmatprep.subr.bf16.mxu0 0
      %983 = vmatpush1.bf16.msra.mxu0 %v974
      %984 = vmatprep.subr.bf16.mxu0 0
      %985 = vmatpush1.bf16.msra.mxu0 0
      %986 = vmatprep.subr.bf16.mxu0 0
      %987 = vmatpush1.bf16.msra.mxu0 0
      %988 = vmatprep.subr.bf16.mxu0 0
      %989 = vmatpush1.bf16.msra.mxu0 0
      %990 = vmatprep.subr.bf16.mxu0 0
      %991 = vmatpush1.bf16.msra.mxu0 0
      %992 = vmatprep.subr.bf16.mxu0 0
      %993 = vmatpush1.bf16.msra.mxu0 0
      %994 = vmatprep.subr.bf16.mxu0 0
      %995 = vmatpush1.bf16.msra.mxu0 0
      %996 = vmatprep.subr.bf16.mxu0 0
      %997 = vmatpush1.bf16.msra.mxu0 0
      %998 = vmatprep.subr.bf16.mxu0 0
      %999 = vmatpush1.bf16.msra.mxu0 0
      %1000 = vmatprep.subr.bf16.mxu0 0
      %1001 = vmatpush1.bf16.msra.mxu0 0
      %1002 = vmatprep.subr.bf16.mxu0 0
      %1003 = vmatpush1.bf16.msra.mxu0 0
      %1004 = vmatprep.subr.bf16.mxu0 0
      %1005 = vmatpush1.bf16.msra.mxu0 0
      %1006 = vmatprep.subr.bf16.mxu0 0
      %1007 = vmatpush1.bf16.msra.mxu0 0
      %1008 = vmatprep.subr.bf16.mxu0 0
      %1009 = vmatpush1.bf16.msra.mxu0 0
      %1010 = vmatprep.subr.bf16.mxu0 0
      %1011 = vmatpush1.bf16.msra.mxu0 0
      %1012 = vmatprep.mubr.bf16.mxu0 0
      %1013 = vmatmul.mubr.bf16.gmra.mrb[0].mxu0 %v978
      %v1014 = vpop.f32.mrb[0].mxu0
      %v1015 = vadd.f32 0.0, %v1014
      %v1016 = vpop.f32.mrb[0].mxu0
      %v1017 = vpop.f32.mrb[0].mxu0
      %v1018 = vpop.f32.mrb[0].mxu0
      %1019 = vdwg.mxu0
      %1020 = vrot.lane.b32.xlu0 %v948, 32
      %v1021 = vpop.permute.xlu0 %1020
      %v1026 = vunpack.c.l.b16 %v956
      %v1027 = vunpack.c.l.b16 %v957
      %v1028 = vunpack.c.l.b16 %v958
      %v1029 = vunpack.c.l.b16 %v959
      %v1030 = vpack.c.b16 %v1027, %v1026
      %v1031 = vpack.c.b16 %v1029, %v1028
      %v1035 = vsel %vm186, %v1021, 0
      %1037 = vmatprep.subr.bf16.mxu0 0
      %1038 = vmatpush1.bf16.msra.mxu0 %v1030
      %1039 = vmatprep.subr.bf16.mxu0 0
      %1040 = vmatpush1.bf16.msra.mxu0 %v1031
      %1041 = vmatprep.subr.bf16.mxu0 0
      %1042 = vmatpush1.bf16.msra.mxu0 0
      %1043 = vmatprep.subr.bf16.mxu0 0
      %1044 = vmatpush1.bf16.msra.mxu0 0
      %1045 = vmatprep.subr.bf16.mxu0 0
      %1046 = vmatpush1.bf16.msra.mxu0 0
      %1047 = vmatprep.subr.bf16.mxu0 0
      %1048 = vmatpush1.bf16.msra.mxu0 0
      %1049 = vmatprep.subr.bf16.mxu0 0
      %1050 = vmatpush1.bf16.msra.mxu0 0
      %1051 = vmatprep.subr.bf16.mxu0 0
      %1052 = vmatpush1.bf16.msra.mxu0 0
      %1053 = vmatprep.subr.bf16.mxu0 0
      %1054 = vmatpush1.bf16.msra.mxu0 0
      %1055 = vmatprep.subr.bf16.mxu0 0
      %1056 = vmatpush1.bf16.msra.mxu0 0
      %1057 = vmatprep.subr.bf16.mxu0 0
      %1058 = vmatpush1.bf16.msra.mxu0 0
      %1059 = vmatprep.subr.bf16.mxu0 0
      %1060 = vmatpush1.bf16.msra.mxu0 0
      %1061 = vmatprep.subr.bf16.mxu0 0
      %1062 = vmatpush1.bf16.msra.mxu0 0
      %1063 = vmatprep.subr.bf16.mxu0 0
      %1064 = vmatpush1.bf16.msra.mxu0 0
      %1065 = vmatprep.subr.bf16.mxu0 0
      %1066 = vmatpush1.bf16.msra.mxu0 0
      %1067 = vmatprep.subr.bf16.mxu0 0
      %1068 = vmatpush1.bf16.msra.mxu0 0
      %1069 = vmatprep.mubr.bf16.mxu0 0
      %1070 = vmatmul.mubr.bf16.gmra.mrb[0].mxu0 %v1035
      %v1071 = vpop.f32.mrb[0].mxu0
      %v1072 = vadd.f32 %v1015, %v1071
      %v1073 = vpop.f32.mrb[0].mxu0
      %v1074 = vpop.f32.mrb[0].mxu0
      %v1075 = vpop.f32.mrb[0].mxu0
      %1076 = vdwg.mxu0
      %v1077 = vadd.f32 %v1072, %v277
      %v1078 = vld [vmem:[%s507] sm:$0xff]
      %v1079 = vsub.f32 0.0, %v1077
      %v1080 = vmul.f32 %v1079, 1.442695
      %v1081 = vpow.pop %v1080
      %v1082 = vadd.f32 %v1081, 1.0
      %v1083 = vrcp.pop %v1082
      %v1084 = vtanh.pop %v1077
      %1086 = vrot.lane.b32.xlu0 %v1078, 32
      %v1087 = vpop.permute.xlu0 %1086
      %v1089 = vmul.f32 %v1083, %v1087
      %1091 = vrot.lane.b32.xlu0 %v1084, 64
      %v1092 = vpop.permute.xlu0 %1091
      %v1094 = vmul.f32 %v1083, %v1092
      %1096 = vrot.lane.b32.xlu0 %v1094, 32
      %v1097 = vpop.permute.xlu0 %1096
      %v1099 = vadd.f32 %v1089, %v1097
      %v1100 = vtanh.pop %v1099
      %1102 = vrot.lane.b32.xlu0 %v1100, 64
      %v1103 = vpop.permute.xlu0 %1102
      %v1105 = vmul.f32 %v1083, %v1103
      %1107 = vrot.lane.b32.xlu0 %v1099, 96
      %v1108 = vpop.permute.xlu0 %1107
      %1110 = vst.msk [vmem:[%s507] sm:$0xff] %vm186, %v1108
      %v1111 = vpack.c.bf16 %v1105, %v1105
      %v1113 = vunpack.c.l.b16 %v1111
      %v1114 = vpack.c.b16 %v1113, %v1113
      %1115 = vrot.lane.b32.xlu0 %v1114, 32
      %v1116 = vpop.permute.xlu0 %1115
      %1118 = vst.msk [vmem:[%s387] sm:$0xf] %vm380, %v1116
      %s1119 = sadd.s32 %s119, 2
      %v1120 = vstv %s1119
      %vm1121 = vcmp.eq.s32.totalorder %v549, %v1120
      %v1122 = vsel %vm1121, 1, 0
      %v1123 = vcvt.s32.f32 %v1122
      %v1124 = vld [vmem:[#allocation4] sm:$0xff]
      %1126 = vset.pattern.permute.xlu0 0
      %1127 = vperm.xlu0 %1126, %v1123
      %v1128 = vpop.permute.xlu0 %1127
      %v1130 = vmul.f32 %v1128, %v1105
      %1132 = vrot.lane.b32.xlu0 %v1130, 32
      %v1133 = vpop.permute.xlu0 %1132
      %v1135 = vadd.f32 %v1124, %v1133
      %1136 = vst.msk [vmem:[#allocation4] sm:$0xff] %vm186, %v1135
      %s1137 = scalar_lea.vmem [#allocation5], 24
      %v1138 = vld [vmem:[%s1137] sm:$0xff]
      %v1139 = vld [vmem:[#allocation2] sm:$0xf]
      %v1140 = vld [vmem:[#allocation14] sm:$0xf]
      %v1141 = vld [vmem:[#allocation14 + $0x4] sm:$0xf]
      %v1142 = vld [vmem:[#allocation14 + $0x8] sm:$0xf]
      %v1143 = vld [vmem:[#allocation14 + $0xc] sm:$0xf]
      %v1148 = vunpack.c.l.b16 %v1140
      %v1149 = vunpack.c.l.b16 %v1141
      %v1150 = vunpack.c.l.b16 %v1142
      %v1151 = vunpack.c.l.b16 %v1143
      %v1152 = vpack.c.b16 %v1149, %v1148
      %v1153 = vpack.c.b16 %v1151, %v1150
      %v1157 = vsel %vm186, %v1139, 0
      %1159 = vmatprep.subr.bf16.mxu0 0
      %1160 = vmatpush1.bf16.msra.mxu0 %v1152
      %1161 = vmatprep.subr.bf16.mxu0 0
      %1162 = vmatpush1.bf16.msra.mxu0 %v1153
      %1163 = vmatprep.subr.bf16.mxu0 0
      %1164 = vmatpush1.bf16.msra.mxu0 0
      %1165 = vmatprep.subr.bf16.mxu0 0
      %1166 = vmatpush1.bf16.msra.mxu0 0
      %1167 = vmatprep.subr.bf16.mxu0 0
      %1168 = vmatpush1.bf16.msra.mxu0 0
      %1169 = vmatprep.subr.bf16.mxu0 0
      %1170 = vmatpush1.bf16.msra.mxu0 0
      %1171 = vmatprep.subr.bf16.mxu0 0
      %1172 = vmatpush1.bf16.msra.mxu0 0
      %1173 = vmatprep.subr.bf16.mxu0 0
      %1174 = vmatpush1.bf16.msra.mxu0 0
      %1175 = vmatprep.subr.bf16.mxu0 0
      %1176 = vmatpush1.bf16.msra.mxu0 0
      %1177 = vmatprep.subr.bf16.mxu0 0
      %1178 = vmatpush1.bf16.msra.mxu0 0
      %1179 = vmatprep.subr.bf16.mxu0 0
      %1180 = vmatpush1.bf16.msra.mxu0 0
      %1181 = vmatprep.subr.bf16.mxu0 0
      %1182 = vmatpush1.bf16.msra.mxu0 0
      %1183 = vmatprep.subr.bf16.mxu0 0
      %1184 = vmatpush1.bf16.msra.mxu0 0
      %1185 = vmatprep.subr.bf16.mxu0 0
      %1186 = vmatpush1.bf16.msra.mxu0 0
      %1187 = vmatprep.subr.bf16.mxu0 0
      %1188 = vmatpush1.bf16.msra.mxu0 0
      %1189 = vmatprep.subr.bf16.mxu0 0
      %1190 = vmatpush1.bf16.msra.mxu0 0
      %1191 = vmatprep.mubr.bf16.mxu0 0
      %1192 = vmatmul.mubr.bf16.gmra.mrb[0].mxu0 %v1157
      %v1193 = vpop.f32.mrb[0].mxu0
      %v1194 = vadd.f32 0.0, %v1193
      %v1195 = vpop.f32.mrb[0].mxu0
      %v1196 = vpop.f32.mrb[0].mxu0
      %v1197 = vpop.f32.mrb[0].mxu0
      %1198 = vdwg.mxu0
      %v1199 = vadd.f32 %v1138, %v1194
      %v1200 = vld [vmem:[#allocation3] sm:$0xff]
      %v1201 = vsub.f32 0.0, %v1199
      %v1202 = vmul.f32 %v1201, 1.442695
      %v1203 = vpow.pop %v1202
      %v1204 = vadd.f32 %v1203, 1.0
      %v1205 = vrcp.pop %v1204
      %v1206 = vtanh.pop %v1199
      %1208 = vrot.lane.b32.xlu0 %v1200, 32
      %v1209 = vpop.permute.xlu0 %1208
      %v1211 = vmul.f32 %v1205, %v1209
      %1213 = vrot.lane.b32.xlu0 %v1206, 64
      %v1214 = vpop.permute.xlu0 %1213
      %v1216 = vmul.f32 %v1205, %v1214
      %1218 = vrot.lane.b32.xlu0 %v1216, 32
      %v1219 = vpop.permute.xlu0 %1218
      %v1221 = vadd.f32 %v1211, %v1219
      %v1222 = vtanh.pop %v1221
      %1224 = vrot.lane.b32.xlu0 %v1222, 64
      %v1225 = vpop.permute.xlu0 %1224
      %v1227 = vmul.f32 %v1205, %v1225
      %1229 = vrot.lane.b32.xlu0 %v1221, 96
      %v1230 = vpop.permute.xlu0 %1229
      %1232 = vst.msk [vmem:[#allocation3] sm:$0xff] %vm186, %v1230
      %v1233 = vpack.c.bf16 %v1227, %v1227
      %v1235 = vunpack.c.l.b16 %v1233
      %v1236 = vpack.c.b16 %v1235, %v1235
      %1237 = vrot.lane.b32.xlu0 %v1236, 32
      %v1238 = vpop.permute.xlu0 %1237
      %1240 = vst.msk [vmem:[#allocation2] sm:$0xf] %vm380, %v1238
      %v1241 = vld [vmem:[%s382] sm:$0xf]
      %v1242 = vld [vmem:[%s382 + $0x4] sm:$0xf]
      %v1243 = vld [vmem:[%s382 + $0x8] sm:$0xf]
      %v1244 = vld [vmem:[%s382 + $0xc] sm:$0xf]
      %v1245 = vld [vmem:[%s387] sm:$0xf]
      %v1246 = vld [vmem:[%s389] sm:$0xf]
      %v1247 = vld [vmem:[%s389 + $0x4] sm:$0xf]
      %v1248 = vld [vmem:[%s389 + $0x8] sm:$0xf]
      %v1249 = vld [vmem:[%s389 + $0xc] sm:$0xf]
      %v1254 = vunpack.c.l.b16 %v1246
      %v1255 = vunpack.c.l.b16 %v1247
      %v1256 = vunpack.c.l.b16 %v1248
      %v1257 = vunpack.c.l.b16 %v1249
      %v1258 = vpack.c.b16 %v1255, %v1254
      %v1259 = vpack.c.b16 %v1257, %v1256
      %v1263 = vsel %vm186, %v1245, 0
      %1265 = vmatprep.subr.bf16.mxu0 0
      %1266 = vmatpush1.bf16.msra.mxu0 %v1258
      %1267 = vmatprep.subr.bf16.mxu0 0
      %1268 = vmatpush1.bf16.msra.mxu0 %v1259
      %1269 = vmatprep.subr.bf16.mxu0 0
      %1270 = vmatpush1.bf16.msra.mxu0 0
      %1271 = vmatprep.subr.bf16.mxu0 0
      %1272 = vmatpush1.bf16.msra.mxu0 0
      %1273 = vmatprep.subr.bf16.mxu0 0
      %1274 = vmatpush1.bf16.msra.mxu0 0
      %1275 = vmatprep.subr.bf16.mxu0 0
      %1276 = vmatpush1.bf16.msra.mxu0 0
      %1277 = vmatprep.subr.bf16.mxu0 0
      %1278 = vmatpush1.bf16.msra.mxu0 0
      %1279 = vmatprep.subr.bf16.mxu0 0
      %1280 = vmatpush1.bf16.msra.mxu0 0
      %1281 = vmatprep.subr.bf16.mxu0 0
      %1282 = vmatpush1.bf16.msra.mxu0 0
      %1283 = vmatprep.subr.bf16.mxu0 0
      %1284 = vmatpush1.bf16.msra.mxu0 0
      %1285 = vmatprep.subr.bf16.mxu0 0
      %1286 = vmatpush1.bf16.msra.mxu0 0
      %1287 = vmatprep.subr.bf16.mxu0 0
      %1288 = vmatpush1.bf16.msra.mxu0 0
      %1289 = vmatprep.subr.bf16.mxu0 0
      %1290 = vmatpush1.bf16.msra.mxu0 0
      %1291 = vmatprep.subr.bf16.mxu0 0
      %1292 = vmatpush1.bf16.msra.mxu0 0
      %1293 = vmatprep.subr.bf16.mxu0 0
      %1294 = vmatpush1.bf16.msra.mxu0 0
      %1295 = vmatprep.subr.bf16.mxu0 0
      %1296 = vmatpush1.bf16.msra.mxu0 0
      %1297 = vmatprep.mubr.bf16.mxu0 0
      %1298 = vmatmul.mubr.bf16.gmra.mrb[0].mxu0 %v1263
      %v1299 = vpop.f32.mrb[0].mxu0
      %v1300 = vadd.f32 0.0, %v1299
      %v1301 = vpop.f32.mrb[0].mxu0
      %v1302 = vpop.f32.mrb[0].mxu0
      %v1303 = vpop.f32.mrb[0].mxu0
      %1304 = vdwg.mxu0
      %1305 = vrot.lane.b32.xlu0 %v1233, 32
      %v1306 = vpop.permute.xlu0 %1305
      %v1311 = vunpack.c.l.b16 %v1241
      %v1312 = vunpack.c.l.b16 %v1242
      %v1313 = vunpack.c.l.b16 %v1243
      %v1314 = vunpack.c.l.b16 %v1244
      %v1315 = vpack.c.b16 %v1312, %v1311
      %v1316 = vpack.c.b16 %v1314, %v1313
      %v1320 = vsel %vm186, %v1306, 0
      %1322 = vmatprep.subr.bf16.mxu0 0
      %1323 = vmatpush1.bf16.msra.mxu0 %v1315
      %1324 = vmatprep.subr.bf16.mxu0 0
      %1325 = vmatpush1.bf16.msra.mxu0 %v1316
      %1326 = vmatprep.subr.bf16.mxu0 0
      %1327 = vmatpush1.bf16.msra.mxu0 0
      %1328 = vmatprep.subr.bf16.mxu0 0
      %1329 = vmatpush1.bf16.msra.mxu0 0
      %1330 = vmatprep.subr.bf16.mxu0 0
      %1331 = vmatpush1.bf16.msra.mxu0 0
      %1332 = vmatprep.subr.bf16.mxu0 0
      %1333 = vmatpush1.bf16.msra.mxu0 0
      %1334 = vmatprep.subr.bf16.mxu0 0
      %1335 = vmatpush1.bf16.msra.mxu0 0
      %1336 = vmatprep.subr.bf16.mxu0 0
      %1337 = vmatpush1.bf16.msra.mxu0 0
      %1338 = vmatprep.subr.bf16.mxu0 0
      %1339 = vmatpush1.bf16.msra.mxu0 0
      %1340 = vmatprep.subr.bf16.mxu0 0
      %1341 = vmatpush1.bf16.msra.mxu0 0
      %1342 = vmatprep.subr.bf16.mxu0 0
      %1343 = vmatpush1.bf16.msra.mxu0 0
      %1344 = vmatprep.subr.bf16.mxu0 0
      %1345 = vmatpush1.bf16.msra.mxu0 0
      %1346 = vmatprep.subr.bf16.mxu0 0
      %1347 = vmatpush1.bf16.msra.mxu0 0
      %1348 = vmatprep.subr.bf16.mxu0 0
      %1349 = vmatpush1.bf16.msra.mxu0 0
      %1350 = vmatprep.subr.bf16.mxu0 0
      %1351 = vmatpush1.bf16.msra.mxu0 0
      %1352 = vmatprep.subr.bf16.mxu0 0
      %1353 = vmatpush1.bf16.msra.mxu0 0
      %1354 = vmatprep.mubr.bf16.mxu0 0
      %1355 = vmatmul.mubr.bf16.gmra.mrb[0].mxu0 %v1320
      %v1356 = vpop.f32.mrb[0].mxu0
      %v1357 = vadd.f32 %v1300, %v1356
      %v1358 = vpop.f32.mrb[0].mxu0
      %v1359 = vpop.f32.mrb[0].mxu0
      %v1360 = vpop.f32.mrb[0].mxu0
      %1361 = vdwg.mxu0
      %v1362 = vadd.f32 %v1357, %v277
      %v1363 = vld [vmem:[%s507] sm:$0xff]
      %v1364 = vsub.f32 0.0, %v1362
      %v1365 = vmul.f32 %v1364, 1.442695
      %v1366 = vpow.pop %v1365
      %v1367 = vadd.f32 %v1366, 1.0
      %v1368 = vrcp.pop %v1367
      %v1369 = vtanh.pop %v1362
      %1371 = vrot.lane.b32.xlu0 %v1363, 32
      %v1372 = vpop.permute.xlu0 %1371
      %v1374 = vmul.f32 %v1368, %v1372
      %1376 = vrot.lane.b32.xlu0 %v1369, 64
      %v1377 = vpop.permute.xlu0 %1376
      %v1379 = vmul.f32 %v1368, %v1377
      %1381 = vrot.lane.b32.xlu0 %v1379, 32
      %v1382 = vpop.permute.xlu0 %1381
      %v1384 = vadd.f32 %v1374, %v1382
      %v1385 = vtanh.pop %v1384
      %1387 = vrot.lane.b32.xlu0 %v1385, 64
      %v1388 = vpop.permute.xlu0 %1387
      %v1390 = vmul.f32 %v1368, %v1388
      %1392 = vrot.lane.b32.xlu0 %v1384, 96
      %v1393 = vpop.permute.xlu0 %1392
      %1395 = vst.msk [vmem:[%s507] sm:$0xff] %vm186, %v1393
      %v1396 = vpack.c.bf16 %v1390, %v1390
      %v1398 = vunpack.c.l.b16 %v1396
      %v1399 = vpack.c.b16 %v1398, %v1398
      %1400 = vrot.lane.b32.xlu0 %v1399, 32
      %v1401 = vpop.permute.xlu0 %1400
      %1403 = vst.msk [vmem:[%s387] sm:$0xf] %vm380, %v1401
      %s1404 = sadd.s32 %s119, 3
      %v1405 = vstv %s1404
      %vm1406 = vcmp.eq.s32.totalorder %v549, %v1405
      %v1407 = vsel %vm1406, 1, 0
      %v1408 = vcvt.s32.f32 %v1407
      %v1409 = vld [vmem:[#allocation4] sm:$0xff]
      %1411 = vset.pattern.permute.xlu0 0
      %1412 = vperm.xlu0 %1411, %v1408
      %v1413 = vpop.permute.xlu0 %1412
      %v1415 = vmul.f32 %v1413, %v1390
      %1417 = vrot.lane.b32.xlu0 %v1415, 32
      %v1418 = vpop.permute.xlu0 %1417
      %v1420 = vadd.f32 %v1409, %v1418
      %1421 = vst.msk [vmem:[#allocation4] sm:$0xff] %vm186, %v1420
      %s1422 = scalar_lea.vmem [#allocation5], 32
      %v1423 = vld [vmem:[%s1422] sm:$0xff]
      %v1424 = vld [vmem:[#allocation2] sm:$0xf]
      %v1425 = vld [vmem:[#allocation14] sm:$0xf]
      %v1426 = vld [vmem:[#allocation14 + $0x4] sm:$0xf]
      %v1427 = vld [vmem:[#allocation14 + $0x8] sm:$0xf]
      %v1428 = vld [vmem:[#allocation14 + $0xc] sm:$0xf]
      %v1433 = vunpack.c.l.b16 %v1425
      %v1434 = vunpack.c.l.b16 %v1426
      %v1435 = vunpack.c.l.b16 %v1427
      %v1436 = vunpack.c.l.b16 %v1428
      %v1437 = vpack.c.b16 %v1434, %v1433
      %v1438 = vpack.c.b16 %v1436, %v1435
      %v1442 = vsel %vm186, %v1424, 0
      %1444 = vmatprep.subr.bf16.mxu0 0
      %1445 = vmatpush1.bf16.msra.mxu0 %v1437
      %1446 = vmatprep.subr.bf16.mxu0 0
      %1447 = vmatpush1.bf16.msra.mxu0 %v1438
      %1448 = vmatprep.subr.bf16.mxu0 0
      %1449 = vmatpush1.bf16.msra.mxu0 0
      %1450 = vmatprep.subr.bf16.mxu0 0
      %1451 = vmatpush1.bf16.msra.mxu0 0
      %1452 = vmatprep.subr.bf16.mxu0 0
      %1453 = vmatpush1.bf16.msra.mxu0 0
      %1454 = vmatprep.subr.bf16.mxu0 0
      %1455 = vmatpush1.bf16.msra.mxu0 0
      %1456 = vmatprep.subr.bf16.mxu0 0
      %1457 = vmatpush1.bf16.msra.mxu0 0
      %1458 = vmatprep.subr.bf16.mxu0 0
      %1459 = vmatpush1.bf16.msra.mxu0 0
      %1460 = vmatprep.subr.bf16.mxu0 0
      %1461 = vmatpush1.bf16.msra.mxu0 0
      %1462 = vmatprep.subr.bf16.mxu0 0
      %1463 = vmatpush1.bf16.msra.mxu0 0
      %1464 = vmatprep.subr.bf16.mxu0 0
      %1465 = vmatpush1.bf16.msra.mxu0 0
      %1466 = vmatprep.subr.bf16.mxu0 0
      %1467 = vmatpush1.bf16.msra.mxu0 0
      %1468 = vmatprep.subr.bf16.mxu0 0
      %1469 = vmatpush1.bf16.msra.mxu0 0
      %1470 = vmatprep.subr.bf16.mxu0 0
      %1471 = vmatpush1.bf16.msra.mxu0 0
      %1472 = vmatprep.subr.bf16.mxu0 0
      %1473 = vmatpush1.bf16.msra.mxu0 0
      %1474 = vmatprep.subr.bf16.mxu0 0
      %1475 = vmatpush1.bf16.msra.mxu0 0
      %1476 = vmatprep.mubr.bf16.mxu0 0
      %1477 = vmatmul.mubr.bf16.gmra.mrb[0].mxu0 %v1442
      %v1478 = vpop.f32.mrb[0].mxu0
      %v1479 = vadd.f32 0.0, %v1478
      %v1480 = vpop.f32.mrb[0].mxu0
      %v1481 = vpop.f32.mrb[0].mxu0
      %v1482 = vpop.f32.mrb[0].mxu0
      %1483 = vdwg.mxu0
      %v1484 = vadd.f32 %v1423, %v1479
      %v1485 = vld [vmem:[#allocation3] sm:$0xff]
      %v1486 = vsub.f32 0.0, %v1484
      %v1487 = vmul.f32 %v1486, 1.442695
      %v1488 = vpow.pop %v1487
      %v1489 = vadd.f32 %v1488, 1.0
      %v1490 = vrcp.pop %v1489
      %v1491 = vtanh.pop %v1484
      %1493 = vrot.lane.b32.xlu0 %v1485, 32
      %v1494 = vpop.permute.xlu0 %1493
      %v1496 = vmul.f32 %v1490, %v1494
      %1498 = vrot.lane.b32.xlu0 %v1491, 64
      %v1499 = vpop.permute.xlu0 %1498
      %v1501 = vmul.f32 %v1490, %v1499
      %1503 = vrot.lane.b32.xlu0 %v1501, 32
      %v1504 = vpop.permute.xlu0 %1503
      %v1506 = vadd.f32 %v1496, %v1504
      %v1507 = vtanh.pop %v1506
      %1509 = vrot.lane.b32.xlu0 %v1507, 64
      %v1510 = vpop.permute.xlu0 %1509
      %v1512 = vmul.f32 %v1490, %v1510
      %1514 = vrot.lane.b32.xlu0 %v1506, 96
      %v1515 = vpop.permute.xlu0 %1514
      %1517 = vst.msk [vmem:[#allocation3] sm:$0xff] %vm186, %v1515
      %v1518 = vpack.c.bf16 %v1512, %v1512
      %v1520 = vunpack.c.l.b16 %v1518
      %v1521 = vpack.c.b16 %v1520, %v1520
      %1522 = vrot.lane.b32.xlu0 %v1521, 32
      %v1523 = vpop.permute.xlu0 %1522
      %1525 = vst.msk [vmem:[#allocation2] sm:$0xf] %vm380, %v1523
      %v1526 = vld [vmem:[%s382] sm:$0xf]
      %v1527 = vld [vmem:[%s382 + $0x4] sm:$0xf]
      %v1528 = vld [vmem:[%s382 + $0x8] sm:$0xf]
      %v1529 = vld [vmem:[%s382 + $0xc] sm:$0xf]
      %v1530 = vld [vmem:[%s387] sm:$0xf]
      %v1531 = vld [vmem:[%s389] sm:$0xf]
      %v1532 = vld [vmem:[%s389 + $0x4] sm:$0xf]
      %v1533 = vld [vmem:[%s389 + $0x8] sm:$0xf]
      %v1534 = vld [vmem:[%s389 + $0xc] sm:$0xf]
      %v1539 = vunpack.c.l.b16 %v1531
      %v1540 = vunpack.c.l.b16 %v1532
      %v1541 = vunpack.c.l.b16 %v1533
      %v1542 = vunpack.c.l.b16 %v1534
      %v1543 = vpack.c.b16 %v1540, %v1539
      %v1544 = vpack.c.b16 %v1542, %v1541
      %v1548 = vsel %vm186, %v1530, 0
      %1550 = vmatprep.subr.bf16.mxu0 0
      %1551 = vmatpush1.bf16.msra.mxu0 %v1543
      %1552 = vmatprep.subr.bf16.mxu0 0
      %1553 = vmatpush1.bf16.msra.mxu0 %v1544
      %1554 = vmatprep.subr.bf16.mxu0 0
      %1555 = vmatpush1.bf16.msra.mxu0 0
      %1556 = vmatprep.subr.bf16.mxu0 0
      %1557 = vmatpush1.bf16.msra.mxu0 0
      %1558 = vmatprep.subr.bf16.mxu0 0
      %1559 = vmatpush1.bf16.msra.mxu0 0
      %1560 = vmatprep.subr.bf16.mxu0 0
      %1561 = vmatpush1.bf16.msra.mxu0 0
      %1562 = vmatprep.subr.bf16.mxu0 0
      %1563 = vmatpush1.bf16.msra.mxu0 0
      %1564 = vmatprep.subr.bf16.mxu0 0
      %1565 = vmatpush1.bf16.msra.mxu0 0
      %1566 = vmatprep.subr.bf16.mxu0 0
      %1567 = vmatpush1.bf16.msra.mxu0 0
      %1568 = vmatprep.subr.bf16.mxu0 0
      %1569 = vmatpush1.bf16.msra.mxu0 0
      %1570 = vmatprep.subr.bf16.mxu0 0
      %1571 = vmatpush1.bf16.msra.mxu0 0
      %1572 = vmatprep.subr.bf16.mxu0 0
      %1573 = vmatpush1.bf16.msra.mxu0 0
      %1574 = vmatprep.subr.bf16.mxu0 0
      %1575 = vmatpush1.bf16.msra.mxu0 0
      %1576 = vmatprep.subr.bf16.mxu0 0
      %1577 = vmatpush1.bf16.msra.mxu0 0
      %1578 = vmatprep.subr.bf16.mxu0 0
      %1579 = vmatpush1.bf16.msra.mxu0 0
      %1580 = vmatprep.subr.bf16.mxu0 0
      %1581 = vmatpush1.bf16.msra.mxu0 0
      %1582 = vmatprep.mubr.bf16.mxu0 0
      %1583 = vmatmul.mubr.bf16.gmra.mrb[0].mxu0 %v1548
      %v1584 = vpop.f32.mrb[0].mxu0
      %v1585 = vadd.f32 0.0, %v1584
      %v1586 = vpop.f32.mrb[0].mxu0
      %v1587 = vpop.f32.mrb[0].mxu0
      %v1588 = vpop.f32.mrb[0].mxu0
      %1589 = vdwg.mxu0
      %1590 = vrot.lane.b32.xlu0 %v1518, 32
      %v1591 = vpop.permute.xlu0 %1590
      %v1596 = vunpack.c.l.b16 %v1526
      %v1597 = vunpack.c.l.b16 %v1527
      %v1598 = vunpack.c.l.b16 %v1528
      %v1599 = vunpack.c.l.b16 %v1529
      %v1600 = vpack.c.b16 %v1597, %v1596
      %v1601 = vpack.c.b16 %v1599, %v1598
      %v1605 = vsel %vm186, %v1591, 0
      %1607 = vmatprep.subr.bf16.mxu0 0
      %1608 = vmatpush1.bf16.msra.mxu0 %v1600
      %1609 = vmatprep.subr.bf16.mxu0 0
      %1610 = vmatpush1.bf16.msra.mxu0 %v1601
      %1611 = vmatprep.subr.bf16.mxu0 0
      %1612 = vmatpush1.bf16.msra.mxu0 0
      %1613 = vmatprep.subr.bf16.mxu0 0
      %1614 = vmatpush1.bf16.msra.mxu0 0
      %1615 = vmatprep.subr.bf16.mxu0 0
      %1616 = vmatpush1.bf16.msra.mxu0 0
      %1617 = vmatprep.subr.bf16.mxu0 0
      %1618 = vmatpush1.bf16.msra.mxu0 0
      %1619 = vmatprep.subr.bf16.mxu0 0
      %1620 = vmatpush1.bf16.msra.mxu0 0
      %1621 = vmatprep.subr.bf16.mxu0 0
      %1622 = vmatpush1.bf16.msra.mxu0 0
      %1623 = vmatprep.subr.bf16.mxu0 0
      %1624 = vmatpush1.bf16.msra.mxu0 0
      %1625 = vmatprep.subr.bf16.mxu0 0
      %1626 = vmatpush1.bf16.msra.mxu0 0
      %1627 = vmatprep.subr.bf16.mxu0 0
      %1628 = vmatpush1.bf16.msra.mxu0 0
      %1629 = vmatprep.subr.bf16.mxu0 0
      %1630 = vmatpush1.bf16.msra.mxu0 0
      %1631 = vmatprep.subr.bf16.mxu0 0
      %1632 = vmatpush1.bf16.msra.mxu0 0
      %1633 = vmatprep.subr.bf16.mxu0 0
      %1634 = vmatpush1.bf16.msra.mxu0 0
      %1635 = vmatprep.subr.bf16.mxu0 0
      %1636 = vmatpush1.bf16.msra.mxu0 0
      %1637 = vmatprep.subr.bf16.mxu0 0
      %1638 = vmatpush1.bf16.msra.mxu0 0
      %1639 = vmatprep.mubr.bf16.mxu0 0
      %1640 = vmatmul.mubr.bf16.gmra.mrb[0].mxu0 %v1605
      %v1641 = vpop.f32.mrb[0].mxu0
      %v1642 = vadd.f32 %v1585, %v1641
      %v1643 = vpop.f32.mrb[0].mxu0
      %v1644 = vpop.f32.mrb[0].mxu0
      %v1645 = vpop.f32.mrb[0].mxu0
      %1646 = vdwg.mxu0
      %v1647 = vadd.f32 %v1642, %v277
      %v1648 = vld [vmem:[%s507] sm:$0xff]
      %v1649 = vsub.f32 0.0, %v1647
      %v1650 = vmul.f32 %v1649, 1.442695
      %v1651 = vpow.pop %v1650
      %v1652 = vadd.f32 %v1651, 1.0
      %v1653 = vrcp.pop %v1652
      %v1654 = vtanh.pop %v1647
      %1656 = vrot.lane.b32.xlu0 %v1648, 32
      %v1657 = vpop.permute.xlu0 %1656
      %v1659 = vmul.f32 %v1653, %v1657
      %1661 = vrot.lane.b32.xlu0 %v1654, 64
      %v1662 = vpop.permute.xlu0 %1661
      %v1664 = vmul.f32 %v1653, %v1662
      %1666 = vrot.lane.b32.xlu0 %v1664, 32
      %v1667 = vpop.permute.xlu0 %1666
      %v1669 = vadd.f32 %v1659, %v1667
      %v1670 = vtanh.pop %v1669
      %1672 = vrot.lane.b32.xlu0 %v1670, 64
      %v1673 = vpop.permute.xlu0 %1672
      %v1675 = vmul.f32 %v1653, %v1673
      %1677 = vrot.lane.b32.xlu0 %v1669, 96
      %v1678 = vpop.permute.xlu0 %1677
      %1680 = vst.msk [vmem:[%s507] sm:$0xff] %vm186, %v1678
      %v1681 = vpack.c.bf16 %v1675, %v1675
      %v1683 = vunpack.c.l.b16 %v1681
      %v1684 = vpack.c.b16 %v1683, %v1683
      %1685 = vrot.lane.b32.xlu0 %v1684, 32
      %v1686 = vpop.permute.xlu0 %1685
      %1688 = vst.msk [vmem:[%s387] sm:$0xf] %vm380, %v1686
      %s1689 = sadd.s32 %s119, 4
      %v1690 = vstv %s1689
      %vm1691 = vcmp.eq.s32.totalorder %v549, %v1690
      %v1692 = vsel %vm1691, 1, 0
      %v1693 = vcvt.s32.f32 %v1692
      %v1694 = vld [vmem:[#allocation4] sm:$0xff]
      %1696 = vset.pattern.permute.xlu0 0
      %1697 = vperm.xlu0 %1696, %v1693
      %v1698 = vpop.permute.xlu0 %1697
      %v1700 = vmul.f32 %v1698, %v1675
      %1702 = vrot.lane.b32.xlu0 %v1700, 32
      %v1703 = vpop.permute.xlu0 %1702
      %v1705 = vadd.f32 %v1694, %v1703
      %1706 = vst.msk [vmem:[#allocation4] sm:$0xff] %vm186, %v1705
      %s1707 = scalar_lea.vmem [#allocation5], 40
      %v1708 = vld [vmem:[%s1707] sm:$0xff]
      %v1709 = vld [vmem:[#allocation2] sm:$0xf]
      %v1710 = vld [vmem:[#allocation14] sm:$0xf]
      %v1711 = vld [vmem:[#allocation14 + $0x4] sm:$0xf]
      %v1712 = vld [vmem:[#allocation14 + $0x8] sm:$0xf]
      %v1713 = vld [vmem:[#allocation14 + $0xc] sm:$0xf]
      %v1718 = vunpack.c.l.b16 %v1710
      %v1719 = vunpack.c.l.b16 %v1711
      %v1720 = vunpack.c.l.b16 %v1712
      %v1721 = vunpack.c.l.b16 %v1713
      %v1722 = vpack.c.b16 %v1719, %v1718
      %v1723 = vpack.c.b16 %v1721, %v1720
      %v1727 = vsel %vm186, %v1709, 0
      %1729 = vmatprep.subr.bf16.mxu0 0
      %1730 = vmatpush1.bf16.msra.mxu0 %v1722
      %1731 = vmatprep.subr.bf16.mxu0 0
      %1732 = vmatpush1.bf16.msra.mxu0 %v1723
      %1733 = vmatprep.subr.bf16.mxu0 0
      %1734 = vmatpush1.bf16.msra.mxu0 0
      %1735 = vmatprep.subr.bf16.mxu0 0
      %1736 = vmatpush1.bf16.msra.mxu0 0
      %1737 = vmatprep.subr.bf16.mxu0 0
      %1738 = vmatpush1.bf16.msra.mxu0 0
      %1739 = vmatprep.subr.bf16.mxu0 0
      %1740 = vmatpush1.bf16.msra.mxu0 0
      %1741 = vmatprep.subr.bf16.mxu0 0
      %1742 = vmatpush1.bf16.msra.mxu0 0
      %1743 = vmatprep.subr.bf16.mxu0 0
      %1744 = vmatpush1.bf16.msra.mxu0 0
      %1745 = vmatprep.subr.bf16.mxu0 0
      %1746 = vmatpush1.bf16.msra.mxu0 0
      %1747 = vmatprep.subr.bf16.mxu0 0
      %1748 = vmatpush1.bf16.msra.mxu0 0
      %1749 = vmatprep.subr.bf16.mxu0 0
      %1750 = vmatpush1.bf16.msra.mxu0 0
      %1751 = vmatprep.subr.bf16.mxu0 0
      %1752 = vmatpush1.bf16.msra.mxu0 0
      %1753 = vmatprep.subr.bf16.mxu0 0
      %1754 = vmatpush1.bf16.msra.mxu0 0
      %1755 = vmatprep.subr.bf16.mxu0 0
      %1756 = vmatpush1.bf16.msra.mxu0 0
      %1757 = vmatprep.subr.bf16.mxu0 0
      %1758 = vmatpush1.bf16.msra.mxu0 0
      %1759 = vmatprep.subr.bf16.mxu0 0
      %1760 = vmatpush1.bf16.msra.mxu0 0
      %1761 = vmatprep.mubr.bf16.mxu0 0
      %1762 = vmatmul.mubr.bf16.gmra.mrb[0].mxu0 %v1727
      %v1763 = vpop.f32.mrb[0].mxu0
      %v1764 = vadd.f32 0.0, %v1763
      %v1765 = vpop.f32.mrb[0].mxu0
      %v1766 = vpop.f32.mrb[0].mxu0
      %v1767 = vpop.f32.mrb[0].mxu0
      %1768 = vdwg.mxu0
      %v1769 = vadd.f32 %v1708, %v1764
      %v1770 = vld [vmem:[#allocation3] sm:$0xff]
      %v1771 = vsub.f32 0.0, %v1769
      %v1772 = vmul.f32 %v1771, 1.442695
      %v1773 = vpow.pop %v1772
      %v1774 = vadd.f32 %v1773, 1.0
      %v1775 = vrcp.pop %v1774
      %v1776 = vtanh.pop %v1769
      %1778 = vrot.lane.b32.xlu0 %v1770, 32
      %v1779 = vpop.permute.xlu0 %1778
      %v1781 = vmul.f32 %v1775, %v1779
      %1783 = vrot.lane.b32.xlu0 %v1776, 64
      %v1784 = vpop.permute.xlu0 %1783
      %v1786 = vmul.f32 %v1775, %v1784
      %1788 = vrot.lane.b32.xlu0 %v1786, 32
      %v1789 = vpop.permute.xlu0 %1788
      %v1791 = vadd.f32 %v1781, %v1789
      %v1792 = vtanh.pop %v1791
      %1794 = vrot.lane.b32.xlu0 %v1792, 64
      %v1795 = vpop.permute.xlu0 %1794
      %v1797 = vmul.f32 %v1775, %v1795
      %1799 = vrot.lane.b32.xlu0 %v1791, 96
      %v1800 = vpop.permute.xlu0 %1799
      %1802 = vst.msk [vmem:[#allocation3] sm:$0xff] %vm186, %v1800
      %v1803 = vpack.c.bf16 %v1797, %v1797
      %v1805 = vunpack.c.l.b16 %v1803
      %v1806 = vpack.c.b16 %v1805, %v1805
      %1807 = vrot.lane.b32.xlu0 %v1806, 32
      %v1808 = vpop.permute.xlu0 %1807
      %1810 = vst.msk [vmem:[#allocation2] sm:$0xf] %vm380, %v1808
      %v1811 = vld [vmem:[%s382] sm:$0xf]
      %v1812 = vld [vmem:[%s382 + $0x4] sm:$0xf]
      %v1813 = vld [vmem:[%s382 + $0x8] sm:$0xf]
      %v1814 = vld [vmem:[%s382 + $0xc] sm:$0xf]
      %v1815 = vld [vmem:[%s387] sm:$0xf]
      %v1816 = vld [vmem:[%s389] sm:$0xf]
      %v1817 = vld [vmem:[%s389 + $0x4] sm:$0xf]
      %v1818 = vld [vmem:[%s389 + $0x8] sm:$0xf]
      %v1819 = vld [vmem:[%s389 + $0xc] sm:$0xf]
      %v1824 = vunpack.c.l.b16 %v1816
      %v1825 = vunpack.c.l.b16 %v1817
      %v1826 = vunpack.c.l.b16 %v1818
      %v1827 = vunpack.c.l.b16 %v1819
      %v1828 = vpack.c.b16 %v1825, %v1824
      %v1829 = vpack.c.b16 %v1827, %v1826
      %v1833 = vsel %vm186, %v1815, 0
      %1835 = vmatprep.subr.bf16.mxu0 0
      %1836 = vmatpush1.bf16.msra.mxu0 %v1828
      %1837 = vmatprep.subr.bf16.mxu0 0
      %1838 = vmatpush1.bf16.msra.mxu0 %v1829
      %1839 = vmatprep.subr.bf16.mxu0 0
      %1840 = vmatpush1.bf16.msra.mxu0 0
      %1841 = vmatprep.subr.bf16.mxu0 0
      %1842 = vmatpush1.bf16.msra.mxu0 0
      %1843 = vmatprep.subr.bf16.mxu0 0
      %1844 = vmatpush1.bf16.msra.mxu0 0
      %1845 = vmatprep.subr.bf16.mxu0 0
      %1846 = vmatpush1.bf16.msra.mxu0 0
      %1847 = vmatprep.subr.bf16.mxu0 0
      %1848 = vmatpush1.bf16.msra.mxu0 0
      %1849 = vmatprep.subr.bf16.mxu0 0
      %1850 = vmatpush1.bf16.msra.mxu0 0
      %1851 = vmatprep.subr.bf16.mxu0 0
      %1852 = vmatpush1.bf16.msra.mxu0 0
      %1853 = vmatprep.subr.bf16.mxu0 0
      %1854 = vmatpush1.bf16.msra.mxu0 0
      %1855 = vmatprep.subr.bf16.mxu0 0
      %1856 = vmatpush1.bf16.msra.mxu0 0
      %1857 = vmatprep.subr.bf16.mxu0 0
      %1858 = vmatpush1.bf16.msra.mxu0 0
      %1859 = vmatprep.subr.bf16.mxu0 0
      %1860 = vmatpush1.bf16.msra.mxu0 0
      %1861 = vmatprep.subr.bf16.mxu0 0
      %1862 = vmatpush1.bf16.msra.mxu0 0
      %1863 = vmatprep.subr.bf16.mxu0 0
      %1864 = vmatpush1.bf16.msra.mxu0 0
      %1865 = vmatprep.subr.bf16.mxu0 0
      %1866 = vmatpush1.bf16.msra.mxu0 0
      %1867 = vmatprep.mubr.bf16.mxu0 0
      %1868 = vmatmul.mubr.bf16.gmra.mrb[0].mxu0 %v1833
      %v1869 = vpop.f32.mrb[0].mxu0
      %v1870 = vadd.f32 0.0, %v1869
      %v1871 = vpop.f32.mrb[0].mxu0
      %v1872 = vpop.f32.mrb[0].mxu0
      %v1873 = vpop.f32.mrb[0].mxu0
      %1874 = vdwg.mxu0
      %1875 = vrot.lane.b32.xlu0 %v1803, 32
      %v1876 = vpop.permute.xlu0 %1875
      %v1881 = vunpack.c.l.b16 %v1811
      %v1882 = vunpack.c.l.b16 %v1812
      %v1883 = vunpack.c.l.b16 %v1813
      %v1884 = vunpack.c.l.b16 %v1814
      %v1885 = vpack.c.b16 %v1882, %v1881
      %v1886 = vpack.c.b16 %v1884, %v1883
      %v1890 = vsel %vm186, %v1876, 0
      %1892 = vmatprep.subr.bf16.mxu0 0
      %1893 = vmatpush1.bf16.msra.mxu0 %v1885
      %1894 = vmatprep.subr.bf16.mxu0 0
      %1895 = vmatpush1.bf16.msra.mxu0 %v1886
      %1896 = vmatprep.subr.bf16.mxu0 0
      %1897 = vmatpush1.bf16.msra.mxu0 0
      %1898 = vmatprep.subr.bf16.mxu0 0
      %1899 = vmatpush1.bf16.msra.mxu0 0
      %1900 = vmatprep.subr.bf16.mxu0 0
      %1901 = vmatpush1.bf16.msra.mxu0 0
      %1902 = vmatprep.subr.bf16.mxu0 0
      %1903 = vmatpush1.bf16.msra.mxu0 0
      %1904 = vmatprep.subr.bf16.mxu0 0
      %1905 = vmatpush1.bf16.msra.mxu0 0
      %1906 = vmatprep.subr.bf16.mxu0 0
      %1907 = vmatpush1.bf16.msra.mxu0 0
      %1908 = vmatprep.subr.bf16.mxu0 0
      %1909 = vmatpush1.bf16.msra.mxu0 0
      %1910 = vmatprep.subr.bf16.mxu0 0
      %1911 = vmatpush1.bf16.msra.mxu0 0
      %1912 = vmatprep.subr.bf16.mxu0 0
      %1913 = vmatpush1.bf16.msra.mxu0 0
      %1914 = vmatprep.subr.bf16.mxu0 0
      %1915 = vmatpush1.bf16.msra.mxu0 0
      %1916 = vmatprep.subr.bf16.mxu0 0
      %1917 = vmatpush1.bf16.msra.mxu0 0
      %1918 = vmatprep.subr.bf16.mxu0 0
      %1919 = vmatpush1.bf16.msra.mxu0 0
      %1920 = vmatprep.subr.bf16.mxu0 0
      %1921 = vmatpush1.bf16.msra.mxu0 0
      %1922 = vmatprep.subr.bf16.mxu0 0
      %1923 = vmatpush1.bf16.msra.mxu0 0
      %1924 = vmatprep.mubr.bf16.mxu0 0
      %1925 = vmatmul.mubr.bf16.gmra.mrb[0].mxu0 %v1890
      %v1926 = vpop.f32.mrb[0].mxu0
      %v1927 = vadd.f32 %v1870, %v1926
      %v1928 = vpop.f32.mrb[0].mxu0
      %v1929 = vpop.f32.mrb[0].mxu0
      %v1930 = vpop.f32.mrb[0].mxu0
      %1931 = vdwg.mxu0
      %v1932 = vadd.f32 %v1927, %v277
      %v1933 = vld [vmem:[%s507] sm:$0xff]
      %v1934 = vsub.f32 0.0, %v1932
      %v1935 = vmul.f32 %v1934, 1.442695
      %v1936 = vpow.pop %v1935
      %v1937 = vadd.f32 %v1936, 1.0
      %v1938 = vrcp.pop %v1937
      %v1939 = vtanh.pop %v1932
      %1941 = vrot.lane.b32.xlu0 %v1933, 32
      %v1942 = vpop.permute.xlu0 %1941
      %v1944 = vmul.f32 %v1938, %v1942
      %1946 = vrot.lane.b32.xlu0 %v1939, 64
      %v1947 = vpop.permute.xlu0 %1946
      %v1949 = vmul.f32 %v1938, %v1947
      %1951 = vrot.lane.b32.xlu0 %v1949, 32
      %v1952 = vpop.permute.xlu0 %1951
      %v1954 = vadd.f32 %v1944, %v1952
      %v1955 = vtanh.pop %v1954
      %1957 = vrot.lane.b32.xlu0 %v1955, 64
      %v1958 = vpop.permute.xlu0 %1957
      %v1960 = vmul.f32 %v1938, %v1958
      %1962 = vrot.lane.b32.xlu0 %v1954, 96
      %v1963 = vpop.permute.xlu0 %1962
      %1965 = vst.msk [vmem:[%s507] sm:$0xff] %vm186, %v1963
      %v1966 = vpack.c.bf16 %v1960, %v1960
      %v1968 = vunpack.c.l.b16 %v1966
      %v1969 = vpack.c.b16 %v1968, %v1968
      %1970 = vrot.lane.b32.xlu0 %v1969, 32
      %v1971 = vpop.permute.xlu0 %1970
      %1973 = vst.msk [vmem:[%s387] sm:$0xf] %vm380, %v1971
      %s1974 = sadd.s32 %s119, 5
      %v1975 = vstv %s1974
      %vm1976 = vcmp.eq.s32.totalorder %v549, %v1975
      %v1977 = vsel %vm1976, 1, 0
      %v1978 = vcvt.s32.f32 %v1977
      %v1979 = vld [vmem:[#allocation4] sm:$0xff]
      %1981 = vset.pattern.permute.xlu0 0
      %1982 = vperm.xlu0 %1981, %v1978
      %v1983 = vpop.permute.xlu0 %1982
      %v1985 = vmul.f32 %v1983, %v1960
      %1987 = vrot.lane.b32.xlu0 %v1985, 32
      %v1988 = vpop.permute.xlu0 %1987
      %v1990 = vadd.f32 %v1979, %v1988
      %1991 = vst.msk [vmem:[#allocation4] sm:$0xff] %vm186, %v1990
      %s1992 = scalar_lea.vmem [#allocation5], 48
      %v1993 = vld [vmem:[%s1992] sm:$0xff]
      %v1994 = vld [vmem:[#allocation2] sm:$0xf]
      %v1995 = vld [vmem:[#allocation14] sm:$0xf]
      %v1996 = vld [vmem:[#allocation14 + $0x4] sm:$0xf]
      %v1997 = vld [vmem:[#allocation14 + $0x8] sm:$0xf]
      %v1998 = vld [vmem:[#allocation14 + $0xc] sm:$0xf]
      %v2003 = vunpack.c.l.b16 %v1995
      %v2004 = vunpack.c.l.b16 %v1996
      %v2005 = vunpack.c.l.b16 %v1997
      %v2006 = vunpack.c.l.b16 %v1998
      %v2007 = vpack.c.b16 %v2004, %v2003
      %v2008 = vpack.c.b16 %v2006, %v2005
      %v2012 = vsel %vm186, %v1994, 0
      %2014 = vmatprep.subr.bf16.mxu0 0
      %2015 = vmatpush1.bf16.msra.mxu0 %v2007
      %2016 = vmatprep.subr.bf16.mxu0 0
      %2017 = vmatpush1.bf16.msra.mxu0 %v2008
      %2018 = vmatprep.subr.bf16.mxu0 0
      %2019 = vmatpush1.bf16.msra.mxu0 0
      %2020 = vmatprep.subr.bf16.mxu0 0
      %2021 = vmatpush1.bf16.msra.mxu0 0
      %2022 = vmatprep.subr.bf16.mxu0 0
      %2023 = vmatpush1.bf16.msra.mxu0 0
      %2024 = vmatprep.subr.bf16.mxu0 0
      %2025 = vmatpush1.bf16.msra.mxu0 0
      %2026 = vmatprep.subr.bf16.mxu0 0
      %2027 = vmatpush1.bf16.msra.mxu0 0
      %2028 = vmatprep.subr.bf16.mxu0 0
      %2029 = vmatpush1.bf16.msra.mxu0 0
      %2030 = vmatprep.subr.bf16.mxu0 0
      %2031 = vmatpush1.bf16.msra.mxu0 0
      %2032 = vmatprep.subr.bf16.mxu0 0
      %2033 = vmatpush1.bf16.msra.mxu0 0
      %2034 = vmatprep.subr.bf16.mxu0 0
      %2035 = vmatpush1.bf16.msra.mxu0 0
      %2036 = vmatprep.subr.bf16.mxu0 0
      %2037 = vmatpush1.bf16.msra.mxu0 0
      %2038 = vmatprep.subr.bf16.mxu0 0
      %2039 = vmatpush1.bf16.msra.mxu0 0
      %2040 = vmatprep.subr.bf16.mxu0 0
      %2041 = vmatpush1.bf16.msra.mxu0 0
      %2042 = vmatprep.subr.bf16.mxu0 0
      %2043 = vmatpush1.bf16.msra.mxu0 0
      %2044 = vmatprep.subr.bf16.mxu0 0
      %2045 = vmatpush1.bf16.msra.mxu0 0
      %2046 = vmatprep.mubr.bf16.mxu0 0
      %2047 = vmatmul.mubr.bf16.gmra.mrb[0].mxu0 %v2012
      %v2048 = vpop.f32.mrb[0].mxu0
      %v2049 = vadd.f32 0.0, %v2048
      %v2050 = vpop.f32.mrb[0].mxu0
      %v2051 = vpop.f32.mrb[0].mxu0
      %v2052 = vpop.f32.mrb[0].mxu0
      %2053 = vdwg.mxu0
      %v2054 = vadd.f32 %v1993, %v2049
      %v2055 = vld [vmem:[#allocation3] sm:$0xff]
      %v2056 = vsub.f32 0.0, %v2054
      %v2057 = vmul.f32 %v2056, 1.442695
      %v2058 = vpow.pop %v2057
      %v2059 = vadd.f32 %v2058, 1.0
      %v2060 = vrcp.pop %v2059
      %v2061 = vtanh.pop %v2054
      %2063 = vrot.lane.b32.xlu0 %v2055, 32
      %v2064 = vpop.permute.xlu0 %2063
      %v2066 = vmul.f32 %v2060, %v2064
      %2068 = vrot.lane.b32.xlu0 %v2061, 64
      %v2069 = vpop.permute.xlu0 %2068
      %v2071 = vmul.f32 %v2060, %v2069
      %2073 = vrot.lane.b32.xlu0 %v2071, 32
      %v2074 = vpop.permute.xlu0 %2073
      %v2076 = vadd.f32 %v2066, %v2074
      %v2077 = vtanh.pop %v2076
      %2079 = vrot.lane.b32.xlu0 %v2077, 64
      %v2080 = vpop.permute.xlu0 %2079
      %v2082 = vmul.f32 %v2060, %v2080
      %2084 = vrot.lane.b32.xlu0 %v2076, 96
      %v2085 = vpop.permute.xlu0 %2084
      %2087 = vst.msk [vmem:[#allocation3] sm:$0xff] %vm186, %v2085
      %v2088 = vpack.c.bf16 %v2082, %v2082
      %v2090 = vunpack.c.l.b16 %v2088
      %v2091 = vpack.c.b16 %v2090, %v2090
      %2092 = vrot.lane.b32.xlu0 %v2091, 32
      %v2093 = vpop.permute.xlu0 %2092
      %2095 = vst.msk [vmem:[#allocation2] sm:$0xf] %vm380, %v2093
      %v2096 = vld [vmem:[%s382] sm:$0xf]
      %v2097 = vld [vmem:[%s382 + $0x4] sm:$0xf]
      %v2098 = vld [vmem:[%s382 + $0x8] sm:$0xf]
      %v2099 = vld [vmem:[%s382 + $0xc] sm:$0xf]
      %v2100 = vld [vmem:[%s387] sm:$0xf]
      %v2101 = vld [vmem:[%s389] sm:$0xf]
      %v2102 = vld [vmem:[%s389 + $0x4] sm:$0xf]
      %v2103 = vld [vmem:[%s389 + $0x8] sm:$0xf]
      %v2104 = vld [vmem:[%s389 + $0xc] sm:$0xf]
      %v2109 = vunpack.c.l.b16 %v2101
      %v2110 = vunpack.c.l.b16 %v2102
      %v2111 = vunpack.c.l.b16 %v2103
      %v2112 = vunpack.c.l.b16 %v2104
      %v2113 = vpack.c.b16 %v2110, %v2109
      %v2114 = vpack.c.b16 %v2112, %v2111
      %v2118 = vsel %vm186, %v2100, 0
      %2120 = vmatprep.subr.bf16.mxu0 0
      %2121 = vmatpush1.bf16.msra.mxu0 %v2113
      %2122 = vmatprep.subr.bf16.mxu0 0
      %2123 = vmatpush1.bf16.msra.mxu0 %v2114
      %2124 = vmatprep.subr.bf16.mxu0 0
      %2125 = vmatpush1.bf16.msra.mxu0 0
      %2126 = vmatprep.subr.bf16.mxu0 0
      %2127 = vmatpush1.bf16.msra.mxu0 0
      %2128 = vmatprep.subr.bf16.mxu0 0
      %2129 = vmatpush1.bf16.msra.mxu0 0
      %2130 = vmatprep.subr.bf16.mxu0 0
      %2131 = vmatpush1.bf16.msra.mxu0 0
      %2132 = vmatprep.subr.bf16.mxu0 0
      %2133 = vmatpush1.bf16.msra.mxu0 0
      %2134 = vmatprep.subr.bf16.mxu0 0
      %2135 = vmatpush1.bf16.msra.mxu0 0
      %2136 = vmatprep.subr.bf16.mxu0 0
      %2137 = vmatpush1.bf16.msra.mxu0 0
      %2138 = vmatprep.subr.bf16.mxu0 0
      %2139 = vmatpush1.bf16.msra.mxu0 0
      %2140 = vmatprep.subr.bf16.mxu0 0
      %2141 = vmatpush1.bf16.msra.mxu0 0
      %2142 = vmatprep.subr.bf16.mxu0 0
      %2143 = vmatpush1.bf16.msra.mxu0 0
      %2144 = vmatprep.subr.bf16.mxu0 0
      %2145 = vmatpush1.bf16.msra.mxu0 0
      %2146 = vmatprep.subr.bf16.mxu0 0
      %2147 = vmatpush1.bf16.msra.mxu0 0
      %2148 = vmatprep.subr.bf16.mxu0 0
      %2149 = vmatpush1.bf16.msra.mxu0 0
      %2150 = vmatprep.subr.bf16.mxu0 0
      %2151 = vmatpush1.bf16.msra.mxu0 0
      %2152 = vmatprep.mubr.bf16.mxu0 0
      %2153 = vmatmul.mubr.bf16.gmra.mrb[0].mxu0 %v2118
      %v2154 = vpop.f32.mrb[0].mxu0
      %v2155 = vadd.f32 0.0, %v2154
      %v2156 = vpop.f32.mrb[0].mxu0
      %v2157 = vpop.f32.mrb[0].mxu0
      %v2158 = vpop.f32.mrb[0].mxu0
      %2159 = vdwg.mxu0
      %2160 = vrot.lane.b32.xlu0 %v2088, 32
      %v2161 = vpop.permute.xlu0 %2160
      %v2166 = vunpack.c.l.b16 %v2096
      %v2167 = vunpack.c.l.b16 %v2097
      %v2168 = vunpack.c.l.b16 %v2098
      %v2169 = vunpack.c.l.b16 %v2099
      %v2170 = vpack.c.b16 %v2167, %v2166
      %v2171 = vpack.c.b16 %v2169, %v2168
      %v2175 = vsel %vm186, %v2161, 0
      %2177 = vmatprep.subr.bf16.mxu0 0
      %2178 = vmatpush1.bf16.msra.mxu0 %v2170
      %2179 = vmatprep.subr.bf16.mxu0 0
      %2180 = vmatpush1.bf16.msra.mxu0 %v2171
      %2181 = vmatprep.subr.bf16.mxu0 0
      %2182 = vmatpush1.bf16.msra.mxu0 0
      %2183 = vmatprep.subr.bf16.mxu0 0
      %2184 = vmatpush1.bf16.msra.mxu0 0
      %2185 = vmatprep.subr.bf16.mxu0 0
      %2186 = vmatpush1.bf16.msra.mxu0 0
      %2187 = vmatprep.subr.bf16.mxu0 0
      %2188 = vmatpush1.bf16.msra.mxu0 0
      %2189 = vmatprep.subr.bf16.mxu0 0
      %2190 = vmatpush1.bf16.msra.mxu0 0
      %2191 = vmatprep.subr.bf16.mxu0 0
      %2192 = vmatpush1.bf16.msra.mxu0 0
      %2193 = vmatprep.subr.bf16.mxu0 0
      %2194 = vmatpush1.bf16.msra.mxu0 0
      %2195 = vmatprep.subr.bf16.mxu0 0
      %2196 = vmatpush1.bf16.msra.mxu0 0
      %2197 = vmatprep.subr.bf16.mxu0 0
      %2198 = vmatpush1.bf16.msra.mxu0 0
      %2199 = vmatprep.subr.bf16.mxu0 0
      %2200 = vmatpush1.bf16.msra.mxu0 0
      %2201 = vmatprep.subr.bf16.mxu0 0
      %2202 = vmatpush1.bf16.msra.mxu0 0
      %2203 = vmatprep.subr.bf16.mxu0 0
      %2204 = vmatpush1.bf16.msra.mxu0 0
      %2205 = vmatprep.subr.bf16.mxu0 0
      %2206 = vmatpush1.bf16.msra.mxu0 0
      %2207 = vmatprep.subr.bf16.mxu0 0
      %2208 = vmatpush1.bf16.msra.mxu0 0
      %2209 = vmatprep.mubr.bf16.mxu0 0
      %2210 = vmatmul.mubr.bf16.gmra.mrb[0].mxu0 %v2175
      %v2211 = vpop.f32.mrb[0].mxu0
      %v2212 = vadd.f32 %v2155, %v2211
      %v2213 = vpop.f32.mrb[0].mxu0
      %v2214 = vpop.f32.mrb[0].mxu0
      %v2215 = vpop.f32.mrb[0].mxu0
      %2216 = vdwg.mxu0
      %v2217 = vadd.f32 %v2212, %v277
      %v2218 = vld [vmem:[%s507] sm:$0xff]
      %v2219 = vsub.f32 0.0, %v2217
      %v2220 = vmul.f32 %v2219, 1.442695
      %v2221 = vpow.pop %v2220
      %v2222 = vadd.f32 %v2221, 1.0
      %v2223 = vrcp.pop %v2222
      %v2224 = vtanh.pop %v2217
      %2226 = vrot.lane.b32.xlu0 %v2218, 32
      %v2227 = vpop.permute.xlu0 %2226
      %v2229 = vmul.f32 %v2223, %v2227
      %2231 = vrot.lane.b32.xlu0 %v2224, 64
      %v2232 = vpop.permute.xlu0 %2231
      %v2234 = vmul.f32 %v2223, %v2232
      %2236 = vrot.lane.b32.xlu0 %v2234, 32
      %v2237 = vpop.permute.xlu0 %2236
      %v2239 = vadd.f32 %v2229, %v2237
      %v2240 = vtanh.pop %v2239
      %2242 = vrot.lane.b32.xlu0 %v2240, 64
      %v2243 = vpop.permute.xlu0 %2242
      %v2245 = vmul.f32 %v2223, %v2243
      %2247 = vrot.lane.b32.xlu0 %v2239, 96
      %v2248 = vpop.permute.xlu0 %2247
      %2250 = vst.msk [vmem:[%s507] sm:$0xff] %vm186, %v2248
      %v2251 = vpack.c.bf16 %v2245, %v2245
      %v2253 = vunpack.c.l.b16 %v2251
      %v2254 = vpack.c.b16 %v2253, %v2253
      %2255 = vrot.lane.b32.xlu0 %v2254, 32
      %v2256 = vpop.permute.xlu0 %2255
      %2258 = vst.msk [vmem:[%s387] sm:$0xf] %vm380, %v2256
      %s2259 = sadd.s32 %s119, 6
      %v2260 = vstv %s2259
      %vm2261 = vcmp.eq.s32.totalorder %v549, %v2260
      %v2262 = vsel %vm2261, 1, 0
      %v2263 = vcvt.s32.f32 %v2262
      %v2264 = vld [vmem:[#allocation4] sm:$0xff]
      %2266 = vset.pattern.permute.xlu0 0
      %2267 = vperm.xlu0 %2266, %v2263
      %v2268 = vpop.permute.xlu0 %2267
      %v2270 = vmul.f32 %v2268, %v2245
      %2272 = vrot.lane.b32.xlu0 %v2270, 32
      %v2273 = vpop.permute.xlu0 %2272
      %v2275 = vadd.f32 %v2264, %v2273
      %2276 = vst.msk [vmem:[#allocation4] sm:$0xff] %vm186, %v2275
      %s2277 = scalar_lea.vmem [#allocation5], 56
      %v2278 = vld [vmem:[%s2277] sm:$0xff]
      %v2279 = vld [vmem:[#allocation2] sm:$0xf]
      %v2280 = vld [vmem:[#allocation14] sm:$0xf]
      %v2281 = vld [vmem:[#allocation14 + $0x4] sm:$0xf]
      %v2282 = vld [vmem:[#allocation14 + $0x8] sm:$0xf]
      %v2283 = vld [vmem:[#allocation14 + $0xc] sm:$0xf]
      %v2288 = vunpack.c.l.b16 %v2280
      %v2289 = vunpack.c.l.b16 %v2281
      %v2290 = vunpack.c.l.b16 %v2282
      %v2291 = vunpack.c.l.b16 %v2283
      %v2292 = vpack.c.b16 %v2289, %v2288
      %v2293 = vpack.c.b16 %v2291, %v2290
      %v2297 = vsel %vm186, %v2279, 0
      %2299 = vmatprep.subr.bf16.mxu0 0
      %2300 = vmatpush1.bf16.msra.mxu0 %v2292
      %2301 = vmatprep.subr.bf16.mxu0 0
      %2302 = vmatpush1.bf16.msra.mxu0 %v2293
      %2303 = vmatprep.subr.bf16.mxu0 0
      %2304 = vmatpush1.bf16.msra.mxu0 0
      %2305 = vmatprep.subr.bf16.mxu0 0
      %2306 = vmatpush1.bf16.msra.mxu0 0
      %2307 = vmatprep.subr.bf16.mxu0 0
      %2308 = vmatpush1.bf16.msra.mxu0 0
      %2309 = vmatprep.subr.bf16.mxu0 0
      %2310 = vmatpush1.bf16.msra.mxu0 0
      %2311 = vmatprep.subr.bf16.mxu0 0
      %2312 = vmatpush1.bf16.msra.mxu0 0
      %2313 = vmatprep.subr.bf16.mxu0 0
      %2314 = vmatpush1.bf16.msra.mxu0 0
      %2315 = vmatprep.subr.bf16.mxu0 0
      %2316 = vmatpush1.bf16.msra.mxu0 0
      %2317 = vmatprep.subr.bf16.mxu0 0
      %2318 = vmatpush1.bf16.msra.mxu0 0
      %2319 = vmatprep.subr.bf16.mxu0 0
      %2320 = vmatpush1.bf16.msra.mxu0 0
      %2321 = vmatprep.subr.bf16.mxu0 0
      %2322 = vmatpush1.bf16.msra.mxu0 0
      %2323 = vmatprep.subr.bf16.mxu0 0
      %2324 = vmatpush1.bf16.msra.mxu0 0
      %2325 = vmatprep.subr.bf16.mxu0 0
      %2326 = vmatpush1.bf16.msra.mxu0 0
      %2327 = vmatprep.subr.bf16.mxu0 0
      %2328 = vmatpush1.bf16.msra.mxu0 0
      %2329 = vmatprep.subr.bf16.mxu0 0
      %2330 = vmatpush1.bf16.msra.mxu0 0
      %2331 = vmatprep.mubr.bf16.mxu0 0
      %2332 = vmatmul.mubr.bf16.gmra.mrb[0].mxu0 %v2297
      %v2333 = vpop.f32.mrb[0].mxu0
      %v2334 = vadd.f32 0.0, %v2333
      %v2335 = vpop.f32.mrb[0].mxu0
      %v2336 = vpop.f32.mrb[0].mxu0
      %v2337 = vpop.f32.mrb[0].mxu0
      %2338 = vdwg.mxu0
      %v2339 = vadd.f32 %v2278, %v2334
      %v2340 = vld [vmem:[#allocation3] sm:$0xff]
      %v2341 = vsub.f32 0.0, %v2339
      %v2342 = vmul.f32 %v2341, 1.442695
      %v2343 = vpow.pop %v2342
      %v2344 = vadd.f32 %v2343, 1.0
      %v2345 = vrcp.pop %v2344
      %v2346 = vtanh.pop %v2339
      %2348 = vrot.lane.b32.xlu0 %v2340, 32
      %v2349 = vpop.permute.xlu0 %2348
      %v2351 = vmul.f32 %v2345, %v2349
      %2353 = vrot.lane.b32.xlu0 %v2346, 64
      %v2354 = vpop.permute.xlu0 %2353
      %v2356 = vmul.f32 %v2345, %v2354
      %2358 = vrot.lane.b32.xlu0 %v2356, 32
      %v2359 = vpop.permute.xlu0 %2358
      %v2361 = vadd.f32 %v2351, %v2359
      %v2362 = vtanh.pop %v2361
      %2364 = vrot.lane.b32.xlu0 %v2362, 64
      %v2365 = vpop.permute.xlu0 %2364
      %v2367 = vmul.f32 %v2345, %v2365
      %2369 = vrot.lane.b32.xlu0 %v2361, 96
      %v2370 = vpop.permute.xlu0 %2369
      %2372 = vst.msk [vmem:[#allocation3] sm:$0xff] %vm186, %v2370
      %v2373 = vpack.c.bf16 %v2367, %v2367
      %v2375 = vunpack.c.l.b16 %v2373
      %v2376 = vpack.c.b16 %v2375, %v2375
      %2377 = vrot.lane.b32.xlu0 %v2376, 32
      %v2378 = vpop.permute.xlu0 %2377
      %2380 = vst.msk [vmem:[#allocation2] sm:$0xf] %vm380, %v2378
      %v2381 = vld [vmem:[%s382] sm:$0xf]
      %v2382 = vld [vmem:[%s382 + $0x4] sm:$0xf]
      %v2383 = vld [vmem:[%s382 + $0x8] sm:$0xf]
      %v2384 = vld [vmem:[%s382 + $0xc] sm:$0xf]
      %v2385 = vld [vmem:[%s387] sm:$0xf]
      %v2386 = vld [vmem:[%s389] sm:$0xf]
      %v2387 = vld [vmem:[%s389 + $0x4] sm:$0xf]
      %v2388 = vld [vmem:[%s389 + $0x8] sm:$0xf]
      %v2389 = vld [vmem:[%s389 + $0xc] sm:$0xf]
      %v2394 = vunpack.c.l.b16 %v2386
      %v2395 = vunpack.c.l.b16 %v2387
      %v2396 = vunpack.c.l.b16 %v2388
      %v2397 = vunpack.c.l.b16 %v2389
      %v2398 = vpack.c.b16 %v2395, %v2394
      %v2399 = vpack.c.b16 %v2397, %v2396
      %v2403 = vsel %vm186, %v2385, 0
      %2405 = vmatprep.subr.bf16.mxu0 0
      %2406 = vmatpush1.bf16.msra.mxu0 %v2398
      %2407 = vmatprep.subr.bf16.mxu0 0
      %2408 = vmatpush1.bf16.msra.mxu0 %v2399
      %2409 = vmatprep.subr.bf16.mxu0 0
      %2410 = vmatpush1.bf16.msra.mxu0 0
      %2411 = vmatprep.subr.bf16.mxu0 0
      %2412 = vmatpush1.bf16.msra.mxu0 0
      %2413 = vmatprep.subr.bf16.mxu0 0
      %2414 = vmatpush1.bf16.msra.mxu0 0
      %2415 = vmatprep.subr.bf16.mxu0 0
      %2416 = vmatpush1.bf16.msra.mxu0 0
      %2417 = vmatprep.subr.bf16.mxu0 0
      %2418 = vmatpush1.bf16.msra.mxu0 0
      %2419 = vmatprep.subr.bf16.mxu0 0
      %2420 = vmatpush1.bf16.msra.mxu0 0
      %2421 = vmatprep.subr.bf16.mxu0 0
      %2422 = vmatpush1.bf16.msra.mxu0 0
      %2423 = vmatprep.subr.bf16.mxu0 0
      %2424 = vmatpush1.bf16.msra.mxu0 0
      %2425 = vmatprep.subr.bf16.mxu0 0
      %2426 = vmatpush1.bf16.msra.mxu0 0
      %2427 = vmatprep.subr.bf16.mxu0 0
      %2428 = vmatpush1.bf16.msra.mxu0 0
      %2429 = vmatprep.subr.bf16.mxu0 0
      %2430 = vmatpush1.bf16.msra.mxu0 0
      %2431 = vmatprep.subr.bf16.mxu0 0
      %2432 = vmatpush1.bf16.msra.mxu0 0
      %2433 = vmatprep.subr.bf16.mxu0 0
      %2434 = vmatpush1.bf16.msra.mxu0 0
      %2435 = vmatprep.subr.bf16.mxu0 0
      %2436 = vmatpush1.bf16.msra.mxu0 0
      %2437 = vmatprep.mubr.bf16.mxu0 0
      %2438 = vmatmul.mubr.bf16.gmra.mrb[0].mxu0 %v2403
      %v2439 = vpop.f32.mrb[0].mxu0
      %v2440 = vadd.f32 0.0, %v2439
      %v2441 = vpop.f32.mrb[0].mxu0
      %v2442 = vpop.f32.mrb[0].mxu0
      %v2443 = vpop.f32.mrb[0].mxu0
      %2444 = vdwg.mxu0
      %2445 = vrot.lane.b32.xlu0 %v2373, 32
      %v2446 = vpop.permute.xlu0 %2445
      %v2451 = vunpack.c.l.b16 %v2381
      %v2452 = vunpack.c.l.b16 %v2382
      %v2453 = vunpack.c.l.b16 %v2383
      %v2454 = vunpack.c.l.b16 %v2384
      %v2455 = vpack.c.b16 %v2452, %v2451
      %v2456 = vpack.c.b16 %v2454, %v2453
      %v2460 = vsel %vm186, %v2446, 0
      %2462 = vmatprep.subr.bf16.mxu0 0
      %2463 = vmatpush1.bf16.msra.mxu0 %v2455
      %2464 = vmatprep.subr.bf16.mxu0 0
      %2465 = vmatpush1.bf16.msra.mxu0 %v2456
      %2466 = vmatprep.subr.bf16.mxu0 0
      %2467 = vmatpush1.bf16.msra.mxu0 0
      %2468 = vmatprep.subr.bf16.mxu0 0
      %2469 = vmatpush1.bf16.msra.mxu0 0
      %2470 = vmatprep.subr.bf16.mxu0 0
      %2471 = vmatpush1.bf16.msra.mxu0 0
      %2472 = vmatprep.subr.bf16.mxu0 0
      %2473 = vmatpush1.bf16.msra.mxu0 0
      %2474 = vmatprep.subr.bf16.mxu0 0
      %2475 = vmatpush1.bf16.msra.mxu0 0
      %2476 = vmatprep.subr.bf16.mxu0 0
      %2477 = vmatpush1.bf16.msra.mxu0 0
      %2478 = vmatprep.subr.bf16.mxu0 0
      %2479 = vmatpush1.bf16.msra.mxu0 0
      %2480 = vmatprep.subr.bf16.mxu0 0
      %2481 = vmatpush1.bf16.msra.mxu0 0
      %2482 = vmatprep.subr.bf16.mxu0 0
      %2483 = vmatpush1.bf16.msra.mxu0 0
      %2484 = vmatprep.subr.bf16.mxu0 0
      %2485 = vmatpush1.bf16.msra.mxu0 0
      %2486 = vmatprep.subr.bf16.mxu0 0
      %2487 = vmatpush1.bf16.msra.mxu0 0
      %2488 = vmatprep.subr.bf16.mxu0 0
      %2489 = vmatpush1.bf16.msra.mxu0 0
      %2490 = vmatprep.subr.bf16.mxu0 0
      %2491 = vmatpush1.bf16.msra.mxu0 0
      %2492 = vmatprep.subr.bf16.mxu0 0
      %2493 = vmatpush1.bf16.msra.mxu0 0
      %2494 = vmatprep.mubr.bf16.mxu0 0
      %2495 = vmatmul.mubr.bf16.gmra.mrb[0].mxu0 %v2460
      %v2496 = vpop.f32.mrb[0].mxu0
      %v2497 = vadd.f32 %v2440, %v2496
      %v2498 = vpop.f32.mrb[0].mxu0
      %v2499 = vpop.f32.mrb[0].mxu0
      %v2500 = vpop.f32.mrb[0].mxu0
      %2501 = vdwg.mxu0
      %v2502 = vadd.f32 %v2497, %v277
      %v2503 = vld [vmem:[%s507] sm:$0xff]
      %v2504 = vsub.f32 0.0, %v2502
      %v2505 = vmul.f32 %v2504, 1.442695
      %v2506 = vpow.pop %v2505
      %v2507 = vadd.f32 %v2506, 1.0
      %v2508 = vrcp.pop %v2507
      %v2509 = vtanh.pop %v2502
      %2511 = vrot.lane.b32.xlu0 %v2503, 32
      %v2512 = vpop.permute.xlu0 %2511
      %v2514 = vmul.f32 %v2508, %v2512
      %2516 = vrot.lane.b32.xlu0 %v2509, 64
      %v2517 = vpop.permute.xlu0 %2516
      %v2519 = vmul.f32 %v2508, %v2517
      %2521 = vrot.lane.b32.xlu0 %v2519, 32
      %v2522 = vpop.permute.xlu0 %2521
      %v2524 = vadd.f32 %v2514, %v2522
      %v2525 = vtanh.pop %v2524
      %2527 = vrot.lane.b32.xlu0 %v2525, 64
      %v2528 = vpop.permute.xlu0 %2527
      %v2530 = vmul.f32 %v2508, %v2528
      %2532 = vrot.lane.b32.xlu0 %v2524, 96
      %v2533 = vpop.permute.xlu0 %2532
      %2535 = vst.msk [vmem:[%s507] sm:$0xff] %vm186, %v2533
      %v2536 = vpack.c.bf16 %v2530, %v2530
      %v2538 = vunpack.c.l.b16 %v2536
      %v2539 = vpack.c.b16 %v2538, %v2538
      %2540 = vrot.lane.b32.xlu0 %v2539, 32
      %v2541 = vpop.permute.xlu0 %2540
      %2543 = vst.msk [vmem:[%s387] sm:$0xf] %vm380, %v2541
      %s2544 = sadd.s32 %s119, 7
      %v2545 = vstv %s2544
      %vm2546 = vcmp.eq.s32.totalorder %v549, %v2545
      %v2547 = vsel %vm2546, 1, 0
      %v2548 = vcvt.s32.f32 %v2547
      %v2549 = vld [vmem:[#allocation4] sm:$0xff]
      %2551 = vset.pattern.permute.xlu0 0
      %2552 = vperm.xlu0 %2551, %v2548
      %v2553 = vpop.permute.xlu0 %2552
      %v2555 = vmul.f32 %v2553, %v2530
      %2557 = vrot.lane.b32.xlu0 %v2555, 32
      %v2558 = vpop.permute.xlu0 %2557
      %v2560 = vadd.f32 %v2549, %v2558
      %2561 = vst.msk [vmem:[#allocation4] sm:$0xff] %vm186, %v2560
    $region65: #{tpu_custom_call.1} parent=1 // pred_fallthru
      _
    // Predicated region
    $region66: #{tpu_custom_call.1} parent=1 // pred_check
      %p2562 = pneg %p120
    $region67: #{tpu_custom_call.1} parent=1 // pred_check_branch
      %2564 = sbr.rel (%p2562) target = $region69
    $region68: #{tpu_custom_call.1} parent=1 // pred_region
      %v2565 = vld [vmem:[#allocation4] sm:$0xff]
      %v2566 = vpack.c.bf16 %v2565, %v2565
      %v2567 = vld [vmem:[#allocation17] sm:$0xf]
      %v2568 = vld [vmem:[#allocation17 + $0x4] sm:$0xf]
      %v2569 = vld [vmem:[#allocation17 + $0x8] sm:$0xf]
      %v2570 = vld [vmem:[#allocation17 + $0xc] sm:$0xf]
      %v2571 = vld [vmem:[#allocation19] sm:$0x1]
      %v2573 = vlaneseq
      %v2574 = vshrl.u32 %v2573, 7
      %v2575 = vsub.s32 0, %v2574
      %v2576 = vrot.slane %v2571, %v2575
      %v2582 = vunpack.c.l.b16 %v2567
      %v2583 = vunpack.c.l.b16 %v2568
      %v2584 = vunpack.c.l.b16 %v2569
      %v2585 = vunpack.c.l.b16 %v2570
      %v2586 = vpack.c.b16 %v2583, %v2582
      %v2587 = vpack.c.b16 %v2585, %v2584
      %vm2590 = vcmask 261120
      %v2592 = vsel %vm2590, %v2566, 0
      %2594 = vmatprep.subr.bf16.mxu0 0
      %2595 = vmatpush1.bf16.msra.mxu0 %v2586
      %2596 = vmatprep.subr.bf16.mxu0 0
      %2597 = vmatpush1.bf16.msra.mxu0 %v2587
      %2598 = vmatprep.subr.bf16.mxu0 0
      %2599 = vmatpush1.bf16.msra.mxu0 0
      %2600 = vmatprep.subr.bf16.mxu0 0
      %2601 = vmatpush1.bf16.msra.mxu0 0
      %2602 = vmatprep.subr.bf16.mxu0 0
      %2603 = vmatpush1.bf16.msra.mxu0 0
      %2604 = vmatprep.subr.bf16.mxu0 0
      %2605 = vmatpush1.bf16.msra.mxu0 0
      %2606 = vmatprep.subr.bf16.mxu0 0
      %2607 = vmatpush1.bf16.msra.mxu0 0
      %2608 = vmatprep.subr.bf16.mxu0 0
      %2609 = vmatpush1.bf16.msra.mxu0 0
      %2610 = vmatprep.subr.bf16.mxu0 0
      %2611 = vmatpush1.bf16.msra.mxu0 0
      %2612 = vmatprep.subr.bf16.mxu0 0
      %2613 = vmatpush1.bf16.msra.mxu0 0
      %2614 = vmatprep.subr.bf16.mxu0 0
      %2615 = vmatpush1.bf16.msra.mxu0 0
      %2616 = vmatprep.subr.bf16.mxu0 0
      %2617 = vmatpush1.bf16.msra.mxu0 0
      %2618 = vmatprep.subr.bf16.mxu0 0
      %2619 = vmatpush1.bf16.msra.mxu0 0
      %2620 = vmatprep.subr.bf16.mxu0 0
      %2621 = vmatpush1.bf16.msra.mxu0 0
      %2622 = vmatprep.subr.bf16.mxu0 0
      %2623 = vmatpush1.bf16.msra.mxu0 0
      %2624 = vmatprep.subr.bf16.mxu0 0
      %2625 = vmatpush1.bf16.msra.mxu0 0
      %2626 = vmatprep.mubr.bf16.mxu0 0
      %2627 = vmatmul.mubr.bf16.gmra.mrb[0].mxu0 %v2592
      %v2628 = vpop.f32.mrb[0].mxu0
      %v2629 = vadd.f32 %v2576, %v2628
      %v2630 = vpop.f32.mrb[0].mxu0
      %v2631 = vpop.f32.mrb[0].mxu0
      %v2632 = vpop.f32.mrb[0].mxu0
      %2633 = vdwg.mxu0
      %2634 = vst [vmem:[#allocation20] sm:$0xff] %v2629
    $region69: #{tpu_custom_call.1} parent=1 // pred_fallthru
      _
    // Predicated region
    $region70: #{tpu_custom_call.1} parent=1 // pred_check
      _
    $region71: #{tpu_custom_call.1} parent=1 // pred_check_branch
      %2636 = sbr.rel (0) target = $region73
    $region72: #{tpu_custom_call.1} parent=1 // pred_region
      %s2638 = ssub.s32 128, 128
      %2639 = vsyncadd [#allocation10], %s2638
      %s2641 = sshll.u32 [#allocation20], 4
      %s2642 = int_to_ptr.vmem [resolvable:$true] %s2641
      %2644 = dma.vmem_to_hbm [thread:$0]  %s2642, 128, %s8, [#allocation10]
    $region73: #{tpu_custom_call.1} parent=1 // pred_fallthru
      _
    // Predicated region
    $region74: #{tpu_custom_call.1} parent=1 // pred_check
      _
    $region75: #{tpu_custom_call.1} parent=1 // pred_check_branch
      %2646 = sbr.rel (0) target = $region77
    $region76: #{tpu_custom_call.1} parent=1 // pred_region
      %2647 = dma.done [#allocation10], 128
    $region77: #{tpu_custom_call.1} parent=1 // pred_fallthru
      _
    %2648 = vsyncpa [#allocation9], 1
    %2649 = vsyncpa [#allocation12], 1
    %2650 = vsyncpa [#allocation15], 1
    %2651 = vsyncpa [#allocation18], 1
    %2652 = vsyncpa [#allocation10], 1

</llo_original>
